<compile_context>
chip_gen: v5e
topology: v5e:2x2
jax: 0.10.0
libtpu: 0.0.40
codegen_flags: <defaults>
</compile_context>

<pallas_src>
import jax
import jax.numpy as jnp
import numpy as np
from jax import lax
from jax.experimental import pallas as pl
from jax.experimental.pallas import tpu as pltpu

LANE = 128
ACT_DTYPE = jnp.bfloat16   # MXU-input / activation-I/O dtype (f32 accumulation)


def bottleneck_kernel(x_ref, w1_ref, w2_ref, w3_ref,
                      s1_ref, b1_ref, s2_ref, b2_ref, s3_ref, b3_ref,
                      out_ref, patches_ref):
    # x_ref:       (1, H+2, W, Cin_p) bf16 -- zero halo row top/bottom, resident per image
    # w1/w2/w3:    bf16 packed weights
    # s*/b*:       (1, C_p)/(1, Cout_p) f32 folded-BN scale/bias
    # out_ref:     (1, TH, W, Cout_p)  bf16
    # patches_ref: (TH*W, 9*C_p)       bf16 VMEM scratch (fused 3x3 patches)
    _, hp2, W, cin_p = x_ref.shape
    H = hp2 - 2
    _, TH, _, cout_p = out_ref.shape
    c_p = w1_ref.shape[1]

    row0 = pl.multiple_of(pl.program_id(1) * TH, TH)   # first output row (orig coords)

    # Hoist folded-BN scale/bias loads (broadcasts happen once).
    s1 = s1_ref[...]; b1 = b1_ref[...]
    s2 = s2_ref[...]; b2 = b2_ref[...]
    s3 = s3_ref[...]; b3 = b3_ref[...]

    # ---- conv1 (1x1) + bn1 + relu over TH+2 halo rows (bf16 MXU, f32 acc) ----
    # padded-x rows [row0, row0+TH+2) == original rows [row0-1, row0+TH+1)
    xw = x_ref[:, pl.ds(row0, TH + 2), :, :].reshape((TH + 2) * W, cin_p)
    h1 = jnp.dot(xw, w1_ref[...], preferred_element_type=jnp.float32)
    h1 = jnp.maximum(h1 * s1 + b1, 0.0).reshape(TH + 2, W, c_p)

    # Halo rows outside the image are conv2 zero-padding.  Only the first/last
    # tile row can be out of range; one broadcast multiply zeroes them.
    ridx = lax.broadcasted_iota(jnp.int32, (TH + 2, W, 1), 0) + (row0 - 1)
    rmask = ((ridx >= 0) & (ridx < H)).astype(h1.dtype)
    h1 = h1 * rmask

    # ---- conv2 (3x3, stride 1, pad 1) + bn2 + relu ---------------------------
    # Each tap is written straight into the bf16 patches scratch; a single
    # fused (TH*W, 9*C_p) x (9*C_p, C_p) MXU matmul consumes it.
    cidx = lax.broadcasted_iota(jnp.int32, (TH, W, 1), 1)
    col_ok = {-1: cidx >= 1, 1: cidx < W - 1}          # hoisted column masks
    for ky in range(3):
        rows = h1[ky:ky + TH]                          # (TH, W, C_p), static slice
        for kx in range(3):
            dx = kx - 1
            if dx == 0:
                t = rows
            else:
                # t[:, c, :] = rows[:, c+dx, :], zero outside [0, W)
                t = pltpu.roll(rows, shift=(-dx) % W, axis=1)
                t = jnp.where(col_ok[dx], t, jnp.zeros_like(t))
            k = ky * 3 + kx
            patches_ref[:, k * c_p:(k + 1) * c_p] = (
                t.reshape(TH * W, c_p).astype(patches_ref.dtype))
    h2 = jnp.dot(patches_ref[...], w2_ref[...], preferred_element_type=jnp.float32)
    h2 = jnp.maximum(h2 * s2 + b2, 0.0)

    # ---- conv3 (1x1) + bn3 + residual + relu ---------------------------------
    h3 = jnp.dot(h2.astype(ACT_DTYPE), w3_ref[...], preferred_element_type=jnp.float32)
    h3 = h3 * s3 + b3
    # identity residual (stride=1, downsample=None => Cin_p == Cout_p); f32 add.
    res = x_ref[:, pl.ds(row0 + 1, TH), :, :].reshape(TH * W, cout_p).astype(jnp.float32)
    out_ref[...] = (jnp.maximum(h3 + res, 0.0)
                    .reshape(1, TH, W, cout_p).astype(out_ref.dtype))


# --------------------------------- wrapper ---------------------------------

def _round_up(x, m):
    return (x + m - 1) // m * m


def _pad_axis(a, axis, new_size):
    pad = new_size - a.shape[axis]
    if pad == 0:
        return a
    widths = [(0, 0)] * a.ndim
    widths[axis] = (0, pad)
    return jnp.pad(a, widths)


def _vmem_capacity_bytes():
    try:
        return int(pltpu.get_tpu_info().vmem_capacity_bytes)
    except Exception:
        return 64 << 20      # conservative fallback: v7x per-TC VMEM


def _vmem_bytes_estimate(TH, H, W, cin_p, c_p, cout_p):
    bf, f = 2, 4
    x_blk = (H + 2) * W * cin_p * bf * 2             # resident image, double-buffered
    out_blk = TH * W * cout_p * bf * 2               # output tile, double-buffered
    wts = (cin_p * c_p + 9 * c_p * c_p + c_p * cout_p) * bf   # Buffered(1)
    vecs = (4 * c_p + 2 * cout_p) * f                          # Buffered(1)
    patches = TH * W * 9 * c_p * bf                  # scratch
    live = ((TH + 2) * W * c_p * (f + bf)            # h1 f32 + bf16 tap copies
            + TH * W * c_p * (f + bf)                # h2 f32 + bf16 copy for conv3
            + 3 * TH * W * cout_p * f)               # h3 / res / pre-store out
    return x_blk + out_blk + wts + vecs + patches + live


def _pick_row_tile(H, W, cin_p, c_p, cout_p, budget):
    fits = [th for th in range(1, H + 1)
            if H % th == 0
            and _vmem_bytes_estimate(th, H, W, cin_p, c_p, cout_p) <= budget]
    if not fits:
        return 1
    # Prefer tiles whose flattened (rows*W) dims stay sublane(8)-aligned so the
    # (rows, W, C) -> (rows*W, C) reshapes feeding the MXU are layout-free.
    aligned = [th for th in fits if (th * W) % 8 == 0 and ((th + 2) * W) % 8 == 0]
    return max(aligned) if aligned else max(fits)


def _const_spec(shape, index_map):
    # Single-buffer inputs whose block index never changes (weights, BN vecs):
    # the default second pipeline buffer would never be filled (pure VMEM waste).
    if hasattr(pl, "Buffered"):
        try:
            return pl.BlockSpec(shape, index_map, pipeline_mode=pl.Buffered(1))
        except Exception:
            pass
    return pl.BlockSpec(shape, index_map)


def fold_bn(gamma, beta, mean, var, eps=1e-5):
    scale = gamma / jnp.sqrt(var + eps)
    bias = beta - mean * scale
    return scale, bias


def bottleneck_pallas(x_nhwc, params, row_tile=None):
    """x_nhwc: (N, H, W, Cin) f32.  Returns (N, H, W, 4*C) bf16."""
    N, H, W, Cin = x_nhwc.shape
    C = params["w1"].shape[1]
    Cout = params["w3"].shape[1]
    assert Cout == 4 * C
    # stride=1, downsample=None branch of the module => identity residual.
    assert Cin == Cout, "identity residual requires in_planes == 4*out_planes"

    cin_p = _round_up(Cin, LANE)
    c_p = _round_up(C, LANE)
    cout_p = _round_up(Cout, LANE)
    assert cin_p == cout_p

    vmem_cap = _vmem_capacity_bytes()
    if row_tile is None:
        row_tile = _pick_row_tile(H, W, cin_p, c_p, cout_p,
                                  budget=int(vmem_cap * 0.45))
    TH = int(row_tile)
    assert 1 <= TH <= H and H % TH == 0

    # ---- pack params: channels padded to 128 multiples, weights bf16 --------
    w1p = _pad_axis(_pad_axis(params["w1"], 0, cin_p), 1, c_p).astype(ACT_DTYPE)
    w2p = (_pad_axis(_pad_axis(params["w2"], 2, c_p), 3, c_p)
           .reshape(9 * c_p, c_p).astype(ACT_DTYPE))
    w3p = _pad_axis(_pad_axis(params["w3"], 0, c_p), 1, cout_p).astype(ACT_DTYPE)

    def vec(v, to):
        return _pad_axis(jnp.asarray(v, jnp.float32).reshape(1, -1), 1, to)

    s1, b1 = vec(params["s1"], c_p), vec(params["b1"], c_p)
    s2, b2 = vec(params["s2"], c_p), vec(params["b2"], c_p)
    s3, b3 = vec(params["s3"], cout_p), vec(params["b3"], cout_p)

    # x: one zero halo row top/bottom (3x3 conv), channels padded, bf16 I/O.
    x_pad = jnp.pad(x_nhwc, ((0, 0), (1, 1), (0, 0), (0, cin_p - Cin))).astype(ACT_DTYPE)

    # TODO(synk): for tiny spatial stages (e.g. 7x7) fold several images into
    # one grid step so the matmul M dim stays >= 256; not needed at these shapes.
    grid = (N, H // TH)
    full = lambda n, h: (0, 0)
    in_specs = [
        # resident-per-image x block (re-DMA'd only when the image index changes)
        pl.BlockSpec((1, H + 2, W, cin_p), lambda n, h: (n, 0, 0, 0)),
        _const_spec((cin_p, c_p), full),
        _const_spec((9 * c_p, c_p), full),
        _const_spec((c_p, cout_p), full),
        _const_spec((1, c_p), full), _const_spec((1, c_p), full),
        _const_spec((1, c_p), full), _const_spec((1, c_p), full),
        _const_spec((1, cout_p), full), _const_spec((1, cout_p), full),
    ]
    out_specs = pl.BlockSpec((1, TH, W, cout_p), lambda n, h: (n, h, 0, 0))

    flops = 2 * N * H * W * (cin_p * c_p + 9 * c_p * c_p + c_p * cout_p)
    bytes_accessed = (2 * (x_pad.size + N * H * W * cout_p
                           + w1p.size + w2p.size + w3p.size)
                      + 4 * (4 * c_p + 2 * cout_p))
    est = _vmem_bytes_estimate(TH, H, W, cin_p, c_p, cout_p)
    vmem_limit = int(min(max(int(1.5 * est) + (8 << 20), 32 << 20),
                         vmem_cap * 3 // 4))

    out_p = pl.pallas_call(
        bottleneck_kernel,
        out_shape=jax.ShapeDtypeStruct((N, H, W, cout_p), ACT_DTYPE),
        grid=grid,
        in_specs=in_specs,
        out_specs=out_specs,
        scratch_shapes=[pltpu.VMEM((TH * W, 9 * c_p), ACT_DTYPE)],
        compiler_params=pltpu.CompilerParams(
            dimension_semantics=("parallel", "parallel"),
            vmem_limit_bytes=vmem_limit),
        cost_estimate=pl.CostEstimate(flops=int(flops), transcendentals=0,
                                      bytes_accessed=int(bytes_accessed)),
    )(x_pad, w1p, w2p, w3p, s1, b1, s2, b2, s3, b3)
    return out_p[..., :Cout]


# ----------------------------- pure-JAX reference ---------------------------

def bottleneck_reference(x_nhwc, params):
    dn = lax.conv_dimension_numbers(x_nhwc.shape, (1, 1, 1, 1),
                                    ("NHWC", "HWIO", "NHWC"))
    Cin, C = params["w1"].shape

    def bn(h, s, b):
        return h * s.reshape(1, 1, 1, -1) + b.reshape(1, 1, 1, -1)

    w1 = params["w1"].reshape(1, 1, Cin, C)
    w2 = params["w2"]                                # (3,3,C,C) HWIO
    w3 = params["w3"].reshape(1, 1, C, 4 * C)

    h = lax.conv_general_dilated(x_nhwc, w1, (1, 1), "VALID", dimension_numbers=dn)
    h = jnp.maximum(bn(h, params["s1"], params["b1"]), 0.0)
    h = lax.conv_general_dilated(h, w2, (1, 1), [(1, 1), (1, 1)], dimension_numbers=dn)
    h = jnp.maximum(bn(h, params["s2"], params["b2"]), 0.0)
    h = lax.conv_general_dilated(h, w3, (1, 1), "VALID", dimension_numbers=dn)
    h = bn(h, params["s3"], params["b3"])
    return jnp.maximum(h + x_nhwc, 0.0)


if __name__ == "__main__":
    # Small shapes consistent with the module: stride=1, downsample=None
    # requires in_planes == out_planes * 4.
    N, H, W = 2, 16, 16
    out_planes = 4
    in_planes = out_planes * 4  # 16

    key = jax.random.PRNGKey(0)
    ks = jax.random.split(key, 8)

    w1 = jax.random.normal(ks[0], (in_planes, out_planes), jnp.float32) * 0.1
    w2 = jax.random.normal(ks[1], (3, 3, out_planes, out_planes), jnp.float32) * 0.1
    w3 = jax.random.normal(ks[2], (out_planes, 4 * out_planes), jnp.float32) * 0.1

    def bn_params(k, c):
        k1, k2, k3, k4 = jax.random.split(k, 4)
        gamma = 1.0 + 0.1 * jax.random.normal(k1, (c,), jnp.float32)
        beta = 0.1 * jax.random.normal(k2, (c,), jnp.float32)
        mean = 0.1 * jax.random.normal(k3, (c,), jnp.float32)
        var = 1.0 + 0.1 * jax.random.uniform(k4, (c,), jnp.float32)
        return fold_bn(gamma, beta, mean, var)

    s1, b1 = bn_params(ks[3], out_planes)
    s2, b2 = bn_params(ks[4], out_planes)
    s3, b3 = bn_params(ks[5], 4 * out_planes)

    params = {"w1": w1, "w2": w2, "w3": w3,
              "s1": s1, "b1": b1, "s2": s2, "b2": b2, "s3": s3, "b3": b3}

    # Input in PyTorch NCHW, transposed to NHWC for the kernel.
    x_nchw = jax.random.normal(ks[6], (N, in_planes, H, W), jnp.float32)
    x_nhwc = jnp.transpose(x_nchw, (0, 2, 3, 1))

    # row_tile=8 exercises the multi-row-tile halo path (H=16 -> 2 tiles/image).
    out = jax.block_until_ready(bottleneck_pallas(x_nhwc, params, row_tile=8))
    ref = jax.block_until_ready(bottleneck_reference(x_nhwc, params))

    assert out.shape == (N, H, W, 4 * out_planes)
    # bf16 MXU inputs / bf16 activations => looser tolerance than the f32 path.
    np.testing.assert_allclose(np.asarray(out, dtype=np.float32), np.asarray(ref),
                               rtol=3e-2, atol=3e-2)
    print("KERNEL_OK")
</pallas_src>

<mosaic_0001>
module attributes {stable_mosaic.version = 11 : i64} {
  func.func @bottleneck_kernel(%arg0: i32, %arg1: i32, %arg2: memref<1x18x16x128xbf16, #tpu.memory_space<vmem>>, %arg3: memref<128x128xbf16, #tpu.memory_space<vmem>>, %arg4: memref<1152x128xbf16, #tpu.memory_space<vmem>>, %arg5: memref<128x128xbf16, #tpu.memory_space<vmem>>, %arg6: memref<1x128xf32, #tpu.memory_space<vmem>>, %arg7: memref<1x128xf32, #tpu.memory_space<vmem>>, %arg8: memref<1x128xf32, #tpu.memory_space<vmem>>, %arg9: memref<1x128xf32, #tpu.memory_space<vmem>>, %arg10: memref<1x128xf32, #tpu.memory_space<vmem>>, %arg11: memref<1x128xf32, #tpu.memory_space<vmem>>, %arg12: memref<1x8x16x128xbf16, #tpu.memory_space<vmem>>, %arg13: memref<128x1152xbf16, #tpu.memory_space<vmem>>) attributes {dimension_semantics = [#tpu.dimension_semantics<parallel>, #tpu.dimension_semantics<parallel>], iteration_bounds = array<i64: 2, 2>, scalar_prefetch = 0 : i64, scratch_operands = 1 : i64, tpu.core_type = #tpu.core_type<tc>, window_params = [{transform_indices = @transform_0, window_bounds = array<i64: 1, 18, 16, 128>}, {pipeline_mode = #tpu.pipeline_mode<synchronous>, transform_indices = @transform_1, window_bounds = array<i64: 128, 128>}, {pipeline_mode = #tpu.pipeline_mode<synchronous>, transform_indices = @transform_2, window_bounds = array<i64: 1152, 128>}, {pipeline_mode = #tpu.pipeline_mode<synchronous>, transform_indices = @transform_3, window_bounds = array<i64: 128, 128>}, {pipeline_mode = #tpu.pipeline_mode<synchronous>, transform_indices = @transform_4, window_bounds = array<i64: 1, 128>}, {pipeline_mode = #tpu.pipeline_mode<synchronous>, transform_indices = @transform_5, window_bounds = array<i64: 1, 128>}, {pipeline_mode = #tpu.pipeline_mode<synchronous>, transform_indices = @transform_6, window_bounds = array<i64: 1, 128>}, {pipeline_mode = #tpu.pipeline_mode<synchronous>, transform_indices = @transform_7, window_bounds = array<i64: 1, 128>}, {pipeline_mode = #tpu.pipeline_mode<synchronous>, transform_indices = @transform_8, window_bounds = array<i64: 1, 128>}, {pipeline_mode = #tpu.pipeline_mode<synchronous>, transform_indices = @transform_9, window_bounds = array<i64: 1, 128>}, {transform_indices = @transform_10, window_bounds = array<i64: 1, 8, 16, 128>}]} {
    %c8_i32 = arith.constant 8 : i32
    %0 = arith.muli %arg1, %c8_i32 : i32
    %1 = tpu.assume_multiple %0, 8 : i32
    %c0 = arith.constant 0 : index
    %c0_0 = arith.constant 0 : index
    %2 = vector.load %arg6[%c0, %c0_0] : memref<1x128xf32, #tpu.memory_space<vmem>>, vector<1x128xf32>
    %c0_1 = arith.constant 0 : index
    %c0_2 = arith.constant 0 : index
    %3 = vector.load %arg7[%c0_1, %c0_2] : memref<1x128xf32, #tpu.memory_space<vmem>>, vector<1x128xf32>
    %c0_3 = arith.constant 0 : index
    %c0_4 = arith.constant 0 : index
    %4 = vector.load %arg8[%c0_3, %c0_4] : memref<1x128xf32, #tpu.memory_space<vmem>>, vector<1x128xf32>
    %c0_5 = arith.constant 0 : index
    %c0_6 = arith.constant 0 : index
    %5 = vector.load %arg9[%c0_5, %c0_6] : memref<1x128xf32, #tpu.memory_space<vmem>>, vector<1x128xf32>
    %c0_7 = arith.constant 0 : index
    %c0_8 = arith.constant 0 : index
    %6 = vector.load %arg10[%c0_7, %c0_8] : memref<1x128xf32, #tpu.memory_space<vmem>>, vector<1x128xf32>
    %c0_9 = arith.constant 0 : index
    %c0_10 = arith.constant 0 : index
    %7 = vector.load %arg11[%c0_9, %c0_10] : memref<1x128xf32, #tpu.memory_space<vmem>>, vector<1x128xf32>
    %c0_11 = arith.constant 0 : index
    %8 = arith.index_cast %1 : i32 to index
    %c0_12 = arith.constant 0 : index
    %c0_13 = arith.constant 0 : index
    %9 = vector.load %arg2[%c0_11, %8, %c0_12, %c0_13] : memref<1x18x16x128xbf16, #tpu.memory_space<vmem>>, vector<1x10x16x128xbf16>
    %10 = vector.shape_cast %9 : vector<1x10x16x128xbf16> to vector<160x128xbf16>
    %c0_14 = arith.constant 0 : index
    %c0_15 = arith.constant 0 : index
    %11 = vector.load %arg3[%c0_14, %c0_15] : memref<128x128xbf16, #tpu.memory_space<vmem>>, vector<128x128xbf16>
    %cst = arith.constant dense<0.000000e+00> : vector<160x128xf32>
    %12 = tpu.matmul %10, %11, %cst {dimension_numbers = #tpu.dot_dimension_numbers<[1], [0], [0], [1], [0, 0, 1, 1], [], []>} : vector<160x128xbf16>, vector<128x128xbf16>, vector<160x128xf32> -> vector<160x128xf32>
    %13 = vector.broadcast %2 : vector<1x128xf32> to vector<160x128xf32>
    %14 = arith.mulf %12, %13 : vector<160x128xf32>
    %15 = vector.broadcast %3 : vector<1x128xf32> to vector<160x128xf32>
    %16 = arith.addf %14, %15 : vector<160x128xf32>
    %cst_16 = arith.constant 0.000000e+00 : f32
    %17 = vector.broadcast %cst_16 : f32 to vector<160x128xf32>
    %18 = arith.maximumf %16, %17 : vector<160x128xf32>
    %19 = vector.shape_cast %18 : vector<160x128xf32> to vector<10x16x128xf32>
    %20 = tpu.iota {dimensions = array<i32: 0>} : vector<10x16x1xi32>
    %c1_i32 = arith.constant 1 : i32
    %21 = arith.subi %1, %c1_i32 : i32
    %22 = vector.broadcast %21 : i32 to vector<10x16x1xi32>
    %23 = arith.addi %20, %22 : vector<10x16x1xi32>
    %c0_i32 = arith.constant 0 : i32
    %24 = vector.broadcast %c0_i32 : i32 to vector<10x16x1xi32>
    %25 = arith.cmpi sge, %23, %24 : vector<10x16x1xi32>
    %c16_i32 = arith.constant 16 : i32
    %26 = vector.broadcast %c16_i32 : i32 to vector<10x16x1xi32>
    %27 = arith.cmpi slt, %23, %26 : vector<10x16x1xi32>
    %28 = arith.andi %25, %27 : vector<10x16x1xi1>
    %29 = arith.extui %28 : vector<10x16x1xi1> to vector<10x16x1xi32>
    %30 = arith.sitofp %29 : vector<10x16x1xi32> to vector<10x16x1xf32>
    %31 = vector.broadcast %30 : vector<10x16x1xf32> to vector<10x16x128xf32>
    %32 = arith.mulf %19, %31 : vector<10x16x128xf32>
    %33 = tpu.iota {dimensions = array<i32: 1>} : vector<8x16x1xi32>
    %c1_i32_17 = arith.constant 1 : i32
    %34 = vector.broadcast %c1_i32_17 : i32 to vector<8x16x1xi32>
    %35 = arith.cmpi sge, %33, %34 : vector<8x16x1xi32>
    %c15_i32 = arith.constant 15 : i32
    %36 = vector.broadcast %c15_i32 : i32 to vector<8x16x1xi32>
    %37 = arith.cmpi slt, %33, %36 : vector<8x16x1xi32>
    %38 = vector.extract_strided_slice %32 {offsets = [0, 0, 0], sizes = [8, 16, 128], strides = [1, 1, 1]} : vector<10x16x128xf32> to vector<8x16x128xf32>
    %c1_i32_18 = arith.constant 1 : i32
    %39 = tpu.dynamic_rotate %38 by %c1_i32_18 dim 1 : vector<8x16x128xf32>, i32 -> vector<8x16x128xf32>
    %cst_19 = arith.constant 0.000000e+00 : f32
    %40 = vector.broadcast %cst_19 : f32 to vector<8x16x128xf32>
    %41 = vector.shape_cast %35 : vector<8x16x1xi1> to vector<8x16x1xi1>
    %42 = vector.broadcast %41 : vector<8x16x1xi1> to vector<8x16x128xi1>
    %43 = arith.select %42, %39, %40 : vector<8x16x128xi1>, vector<8x16x128xf32>
    %44 = vector.shape_cast %43 : vector<8x16x128xf32> to vector<128x128xf32>
    %45 = arith.truncf %44 : vector<128x128xf32> to vector<128x128xbf16>
    %c0_20 = arith.constant 0 : index
    %c0_21 = arith.constant 0 : index
    %46 = vector.load %arg13[%c0_20, %c0_21] : memref<128x1152xbf16, #tpu.memory_space<vmem>>, vector<128x128xbf16>
    tpu.vector_store %arg13[%c0_20, %c0_21], %45 {strides = array<i32>} : memref<128x1152xbf16, #tpu.memory_space<vmem>>, vector<128x128xbf16>,
    %47 = vector.shape_cast %38 : vector<8x16x128xf32> to vector<128x128xf32>
    %48 = arith.truncf %47 : vector<128x128xf32> to vector<128x128xbf16>
    %c0_22 = arith.constant 0 : index
    %c128 = arith.constant 128 : index
    %49 = vector.load %arg13[%c0_22, %c128] : memref<128x1152xbf16, #tpu.memory_space<vmem>>, vector<128x128xbf16>
    tpu.vector_store %arg13[%c0_22, %c128], %48 {strides = array<i32>} : memref<128x1152xbf16, #tpu.memory_space<vmem>>, vector<128x128xbf16>,
    %c15_i32_23 = arith.constant 15 : i32
    %50 = tpu.dynamic_rotate %38 by %c15_i32_23 dim 1 : vector<8x16x128xf32>, i32 -> vector<8x16x128xf32>
    %cst_24 = arith.constant 0.000000e+00 : f32
    %51 = vector.broadcast %cst_24 : f32 to vector<8x16x128xf32>
    %52 = vector.shape_cast %37 : vector<8x16x1xi1> to vector<8x16x1xi1>
    %53 = vector.broadcast %52 : vector<8x16x1xi1> to vector<8x16x128xi1>
    %54 = arith.select %53, %50, %51 : vector<8x16x128xi1>, vector<8x16x128xf32>
    %55 = vector.shape_cast %54 : vector<8x16x128xf32> to vector<128x128xf32>
    %56 = arith.truncf %55 : vector<128x128xf32> to vector<128x128xbf16>
    %c0_25 = arith.constant 0 : index
    %c256 = arith.constant 256 : index
    %57 = vector.load %arg13[%c0_25, %c256] : memref<128x1152xbf16, #tpu.memory_space<vmem>>, vector<128x128xbf16>
    tpu.vector_store %arg13[%c0_25, %c256], %56 {strides = array<i32>} : memref<128x1152xbf16, #tpu.memory_space<vmem>>, vector<128x128xbf16>,
    %58 = vector.extract_strided_slice %32 {offsets = [1, 0, 0], sizes = [8, 16, 128], strides = [1, 1, 1]} : vector<10x16x128xf32> to vector<8x16x128xf32>
    %c1_i32_26 = arith.constant 1 : i32
    %59 = tpu.dynamic_rotate %58 by %c1_i32_26 dim 1 : vector<8x16x128xf32>, i32 -> vector<8x16x128xf32>
    %cst_27 = arith.constant 0.000000e+00 : f32
    %60 = vector.broadcast %cst_27 : f32 to vector<8x16x128xf32>
    %61 = vector.shape_cast %35 : vector<8x16x1xi1> to vector<8x16x1xi1>
    %62 = vector.broadcast %61 : vector<8x16x1xi1> to vector<8x16x128xi1>
    %63 = arith.select %62, %59, %60 : vector<8x16x128xi1>, vector<8x16x128xf32>
    %64 = vector.shape_cast %63 : vector<8x16x128xf32> to vector<128x128xf32>
    %65 = arith.truncf %64 : vector<128x128xf32> to vector<128x128xbf16>
    %c0_28 = arith.constant 0 : index
    %c384 = arith.constant 384 : index
    %66 = vector.load %arg13[%c0_28, %c384] : memref<128x1152xbf16, #tpu.memory_space<vmem>>, vector<128x128xbf16>
    tpu.vector_store %arg13[%c0_28, %c384], %65 {strides = array<i32>} : memref<128x1152xbf16, #tpu.memory_space<vmem>>, vector<128x128xbf16>,
    %67 = vector.shape_cast %58 : vector<8x16x128xf32> to vector<128x128xf32>
    %68 = arith.truncf %67 : vector<128x128xf32> to vector<128x128xbf16>
    %c0_29 = arith.constant 0 : index
    %c512 = arith.constant 512 : index
    %69 = vector.load %arg13[%c0_29, %c512] : memref<128x1152xbf16, #tpu.memory_space<vmem>>, vector<128x128xbf16>
    tpu.vector_store %arg13[%c0_29, %c512], %68 {strides = array<i32>} : memref<128x1152xbf16, #tpu.memory_space<vmem>>, vector<128x128xbf16>,
    %c15_i32_30 = arith.constant 15 : i32
    %70 = tpu.dynamic_rotate %58 by %c15_i32_30 dim 1 : vector<8x16x128xf32>, i32 -> vector<8x16x128xf32>
    %cst_31 = arith.constant 0.000000e+00 : f32
    %71 = vector.broadcast %cst_31 : f32 to vector<8x16x128xf32>
    %72 = vector.shape_cast %37 : vector<8x16x1xi1> to vector<8x16x1xi1>
    %73 = vector.broadcast %72 : vector<8x16x1xi1> to vector<8x16x128xi1>
    %74 = arith.select %73, %70, %71 : vector<8x16x128xi1>, vector<8x16x128xf32>
    %75 = vector.shape_cast %74 : vector<8x16x128xf32> to vector<128x128xf32>
    %76 = arith.truncf %75 : vector<128x128xf32> to vector<128x128xbf16>
    %c0_32 = arith.constant 0 : index
    %c640 = arith.constant 640 : index
    %77 = vector.load %arg13[%c0_32, %c640] : memref<128x1152xbf16, #tpu.memory_space<vmem>>, vector<128x128xbf16>
    tpu.vector_store %arg13[%c0_32, %c640], %76 {strides = array<i32>} : memref<128x1152xbf16, #tpu.memory_space<vmem>>, vector<128x128xbf16>,
    %78 = vector.extract_strided_slice %32 {offsets = [2, 0, 0], sizes = [8, 16, 128], strides = [1, 1, 1]} : vector<10x16x128xf32> to vector<8x16x128xf32>
    %c1_i32_33 = arith.constant 1 : i32
    %79 = tpu.dynamic_rotate %78 by %c1_i32_33 dim 1 : vector<8x16x128xf32>, i32 -> vector<8x16x128xf32>
    %cst_34 = arith.constant 0.000000e+00 : f32
    %80 = vector.broadcast %cst_34 : f32 to vector<8x16x128xf32>
    %81 = vector.shape_cast %35 : vector<8x16x1xi1> to vector<8x16x1xi1>
    %82 = vector.broadcast %81 : vector<8x16x1xi1> to vector<8x16x128xi1>
    %83 = arith.select %82, %79, %80 : vector<8x16x128xi1>, vector<8x16x128xf32>
    %84 = vector.shape_cast %83 : vector<8x16x128xf32> to vector<128x128xf32>
    %85 = arith.truncf %84 : vector<128x128xf32> to vector<128x128xbf16>
    %c0_35 = arith.constant 0 : index
    %c768 = arith.constant 768 : index
    %86 = vector.load %arg13[%c0_35, %c768] : memref<128x1152xbf16, #tpu.memory_space<vmem>>, vector<128x128xbf16>
    tpu.vector_store %arg13[%c0_35, %c768], %85 {strides = array<i32>} : memref<128x1152xbf16, #tpu.memory_space<vmem>>, vector<128x128xbf16>,
    %87 = vector.shape_cast %78 : vector<8x16x128xf32> to vector<128x128xf32>
    %88 = arith.truncf %87 : vector<128x128xf32> to vector<128x128xbf16>
    %c0_36 = arith.constant 0 : index
    %c896 = arith.constant 896 : index
    %89 = vector.load %arg13[%c0_36, %c896] : memref<128x1152xbf16, #tpu.memory_space<vmem>>, vector<128x128xbf16>
    tpu.vector_store %arg13[%c0_36, %c896], %88 {strides = array<i32>} : memref<128x1152xbf16, #tpu.memory_space<vmem>>, vector<128x128xbf16>,
    %c15_i32_37 = arith.constant 15 : i32
    %90 = tpu.dynamic_rotate %78 by %c15_i32_37 dim 1 : vector<8x16x128xf32>, i32 -> vector<8x16x128xf32>
    %cst_38 = arith.constant 0.000000e+00 : f32
    %91 = vector.broadcast %cst_38 : f32 to vector<8x16x128xf32>
    %92 = vector.shape_cast %37 : vector<8x16x1xi1> to vector<8x16x1xi1>
    %93 = vector.broadcast %92 : vector<8x16x1xi1> to vector<8x16x128xi1>
    %94 = arith.select %93, %90, %91 : vector<8x16x128xi1>, vector<8x16x128xf32>
    %95 = vector.shape_cast %94 : vector<8x16x128xf32> to vector<128x128xf32>
    %96 = arith.truncf %95 : vector<128x128xf32> to vector<128x128xbf16>
    %c0_39 = arith.constant 0 : index
    %c1024 = arith.constant 1024 : index
    %97 = vector.load %arg13[%c0_39, %c1024] : memref<128x1152xbf16, #tpu.memory_space<vmem>>, vector<128x128xbf16>
    tpu.vector_store %arg13[%c0_39, %c1024], %96 {strides = array<i32>} : memref<128x1152xbf16, #tpu.memory_space<vmem>>, vector<128x128xbf16>,
    %c0_40 = arith.constant 0 : index
    %c0_41 = arith.constant 0 : index
    %98 = vector.load %arg13[%c0_40, %c0_41] : memref<128x1152xbf16, #tpu.memory_space<vmem>>, vector<128x1152xbf16>
    %c0_42 = arith.constant 0 : index
    %c0_43 = arith.constant 0 : index
    %99 = vector.load %arg4[%c0_42, %c0_43] : memref<1152x128xbf16, #tpu.memory_space<vmem>>, vector<1152x128xbf16>
    %cst_44 = arith.constant dense<0.000000e+00> : vector<128x128xf32>
    %100 = tpu.matmul %98, %99, %cst_44 {dimension_numbers = #tpu.dot_dimension_numbers<[1], [0], [0], [1], [0, 0, 1, 1], [], []>} : vector<128x1152xbf16>, vector<1152x128xbf16>, vector<128x128xf32> -> vector<128x128xf32>
    %101 = vector.broadcast %4 : vector<1x128xf32> to vector<128x128xf32>
    %102 = arith.mulf %100, %101 : vector<128x128xf32>
    %103 = vector.broadcast %5 : vector<1x128xf32> to vector<128x128xf32>
    %104 = arith.addf %102, %103 : vector<128x128xf32>
    %cst_45 = arith.constant 0.000000e+00 : f32
    %105 = vector.broadcast %cst_45 : f32 to vector<128x128xf32>
    %106 = arith.maximumf %104, %105 : vector<128x128xf32>
    %107 = arith.truncf %106 : vector<128x128xf32> to vector<128x128xbf16>
    %c0_46 = arith.constant 0 : index
    %c0_47 = arith.constant 0 : index
    %108 = vector.load %arg5[%c0_46, %c0_47] : memref<128x128xbf16, #tpu.memory_space<vmem>>, vector<128x128xbf16>
    %cst_48 = arith.constant dense<0.000000e+00> : vector<128x128xf32>
    %109 = tpu.matmul %107, %108, %cst_48 {dimension_numbers = #tpu.dot_dimension_numbers<[1], [0], [0], [1], [0, 0, 1, 1], [], []>} : vector<128x128xbf16>, vector<128x128xbf16>, vector<128x128xf32> -> vector<128x128xf32>
    %110 = vector.broadcast %6 : vector<1x128xf32> to vector<128x128xf32>
    %111 = arith.mulf %109, %110 : vector<128x128xf32>
    %112 = vector.broadcast %7 : vector<1x128xf32> to vector<128x128xf32>
    %113 = arith.addf %111, %112 : vector<128x128xf32>
    %c1_i32_49 = arith.constant 1 : i32
    %114 = arith.addi %1, %c1_i32_49 : i32
    %c0_50 = arith.constant 0 : index
    %115 = arith.index_cast %114 : i32 to index
    %c0_51 = arith.constant 0 : index
    %c0_52 = arith.constant 0 : index
    %116 = vector.load %arg2[%c0_50, %115, %c0_51, %c0_52] : memref<1x18x16x128xbf16, #tpu.memory_space<vmem>>, vector<1x8x16x128xbf16>
    %117 = vector.shape_cast %116 : vector<1x8x16x128xbf16> to vector<128x128xbf16>
    %118 = arith.extf %117 : vector<128x128xbf16> to vector<128x128xf32>
    %119 = arith.addf %113, %118 : vector<128x128xf32>
    %cst_53 = arith.constant 0.000000e+00 : f32
    %120 = vector.broadcast %cst_53 : f32 to vector<128x128xf32>
    %121 = arith.maximumf %119, %120 : vector<128x128xf32>
    %122 = vector.shape_cast %121 : vector<128x128xf32> to vector<1x8x16x128xf32>
    %123 = arith.truncf %122 : vector<1x8x16x128xf32> to vector<1x8x16x128xbf16>
    %c0_54 = arith.constant 0 : index
    %c0_55 = arith.constant 0 : index
    %c0_56 = arith.constant 0 : index
    %c0_57 = arith.constant 0 : index
    %124 = vector.load %arg12[%c0_54, %c0_55, %c0_56, %c0_57] : memref<1x8x16x128xbf16, #tpu.memory_space<vmem>>, vector<1x8x16x128xbf16>
    tpu.vector_store %arg12[%c0_54, %c0_55, %c0_56, %c0_57], %123 {strides = array<i32>} : memref<1x8x16x128xbf16, #tpu.memory_space<vmem>>, vector<1x8x16x128xbf16>,
    return
  }
  func.func @transform_0(%arg0: i32, %arg1: i32) -> (i32, i32, i32, i32) {
    %c0_i32 = arith.constant 0 : i32
    %c0_i32_0 = arith.constant 0 : i32
    %c0_i32_1 = arith.constant 0 : i32
    %c0_i32_2 = arith.constant 0 : i32
    return %arg0, %c0_i32, %c0_i32_0, %c0_i32_1 : i32, i32, i32, i32
  }
  func.func @transform_1(%arg0: i32, %arg1: i32) -> (i32, i32) {
    %c0_i32 = arith.constant 0 : i32
    %c0_i32_0 = arith.constant 0 : i32
    %c0_i32_1 = arith.constant 0 : i32
    return %c0_i32, %c0_i32_0 : i32, i32
  }
  func.func @transform_2(%arg0: i32, %arg1: i32) -> (i32, i32) {
    %c0_i32 = arith.constant 0 : i32
    %c0_i32_0 = arith.constant 0 : i32
    %c0_i32_1 = arith.constant 0 : i32
    return %c0_i32, %c0_i32_0 : i32, i32
  }
  func.func @transform_3(%arg0: i32, %arg1: i32) -> (i32, i32) {
    %c0_i32 = arith.constant 0 : i32
    %c0_i32_0 = arith.constant 0 : i32
    %c0_i32_1 = arith.constant 0 : i32
    return %c0_i32, %c0_i32_0 : i32, i32
  }
  func.func @transform_4(%arg0: i32, %arg1: i32) -> (i32, i32) {
    %c0_i32 = arith.constant 0 : i32
    %c0_i32_0 = arith.constant 0 : i32
    %c0_i32_1 = arith.constant 0 : i32
    return %c0_i32, %c0_i32_0 : i32, i32
  }
  func.func @transform_5(%arg0: i32, %arg1: i32) -> (i32, i32) {
    %c0_i32 = arith.constant 0 : i32
    %c0_i32_0 = arith.constant 0 : i32
    %c0_i32_1 = arith.constant 0 : i32
    return %c0_i32, %c0_i32_0 : i32, i32
  }
  func.func @transform_6(%arg0: i32, %arg1: i32) -> (i32, i32) {
    %c0_i32 = arith.constant 0 : i32
    %c0_i32_0 = arith.constant 0 : i32
    %c0_i32_1 = arith.constant 0 : i32
    return %c0_i32, %c0_i32_0 : i32, i32
  }
  func.func @transform_7(%arg0: i32, %arg1: i32) -> (i32, i32) {
    %c0_i32 = arith.constant 0 : i32
    %c0_i32_0 = arith.constant 0 : i32
    %c0_i32_1 = arith.constant 0 : i32
    return %c0_i32, %c0_i32_0 : i32, i32
  }
  func.func @transform_8(%arg0: i32, %arg1: i32) -> (i32, i32) {
    %c0_i32 = arith.constant 0 : i32
    %c0_i32_0 = arith.constant 0 : i32
    %c0_i32_1 = arith.constant 0 : i32
    return %c0_i32, %c0_i32_0 : i32, i32
  }
  func.func @transform_9(%arg0: i32, %arg1: i32) -> (i32, i32) {
    %c0_i32 = arith.constant 0 : i32
    %c0_i32_0 = arith.constant 0 : i32
    %c0_i32_1 = arith.constant 0 : i32
    return %c0_i32, %c0_i32_0 : i32, i32
  }
  func.func @transform_10(%arg0: i32, %arg1: i32) -> (i32, i32, i32, i32) {
    %c0_i32 = arith.constant 0 : i32
    %c0_i32_0 = arith.constant 0 : i32
    %c0_i32_1 = arith.constant 0 : i32
    return %arg0, %arg1, %c0_i32, %c0_i32_0 : i32, i32, i32, i32
  }
}

</mosaic_0001>

<llo_original>
// kernel: tpu_custom_call.1
$region0: #{tpu_custom_call.1}
  #allocation0 [shape = 'u32[]', space=smem, size = 0x4, offset = 0x4, fixed_abs, tag = 'smem constant byte address 0x4 - core index']
  #allocation1 [shape = 'u32[72,128]{1,0:T(1,128)}', space=vmem, size = 0x9000, scoped, tag = 'internal scratch']
  #allocation2 [shape = 'bf16[128,1152]{1,0:T(8,128)(2,1)}', space=vmem, size = 0x48000, scoped, tag = 'scratch operand']
  %s0 = inlined_call_operand.hbm [shape: bf16[2,18,16,128], index: 0, kind: input, shape index: {}]
  %s1 = inlined_call_operand.hbm [shape: bf16[128,128], index: 1, kind: input, shape index: {}]
  %s2 = inlined_call_operand.hbm [shape: bf16[1152,128], index: 2, kind: input, shape index: {}]
  %s3 = inlined_call_operand.hbm [shape: bf16[128,128], index: 3, kind: input, shape index: {}]
  %s4 = inlined_call_operand.vmem [shape: f32[1,128], index: 4, kind: input, shape index: {}]
  %s5 = inlined_call_operand.vmem [shape: f32[1,128], index: 5, kind: input, shape index: {}]
  %s6 = inlined_call_operand.vmem [shape: f32[1,128], index: 6, kind: input, shape index: {}]
  %s7 = inlined_call_operand.vmem [shape: f32[1,128], index: 7, kind: input, shape index: {}]
  %s8 = inlined_call_operand.vmem [shape: f32[1,128], index: 8, kind: input, shape index: {}]
  %s9 = inlined_call_operand.vmem [shape: f32[1,128], index: 9, kind: input, shape index: {}]
  %s10 = inlined_call_operand.hbm [shape: bf16[2,16,16,128], index: 10, kind: output, shape index: {}]
  %s11 = sld [smem:[#allocation0]]
  $region89: #{tpu_custom_call.1} parent=0
    _
  %s13 = ssub.s32 1, %s11
  %s14 = scalar_select 0, %s13, %s11
  $region1: #{tpu_custom_call.1} parent=0
    #allocation3 [shape = 'u8[147456]{0}', space=vmem, size = 0x24000, scoped, tag = 'input window, operand 0']
    #allocation4 [shape = 's32[2]{0}', space=sflag, size = 0x8, scoped, tag = 'scoped memory for tpu_custom_call.1']
    #allocation5 [shape = 's32[2]{0}', space=sflag, size = 0x8, scoped, tag = 'scoped memory for tpu_custom_call.1']
    #allocation6 [shape = 'u8[32768]{0}', space=vmem, size = 0x8000, scoped, tag = 'input window, operand 1, single buffered']
    #allocation7 [shape = 's32[1]{0}', space=sflag, size = 0x4, scoped, tag = 'scoped memory for tpu_custom_call.1']
    #allocation8 [shape = 'u8[294912]{0}', space=vmem, size = 0x48000, scoped, tag = 'input window, operand 2, single buffered']
    #allocation9 [shape = 'u8[32768]{0}', space=vmem, size = 0x8000, scoped, tag = 'input window, operand 3, single buffered']
    #allocation10 [shape = 's32[1]{0}', space=sflag, size = 0x4, scoped, tag = 'scoped memory for tpu_custom_call.1']
    #allocation11 [shape = 'u8[65536]{0}', space=vmem, size = 0x10000, scoped, tag = 'output window, operand 0']
    %15 = vsyncpa [#allocation4], 0
    %s16 = scalar_lea.sflag [#allocation4], 1
    %17 = vsyncpa %s16, 0
    %18 = vsyncpa [#allocation7], 0
    %19 = vsyncpa [#allocation10], 0
    %20 = vsyncpa [#allocation5], 0
    %s21 = scalar_lea.sflag [#allocation5], 1
    %22 = vsyncpa %s21, 0
    loop: start=0, step=1, limit=6
    $region2: #{tpu_custom_call.1} parent=1 // loop_pre_header
      _
    $region3: #{tpu_custom_call.1} parent=1 // loop_header
      %s24 = sphi 0, %s28
      %p25 = scmp.ge.s32.totalorder %s24, 6
      %s31 = sphi 0, %s43
      %s32 = sphi 0, %s39
      %s33 = sphi 0, %s31
      %s34 = sphi 0, %s32
      %s35 = sphi 0, %s33
      %s36 = sphi 0, %s34
      %s46 = sphi 0, %s48
      %s49 = sphi 0, %s46
      %s50 = sphi 0, %s49
      %s66 = sphi 0, %s50
      %s70 = sphi 0, %s70
      %s72 = sphi 0, %s70
      %s73 = sphi 0, %s72
      %s87 = sphi 0, %s73
      %s91 = sphi 0, %s91
      %s93 = sphi 0, %s91
      %s94 = sphi 0, %s93
      %s108 = sphi 0, %s94
      %s112 = sphi 0, %s112
      %s114 = sphi 0, %s112
      %s115 = sphi 0, %s114
      %s129 = sphi 0, %s115
      %s133 = sphi 0, %s133
      %s135 = sphi 0, %s133
      %s136 = sphi 0, %s135
      %s150 = sphi 0, %s136
      %s154 = sphi 0, %s154
      %s156 = sphi 0, %s154
      %s157 = sphi 0, %s156
      %s171 = sphi 0, %s157
      %s175 = sphi 0, %s175
      %s177 = sphi 0, %s175
      %s178 = sphi 0, %s177
      %s192 = sphi 0, %s178
      %s196 = sphi 0, %s196
      %s198 = sphi 0, %s196
      %s199 = sphi 0, %s198
      %s213 = sphi 0, %s199
      %s217 = sphi 0, %s217
      %s219 = sphi 0, %s217
      %s220 = sphi 0, %s219
      %s234 = sphi 0, %s220
      %s238 = sphi 0, %s238
      %s240 = sphi 0, %s238
      %s241 = sphi 0, %s240
      %s255 = sphi 0, %s241
      %s263 = sphi 0, %s265
      %s266 = sphi 0, %s263
      %s267 = sphi 0, %s266
      %s283 = sphi 0, %s267
    $region4: #{tpu_custom_call.1} parent=1 // loop_header_branch
      %27 = sbr.rel (%p25) target = $region8
    $region5: #{tpu_custom_call.1} parent=1 // loop_body
      %s29 = ssub.s32 %s24, 1
      %s30 = ssub.s32 %s24, 2
      %s37 = sadd.s32 1, %s32
      %p38 = scmp.ge.s32.totalorder %s37, 2
      %s39 = scalar_select %p38, 0, %s37
      %s40 = sadd.s32 1, %s31
      %s41 = scalar_select %p38, %s40, %s31
      %p42 = scmp.ge.s32.totalorder %s41, 2
      %s43 = scalar_select %p42, 0, %s41
      %s44 = ssub.s32 %s31, %s43
      %p45 = scmp.eq.s32.totalorder %s44, 0
      %s47 = sadd.s32 %s46, 1
      %s48 = scalar_select %p45, %s46, %s47
      %p51 = pneg %p45
      %p52 = scmp.eq.s32.totalorder %s24, 3
      %p53 = por %p51, %p52
      %p54 = scmp.ne.s32.totalorder %s46, %s49
      %p55 = scmp.eq.s32.totalorder %s24, 0
      %p56 = por %p54, %p55
      %p57 = scmp.ne.s32.totalorder %s46, %s49
      %p58 = scmp.eq.s32.totalorder %s29, 3
      %p59 = por %p57, %p58
      %p60 = scmp.ne.s32.totalorder %s49, %s50
      %p61 = scmp.eq.s32.totalorder %s29, 0
      %p62 = por %p60, %p61
      %p63 = scmp.ne.s32.totalorder %s49, %s50
      %p64 = scmp.eq.s32.totalorder %s30, 3
      %p65 = por %p63, %p64
      %p67 = scmp.ne.s32.totalorder %s50, %s66
      %p68 = scmp.eq.s32.totalorder %s30, 0
      %p69 = por %p67, %p68
      %s71 = sadd.s32 %s70, 1
      %p74 = scmp.eq.s32.totalorder %s24, 3
      %p75 = scmp.ne.s32.totalorder %s70, %s72
      %p76 = scmp.eq.s32.totalorder %s24, 0
      %p77 = por %p75, %p76
      %p78 = scmp.ne.s32.totalorder %s70, %s72
      %p79 = scmp.eq.s32.totalorder %s29, 3
      %p80 = por %p78, %p79
      %p81 = scmp.ne.s32.totalorder %s72, %s73
      %p82 = scmp.eq.s32.totalorder %s29, 0
      %p83 = por %p81, %p82
      %p84 = scmp.ne.s32.totalorder %s72, %s73
      %p85 = scmp.eq.s32.totalorder %s30, 3
      %p86 = por %p84, %p85
      %p88 = scmp.ne.s32.totalorder %s73, %s87
      %p89 = scmp.eq.s32.totalorder %s30, 0
      %p90 = por %p88, %p89
      %s92 = sadd.s32 %s91, 1
      %p95 = scmp.eq.s32.totalorder %s24, 3
      %p96 = scmp.ne.s32.totalorder %s91, %s93
      %p97 = scmp.eq.s32.totalorder %s24, 0
      %p98 = por %p96, %p97
      %p99 = scmp.ne.s32.totalorder %s91, %s93
      %p100 = scmp.eq.s32.totalorder %s29, 3
      %p101 = por %p99, %p100
      %p102 = scmp.ne.s32.totalorder %s93, %s94
      %p103 = scmp.eq.s32.totalorder %s29, 0
      %p104 = por %p102, %p103
      %p105 = scmp.ne.s32.totalorder %s93, %s94
      %p106 = scmp.eq.s32.totalorder %s30, 3
      %p107 = por %p105, %p106
      %p109 = scmp.ne.s32.totalorder %s94, %s108
      %p110 = scmp.eq.s32.totalorder %s30, 0
      %p111 = por %p109, %p110
      %s113 = sadd.s32 %s112, 1
      %p116 = scmp.eq.s32.totalorder %s24, 3
      %p117 = scmp.ne.s32.totalorder %s112, %s114
      %p118 = scmp.eq.s32.totalorder %s24, 0
      %p119 = por %p117, %p118
      %p120 = scmp.ne.s32.totalorder %s112, %s114
      %p121 = scmp.eq.s32.totalorder %s29, 3
      %p122 = por %p120, %p121
      %p123 = scmp.ne.s32.totalorder %s114, %s115
      %p124 = scmp.eq.s32.totalorder %s29, 0
      %p125 = por %p123, %p124
      %p126 = scmp.ne.s32.totalorder %s114, %s115
      %p127 = scmp.eq.s32.totalorder %s30, 3
      %p128 = por %p126, %p127
      %p130 = scmp.ne.s32.totalorder %s115, %s129
      %p131 = scmp.eq.s32.totalorder %s30, 0
      %p132 = por %p130, %p131
      %s134 = sadd.s32 %s133, 1
      %p137 = scmp.eq.s32.totalorder %s24, 3
      %p138 = scmp.ne.s32.totalorder %s133, %s135
      %p139 = scmp.eq.s32.totalorder %s24, 0
      %p140 = por %p138, %p139
      %p141 = scmp.ne.s32.totalorder %s133, %s135
      %p142 = scmp.eq.s32.totalorder %s29, 3
      %p143 = por %p141, %p142
      %p144 = scmp.ne.s32.totalorder %s135, %s136
      %p145 = scmp.eq.s32.totalorder %s29, 0
      %p146 = por %p144, %p145
      %p147 = scmp.ne.s32.totalorder %s135, %s136
      %p148 = scmp.eq.s32.totalorder %s30, 3
      %p149 = por %p147, %p148
      %p151 = scmp.ne.s32.totalorder %s136, %s150
      %p152 = scmp.eq.s32.totalorder %s30, 0
      %p153 = por %p151, %p152
      %s155 = sadd.s32 %s154, 1
      %p158 = scmp.eq.s32.totalorder %s24, 3
      %p159 = scmp.ne.s32.totalorder %s154, %s156
      %p160 = scmp.eq.s32.totalorder %s24, 0
      %p161 = por %p159, %p160
      %p162 = scmp.ne.s32.totalorder %s154, %s156
      %p163 = scmp.eq.s32.totalorder %s29, 3
      %p164 = por %p162, %p163
      %p165 = scmp.ne.s32.totalorder %s156, %s157
      %p166 = scmp.eq.s32.totalorder %s29, 0
      %p167 = por %p165, %p166
      %p168 = scmp.ne.s32.totalorder %s156, %s157
      %p169 = scmp.eq.s32.totalorder %s30, 3
      %p170 = por %p168, %p169
      %p172 = scmp.ne.s32.totalorder %s157, %s171
      %p173 = scmp.eq.s32.totalorder %s30, 0
      %p174 = por %p172, %p173
      %s176 = sadd.s32 %s175, 1
      %p179 = scmp.eq.s32.totalorder %s24, 3
      %p180 = scmp.ne.s32.totalorder %s175, %s177
      %p181 = scmp.eq.s32.totalorder %s24, 0
      %p182 = por %p180, %p181
      %p183 = scmp.ne.s32.totalorder %s175, %s177
      %p184 = scmp.eq.s32.totalorder %s29, 3
      %p185 = por %p183, %p184
      %p186 = scmp.ne.s32.totalorder %s177, %s178
      %p187 = scmp.eq.s32.totalorder %s29, 0
      %p188 = por %p186, %p187
      %p189 = scmp.ne.s32.totalorder %s177, %s178
      %p190 = scmp.eq.s32.totalorder %s30, 3
      %p191 = por %p189, %p190
      %p193 = scmp.ne.s32.totalorder %s178, %s192
      %p194 = scmp.eq.s32.totalorder %s30, 0
      %p195 = por %p193, %p194
      %s197 = sadd.s32 %s196, 1
      %p200 = scmp.eq.s32.totalorder %s24, 3
      %p201 = scmp.ne.s32.totalorder %s196, %s198
      %p202 = scmp.eq.s32.totalorder %s24, 0
      %p203 = por %p201, %p202
      %p204 = scmp.ne.s32.totalorder %s196, %s198
      %p205 = scmp.eq.s32.totalorder %s29, 3
      %p206 = por %p204, %p205
      %p207 = scmp.ne.s32.totalorder %s198, %s199
      %p208 = scmp.eq.s32.totalorder %s29, 0
      %p209 = por %p207, %p208
      %p210 = scmp.ne.s32.totalorder %s198, %s199
      %p211 = scmp.eq.s32.totalorder %s30, 3
      %p212 = por %p210, %p211
      %p214 = scmp.ne.s32.totalorder %s199, %s213
      %p215 = scmp.eq.s32.totalorder %s30, 0
      %p216 = por %p214, %p215
      %s218 = sadd.s32 %s217, 1
      %p221 = scmp.eq.s32.totalorder %s24, 3
      %p222 = scmp.ne.s32.totalorder %s217, %s219
      %p223 = scmp.eq.s32.totalorder %s24, 0
      %p224 = por %p222, %p223
      %p225 = scmp.ne.s32.totalorder %s217, %s219
      %p226 = scmp.eq.s32.totalorder %s29, 3
      %p227 = por %p225, %p226
      %p228 = scmp.ne.s32.totalorder %s219, %s220
      %p229 = scmp.eq.s32.totalorder %s29, 0
      %p230 = por %p228, %p229
      %p231 = scmp.ne.s32.totalorder %s219, %s220
      %p232 = scmp.eq.s32.totalorder %s30, 3
      %p233 = por %p231, %p232
      %p235 = scmp.ne.s32.totalorder %s220, %s234
      %p236 = scmp.eq.s32.totalorder %s30, 0
      %p237 = por %p235, %p236
      %s239 = sadd.s32 %s238, 1
      %p242 = scmp.eq.s32.totalorder %s24, 3
      %p243 = scmp.ne.s32.totalorder %s238, %s240
      %p244 = scmp.eq.s32.totalorder %s24, 0
      %p245 = por %p243, %p244
      %p246 = scmp.ne.s32.totalorder %s238, %s240
      %p247 = scmp.eq.s32.totalorder %s29, 3
      %p248 = por %p246, %p247
      %p249 = scmp.ne.s32.totalorder %s240, %s241
      %p250 = scmp.eq.s32.totalorder %s29, 0
      %p251 = por %p249, %p250
      %p252 = scmp.ne.s32.totalorder %s240, %s241
      %p253 = scmp.eq.s32.totalorder %s30, 3
      %p254 = por %p252, %p253
      %p256 = scmp.ne.s32.totalorder %s241, %s255
      %p257 = scmp.eq.s32.totalorder %s30, 0
      %p258 = por %p256, %p257
      %s259 = ssub.s32 %s31, %s43
      %s260 = ssub.s32 %s32, %s39
      %s261 = sor.u32 %s259, %s260
      %p262 = scmp.eq.s32.totalorder %s261, 0
      %s264 = sadd.s32 %s263, 1
      %s265 = scalar_select %p262, %s263, %s264
      %p268 = pneg %p262
      %p269 = scmp.eq.s32.totalorder %s24, 3
      %p270 = por %p268, %p269
      %p271 = scmp.ne.s32.totalorder %s263, %s266
      %p272 = scmp.eq.s32.totalorder %s24, 0
      %p273 = por %p271, %p272
      %p274 = scmp.ne.s32.totalorder %s263, %s266
      %p275 = scmp.eq.s32.totalorder %s29, 3
      %p276 = por %p274, %p275
      %p277 = scmp.ne.s32.totalorder %s266, %s267
      %p278 = scmp.eq.s32.totalorder %s29, 0
      %p279 = por %p277, %p278
      %p280 = scmp.ne.s32.totalorder %s266, %s267
      %p281 = scmp.eq.s32.totalorder %s30, 3
      %p282 = por %p280, %p281
      %p284 = scmp.ne.s32.totalorder %s267, %s283
      %p285 = scmp.eq.s32.totalorder %s30, 0
      %p286 = por %p284, %p285
      %p287 = scmp.le.s32.totalorder 1, %s24
      %p288 = scmp.lt.s32.totalorder %s24, 5
      %p289 = pnand %p287, %p288
      %p290 = pneg %p289
      // Predicated region
      $region9: #{tpu_custom_call.1} parent=5 // pred_check
        _
      $region10: #{tpu_custom_call.1} parent=5 // pred_check_branch
        %292 = sbr.rel (%p289) target = $region12
      $region11: #{tpu_custom_call.1} parent=5 // pred_region
        %s293 = ssub.s32 %s24, 1
        // Predicated region
        $region13: #{tpu_custom_call.1} parent=11 // pred_check
          %p294 = pneg %p83
        $region14: #{tpu_custom_call.1} parent=11 // pred_check_branch
          %296 = sbr.rel (%p294) target = $region16
        $region15: #{tpu_custom_call.1} parent=11 // pred_region
          %298 = vsyncadd [#allocation7], 0
          %s299 = sshll.u32 %s1, 4
          %s300 = int_to_ptr.hbm [resolvable:$true] %s299
          %s301 = sshll.u32 [#allocation6], 4
          %s302 = int_to_ptr.vmem [resolvable:$true] %s301
          %307 = dma.hbm_to_vmem [thread:$0]  %s300, 1024, %s302, [#allocation7], 64, 64, 4
        $region16: #{tpu_custom_call.1} parent=11 // pred_fallthru
          _
        // Predicated region
        $region17: #{tpu_custom_call.1} parent=11 // pred_check
          %p308 = pneg %p104
        $region18: #{tpu_custom_call.1} parent=11 // pred_check_branch
          %310 = sbr.rel (%p308) target = $region20
        $region19: #{tpu_custom_call.1} parent=11 // pred_region
          %312 = vsyncadd [#allocation7], 0
          %s313 = sshll.u32 %s2, 4
          %s314 = int_to_ptr.hbm [resolvable:$true] %s313
          %s315 = sshll.u32 [#allocation8], 4
          %s316 = int_to_ptr.vmem [resolvable:$true] %s315
          %321 = dma.hbm_to_vmem [thread:$0]  %s314, 9216, %s316, [#allocation7], 64, 64, 4
        $region20: #{tpu_custom_call.1} parent=11 // pred_fallthru
          _
        // Predicated region
        $region21: #{tpu_custom_call.1} parent=11 // pred_check
          %p322 = pneg %p125
        $region22: #{tpu_custom_call.1} parent=11 // pred_check_branch
          %324 = sbr.rel (%p322) target = $region24
        $region23: #{tpu_custom_call.1} parent=11 // pred_region
          %326 = vsyncadd [#allocation10], 0
          %s327 = sshll.u32 %s3, 4
          %s328 = int_to_ptr.hbm [resolvable:$true] %s327
          %s329 = sshll.u32 [#allocation9], 4
          %s330 = int_to_ptr.vmem [resolvable:$true] %s329
          %335 = dma.hbm_to_vmem [thread:$0]  %s328, 1024, %s330, [#allocation10], 64, 64, 4
        $region24: #{tpu_custom_call.1} parent=11 // pred_fallthru
          _
        // Predicated region
        $region25: #{tpu_custom_call.1} parent=11 // pred_check
          %p336 = pneg %p146
        $region26: #{tpu_custom_call.1} parent=11 // pred_check_branch
          %338 = sbr.rel (%p336) target = $region28
        $region27: #{tpu_custom_call.1} parent=11 // pred_region
          _
        $region28: #{tpu_custom_call.1} parent=11 // pred_fallthru
          _
        // Predicated region
        $region29: #{tpu_custom_call.1} parent=11 // pred_check
          %p339 = pneg %p167
        $region30: #{tpu_custom_call.1} parent=11 // pred_check_branch
          %341 = sbr.rel (%p339) target = $region32
        $region31: #{tpu_custom_call.1} parent=11 // pred_region
          _
        $region32: #{tpu_custom_call.1} parent=11 // pred_fallthru
          _
        // Predicated region
        $region33: #{tpu_custom_call.1} parent=11 // pred_check
          %p342 = pneg %p188
        $region34: #{tpu_custom_call.1} parent=11 // pred_check_branch
          %344 = sbr.rel (%p342) target = $region36
        $region35: #{tpu_custom_call.1} parent=11 // pred_region
          _
        $region36: #{tpu_custom_call.1} parent=11 // pred_fallthru
          _
        // Predicated region
        $region37: #{tpu_custom_call.1} parent=11 // pred_check
          %p345 = pneg %p209
        $region38: #{tpu_custom_call.1} parent=11 // pred_check_branch
          %347 = sbr.rel (%p345) target = $region40
        $region39: #{tpu_custom_call.1} parent=11 // pred_region
          _
        $region40: #{tpu_custom_call.1} parent=11 // pred_fallthru
          _
        // Predicated region
        $region41: #{tpu_custom_call.1} parent=11 // pred_check
          %p348 = pneg %p230
        $region42: #{tpu_custom_call.1} parent=11 // pred_check_branch
          %350 = sbr.rel (%p348) target = $region44
        $region43: #{tpu_custom_call.1} parent=11 // pred_region
          _
        $region44: #{tpu_custom_call.1} parent=11 // pred_fallthru
          _
        // Predicated region
        $region45: #{tpu_custom_call.1} parent=11 // pred_check
          %p351 = pneg %p251
        $region46: #{tpu_custom_call.1} parent=11 // pred_check_branch
          %353 = sbr.rel (%p351) target = $region48
        $region47: #{tpu_custom_call.1} parent=11 // pred_region
          _
        $region48: #{tpu_custom_call.1} parent=11 // pred_fallthru
          _
      $region12: #{tpu_custom_call.1} parent=5 // pred_fallthru
        _
      %p354 = scmp.lt.s32.totalorder %s24, 4
      // Predicated region
      $region49: #{tpu_custom_call.1} parent=5 // pred_check
        %p355 = pneg %p354
      $region50: #{tpu_custom_call.1} parent=5 // pred_check_branch
        %357 = sbr.rel (%p355) target = $region52
      $region51: #{tpu_custom_call.1} parent=5 // pred_region
        // Predicated region
        $region53: #{tpu_custom_call.1} parent=51 // pred_check
          %p358 = pneg %p56
        $region54: #{tpu_custom_call.1} parent=51 // pred_check_branch
          %360 = sbr.rel (%p358) target = $region56
        $region55: #{tpu_custom_call.1} parent=51 // pred_region
          %s361 = sand.u32 %s46, 1
          %s362 = scalar_lea.sflag [#allocation4], %s361
          %s363 = sand.u32 %s46, 1
          %s364 = smul.addr %s363, 144
          %s365 = scalar_lea.vmem [#allocation3], %s364
          %367 = vsyncadd %s362, 0
          %s368 = smul.addr %s31, 36
          %s369 = smul.addr %s368, 4
          %s370 = scalar_lea.hbm %s0, %s369
          %s371 = sshll.u32 %s370, 4
          %s372 = int_to_ptr.hbm [resolvable:$true] %s371
          %s373 = sshll.u32 %s365, 4
          %s374 = int_to_ptr.vmem [resolvable:$true] %s373
          %379 = dma.hbm_to_vmem [thread:$0]  %s372, 2304, %s374, %s362, 64, 64, 4
        $region56: #{tpu_custom_call.1} parent=51 // pred_fallthru
          _
      $region52: #{tpu_custom_call.1} parent=5 // pred_fallthru
        _
      %p380 = scmp.le.s32.totalorder 1, %s24
      %p381 = scmp.lt.s32.totalorder %s24, 5
      %p382 = pnand %p380, %p381
      %p383 = pneg %p382
      // Predicated region
      $region57: #{tpu_custom_call.1} parent=5 // pred_check
        _
      $region58: #{tpu_custom_call.1} parent=5 // pred_check_branch
        %385 = sbr.rel (%p382) target = $region60
      $region59: #{tpu_custom_call.1} parent=5 // pred_region
        %s386 = ssub.s32 %s24, 1
        %s387 = sand.u32 %s49, 1
        %s388 = scalar_lea.sflag [#allocation4], %s387
        %s389 = sand.u32 %s49, 1
        %s390 = smul.addr %s389, 144
        %s391 = scalar_lea.vmem [#allocation3], %s390
        // Predicated region
        $region61: #{tpu_custom_call.1} parent=59 // pred_check
          %p392 = pneg %p62
        $region62: #{tpu_custom_call.1} parent=59 // pred_check_branch
          %394 = sbr.rel (%p392) target = $region64
        $region63: #{tpu_custom_call.1} parent=59 // pred_region
          %396 = dma.done %s388, 2304
        $region64: #{tpu_custom_call.1} parent=59 // pred_fallthru
          _
        // Predicated region
        $region65: #{tpu_custom_call.1} parent=59 // pred_check
          %p397 = pneg %p83
        $region66: #{tpu_custom_call.1} parent=59 // pred_check_branch
          %399 = sbr.rel (%p397) target = $region68
        $region67: #{tpu_custom_call.1} parent=59 // pred_region
          %401 = dma.done [#allocation7], 1024
        $region68: #{tpu_custom_call.1} parent=59 // pred_fallthru
          _
        // Predicated region
        $region69: #{tpu_custom_call.1} parent=59 // pred_check
          %p402 = pneg %p104
        $region70: #{tpu_custom_call.1} parent=59 // pred_check_branch
          %404 = sbr.rel (%p402) target = $region72
        $region71: #{tpu_custom_call.1} parent=59 // pred_region
          %406 = dma.done [#allocation7], 9216
        $region72: #{tpu_custom_call.1} parent=59 // pred_fallthru
          _
        // Predicated region
        $region73: #{tpu_custom_call.1} parent=59 // pred_check
          %p407 = pneg %p125
        $region74: #{tpu_custom_call.1} parent=59 // pred_check_branch
          %409 = sbr.rel (%p407) target = $region76
        $region75: #{tpu_custom_call.1} parent=59 // pred_region
          %411 = dma.done [#allocation10], 1024
        $region76: #{tpu_custom_call.1} parent=59 // pred_fallthru
          _
        %s412 = sand.u32 %s49, 1
        %s413 = scalar_lea.sflag [#allocation4], %s412
        %s414 = sand.u32 %s49, 1
        %s415 = smul.addr %s414, 144
        %s416 = scalar_lea.vmem [#allocation3], %s415
        %p417 = pneg %p62
        %p418 = pneg %p59
        %p419 = pneg %p83
        %p420 = pneg %p80
        %p421 = pneg %p104
        %p422 = pneg %p101
        %p423 = pneg %p125
        %p424 = pneg %p122
        %p425 = pneg %p146
        %p426 = pneg %p143
        %p427 = pneg %p167
        %p428 = pneg %p164
        %p429 = pneg %p188
        %p430 = pneg %p185
        %p431 = pneg %p209
        %p432 = pneg %p206
        %p433 = pneg %p230
        %p434 = pneg %p227
        %p435 = pneg %p251
        %p436 = pneg %p248
        %p437 = pneg %p279
        %p438 = pneg %p276
        %s439 = sand.u32 %s266, 1
        %s440 = scalar_lea.sflag [#allocation5], %s439
        %s441 = sand.u32 %s266, 1
        %s442 = smul.addr %s441, 64
        %s443 = scalar_lea.vmem [#allocation11], %s442
        %s444 = smul.u32 8, %s34
        %s445 = smul.u32 %s34, 8
        %v446 = vld [vmem:[%s4] sm:$0x1]
        %v447 = vld [vmem:[%s5] sm:$0x1]
        %v448 = vld [vmem:[%s6] sm:$0x1]
        %v449 = vld [vmem:[%s7] sm:$0x1]
        %v450 = vld [vmem:[%s8] sm:$0x1]
        %v451 = vld [vmem:[%s9] sm:$0x1]
        %s452 = smul.u32 %s445, 2
        %s453 = smul.addr %s452, 4
        %s454 = scalar_lea.vmem %s391, %s453 [#allocation3]
        %v455 = vld [vmem:[%s454] sm:$0xf]
        %v456 = vld [vmem:[%s454 + $0x4] sm:$0xf]
        %v457 = vld [vmem:[%s454 + $0x8] sm:$0xf]
        %v458 = vld [vmem:[%s454 + $0xc] sm:$0xf]
        %v459 = vld [vmem:[%s454 + $0x10] sm:$0xf]
        %v460 = vld [vmem:[%s454 + $0x14] sm:$0xf]
        %v461 = vld [vmem:[%s454 + $0x18] sm:$0xf]
        %v462 = vld [vmem:[%s454 + $0x1c] sm:$0xf]
        %v463 = vld [vmem:[%s454 + $0x20] sm:$0xf]
        %v464 = vld [vmem:[%s454 + $0x24] sm:$0xf]
        %v465 = vld [vmem:[%s454 + $0x28] sm:$0xf]
        %v466 = vld [vmem:[%s454 + $0x2c] sm:$0xf]
        %v467 = vld [vmem:[%s454 + $0x30] sm:$0xf]
        %v468 = vld [vmem:[%s454 + $0x34] sm:$0xf]
        %v469 = vld [vmem:[%s454 + $0x38] sm:$0xf]
        %v470 = vld [vmem:[%s454 + $0x3c] sm:$0xf]
        %v471 = vld [vmem:[%s454 + $0x40] sm:$0xf]
        %v472 = vld [vmem:[%s454 + $0x44] sm:$0xf]
        %v473 = vld [vmem:[%s454 + $0x48] sm:$0xf]
        %v474 = vld [vmem:[%s454 + $0x4c] sm:$0xf]
        %v475 = vld [vmem:[#allocation6] sm:$0xf]
        %v476 = vld [vmem:[#allocation6 + $0x4] sm:$0xf]
        %v477 = vld [vmem:[#allocation6 + $0x8] sm:$0xf]
        %v478 = vld [vmem:[#allocation6 + $0xc] sm:$0xf]
        %v479 = vld [vmem:[#allocation6 + $0x10] sm:$0xf]
        %v480 = vld [vmem:[#allocation6 + $0x14] sm:$0xf]
        %v481 = vld [vmem:[#allocation6 + $0x18] sm:$0xf]
        %v482 = vld [vmem:[#allocation6 + $0x1c] sm:$0xf]
        %v483 = vld [vmem:[#allocation6 + $0x20] sm:$0xf]
        %v484 = vld [vmem:[#allocation6 + $0x24] sm:$0xf]
        %v485 = vld [vmem:[#allocation6 + $0x28] sm:$0xf]
        %v486 = vld [vmem:[#allocation6 + $0x2c] sm:$0xf]
        %v487 = vld [vmem:[#allocation6 + $0x30] sm:$0xf]
        %v488 = vld [vmem:[#allocation6 + $0x34] sm:$0xf]
        %v489 = vld [vmem:[#allocation6 + $0x38] sm:$0xf]
        %v490 = vld [vmem:[#allocation6 + $0x3c] sm:$0xf]
        %v511 = vunpack.c.l.b16 %v455
        %v512 = vunpack.c.l.b16 %v456
        %v513 = vunpack.c.l.b16 %v457
        %v514 = vunpack.c.l.b16 %v458
        %v515 = vunpack.c.l.b16 %v459
        %v516 = vunpack.c.l.b16 %v460
        %v517 = vunpack.c.l.b16 %v461
        %v518 = vunpack.c.l.b16 %v462
        %v519 = vunpack.c.l.b16 %v463
        %v520 = vunpack.c.l.b16 %v464
        %v521 = vunpack.c.l.b16 %v465
        %v522 = vunpack.c.l.b16 %v466
        %v523 = vunpack.c.l.b16 %v467
        %v524 = vunpack.c.l.b16 %v468
        %v525 = vunpack.c.l.b16 %v469
        %v526 = vunpack.c.l.b16 %v470
        %v527 = vunpack.c.l.b16 %v471
        %v528 = vunpack.c.l.b16 %v472
        %v529 = vunpack.c.l.b16 %v473
        %v530 = vunpack.c.l.b16 %v474
        %v531 = vpack.c.b16 %v512, %v511
        %v532 = vpack.c.b16 %v514, %v513
        %v533 = vpack.c.b16 %v516, %v515
        %v534 = vpack.c.b16 %v518, %v517
        %v535 = vpack.c.b16 %v520, %v519
        %v536 = vpack.c.b16 %v522, %v521
        %v537 = vpack.c.b16 %v524, %v523
        %v538 = vpack.c.b16 %v526, %v525
        %v539 = vpack.c.b16 %v528, %v527
        %v540 = vpack.c.b16 %v530, %v529
        %v567 = vunpack.c.l.b16 %v475
        %v568 = vunpack.c.l.b16 %v476
        %v569 = vunpack.c.l.b16 %v477
        %v570 = vunpack.c.l.b16 %v478
        %v571 = vunpack.c.l.b16 %v479
        %v572 = vunpack.c.l.b16 %v480
        %v573 = vunpack.c.l.b16 %v481
        %v574 = vunpack.c.l.b16 %v482
        %v575 = vunpack.c.l.b16 %v483
        %v576 = vunpack.c.l.b16 %v484
        %v577 = vunpack.c.l.b16 %v485
        %v578 = vunpack.c.l.b16 %v486
        %v579 = vunpack.c.l.b16 %v487
        %v580 = vunpack.c.l.b16 %v488
        %v581 = vunpack.c.l.b16 %v489
        %v582 = vunpack.c.l.b16 %v490
        %v583 = vpack.c.b16 %v568, %v567
        %v584 = vpack.c.b16 %v570, %v569
        %v585 = vpack.c.b16 %v572, %v571
        %v586 = vpack.c.b16 %v574, %v573
        %v587 = vpack.c.b16 %v576, %v575
        %v588 = vpack.c.b16 %v578, %v577
        %v589 = vpack.c.b16 %v580, %v579
        %v590 = vpack.c.b16 %v582, %v581
        %599 = vmatpush.bf16.msra.mxu0 %v590
        %600 = vmatpush.bf16.msra.mxu0 %v589
        %601 = vmatpush.bf16.msra.mxu0 %v588
        %602 = vmatpush.bf16.msra.mxu0 %v587
        %603 = vmatpush.bf16.msra.mxu0 %v586
        %604 = vmatpush.bf16.msra.mxu0 %v585
        %605 = vmatpush.bf16.msra.mxu0 %v584
        %606 = vmatpush.bf16.msra.mxu0 %v583
        %607 = vmatmul.bf16.gmra.mxu0 %v531
        %v608 = vpop.f32.mrf.mxu0
        %v609 = vadd.f32 0.0, %v608
        %v610 = vpop.f32.mrf.mxu0
        %v611 = vadd.f32 0.0, %v610
        %612 = vmatmul.bf16.gmra.mxu0 %v532
        %v613 = vpop.f32.mrf.mxu0
        %v614 = vadd.f32 0.0, %v613
        %v615 = vpop.f32.mrf.mxu0
        %v616 = vadd.f32 0.0, %v615
        %617 = vmatmul.bf16.gmra.mxu0 %v533
        %v618 = vpop.f32.mrf.mxu0
        %v619 = vadd.f32 0.0, %v618
        %v620 = vpop.f32.mrf.mxu0
        %v621 = vadd.f32 0.0, %v620
        %622 = vmatmul.bf16.gmra.mxu0 %v534
        %v623 = vpop.f32.mrf.mxu0
        %v624 = vadd.f32 0.0, %v623
        %v625 = vpop.f32.mrf.mxu0
        %v626 = vadd.f32 0.0, %v625
        %627 = vmatmul.bf16.gmra.mxu0 %v535
        %v628 = vpop.f32.mrf.mxu0
        %v629 = vadd.f32 0.0, %v628
        %v630 = vpop.f32.mrf.mxu0
        %v631 = vadd.f32 0.0, %v630
        %632 = vmatmul.bf16.gmra.mxu0 %v536
        %v633 = vpop.f32.mrf.mxu0
        %v634 = vadd.f32 0.0, %v633
        %v635 = vpop.f32.mrf.mxu0
        %v636 = vadd.f32 0.0, %v635
        %637 = vmatmul.bf16.gmra.mxu0 %v537
        %v638 = vpop.f32.mrf.mxu0
        %v639 = vadd.f32 0.0, %v638
        %v640 = vpop.f32.mrf.mxu0
        %v641 = vadd.f32 0.0, %v640
        %642 = vmatmul.bf16.gmra.mxu0 %v538
        %v643 = vpop.f32.mrf.mxu0
        %v644 = vadd.f32 0.0, %v643
        %v645 = vpop.f32.mrf.mxu0
        %v646 = vadd.f32 0.0, %v645
        %647 = vmatmul.bf16.gmra.mxu0 %v539
        %v648 = vpop.f32.mrf.mxu0
        %v649 = vadd.f32 0.0, %v648
        %v650 = vpop.f32.mrf.mxu0
        %v651 = vadd.f32 0.0, %v650
        %652 = vmatmul.bf16.gmra.mxu0 %v540
        %v653 = vpop.f32.mrf.mxu0
        %v654 = vadd.f32 0.0, %v653
        %v655 = vpop.f32.mrf.mxu0
        %v656 = vadd.f32 0.0, %v655
        %657 = vdwg.mxu0
        %v659 = vperm.slane %v446, 0
        %v661 = vmul.f32 %v609, %v659
        %v662 = vmul.f32 %v611, %v659
        %v663 = vmul.f32 %v614, %v659
        %v664 = vmul.f32 %v616, %v659
        %v665 = vmul.f32 %v619, %v659
        %v666 = vmul.f32 %v621, %v659
        %v667 = vmul.f32 %v624, %v659
        %v668 = vmul.f32 %v626, %v659
        %v669 = vmul.f32 %v629, %v659
        %v670 = vmul.f32 %v631, %v659
        %v671 = vmul.f32 %v634, %v659
        %v672 = vmul.f32 %v636, %v659
        %v673 = vmul.f32 %v639, %v659
        %v674 = vmul.f32 %v641, %v659
        %v675 = vmul.f32 %v644, %v659
        %v676 = vmul.f32 %v646, %v659
        %v677 = vmul.f32 %v649, %v659
        %v678 = vmul.f32 %v651, %v659
        %v679 = vmul.f32 %v654, %v659
        %v680 = vmul.f32 %v656, %v659
        %v682 = vperm.slane %v447, 0
        %v684 = vadd.f32 %v661, %v682
        %v685 = vadd.f32 %v662, %v682
        %v686 = vadd.f32 %v663, %v682
        %v687 = vadd.f32 %v664, %v682
        %v688 = vadd.f32 %v665, %v682
        %v689 = vadd.f32 %v666, %v682
        %v690 = vadd.f32 %v667, %v682
        %v691 = vadd.f32 %v668, %v682
        %v692 = vadd.f32 %v669, %v682
        %v693 = vadd.f32 %v670, %v682
        %v694 = vadd.f32 %v671, %v682
        %v695 = vadd.f32 %v672, %v682
        %v696 = vadd.f32 %v673, %v682
        %v697 = vadd.f32 %v674, %v682
        %v698 = vadd.f32 %v675, %v682
        %v699 = vadd.f32 %v676, %v682
        %v700 = vadd.f32 %v677, %v682
        %v701 = vadd.f32 %v678, %v682
        %v702 = vadd.f32 %v679, %v682
        %v703 = vadd.f32 %v680, %v682
        %v704 = vmax.f32 %v684, 0.0
        %v705 = vmax.f32 %v685, 0.0
        %v706 = vmax.f32 %v686, 0.0
        %v707 = vmax.f32 %v687, 0.0
        %v708 = vmax.f32 %v688, 0.0
        %v709 = vmax.f32 %v689, 0.0
        %v710 = vmax.f32 %v690, 0.0
        %v711 = vmax.f32 %v691, 0.0
        %v712 = vmax.f32 %v692, 0.0
        %v713 = vmax.f32 %v693, 0.0
        %v714 = vmax.f32 %v694, 0.0
        %v715 = vmax.f32 %v695, 0.0
        %v716 = vmax.f32 %v696, 0.0
        %v717 = vmax.f32 %v697, 0.0
        %v718 = vmax.f32 %v698, 0.0
        %v719 = vmax.f32 %v699, 0.0
        %v720 = vmax.f32 %v700, 0.0
        %v721 = vmax.f32 %v701, 0.0
        %v722 = vmax.f32 %v702, 0.0
        %v723 = vmax.f32 %v703, 0.0
        %s724 = ssub.s32 %s445, 1
        %v725 = vstv %s724
        %v726 = vadd.s32 %v725, 1
        %v727 = vadd.s32 %v725, 2
        %v728 = vadd.s32 %v725, 3
        %v729 = vadd.s32 %v725, 4
        %v730 = vadd.s32 %v725, 5
        %v731 = vadd.s32 %v725, 6
        %v732 = vadd.s32 %v725, 7
        %v733 = vadd.s32 %v725, 8
        %v734 = vadd.s32 %v725, 9
        %vm735 = vcmp.ge.s32.totalorder %v725, 0
        %vm736 = vcmp.ge.s32.totalorder %v726, 0
        %vm737 = vcmp.ge.s32.totalorder %v727, 0
        %vm738 = vcmp.ge.s32.totalorder %v728, 0
        %vm739 = vcmp.ge.s32.totalorder %v729, 0
        %vm740 = vcmp.ge.s32.totalorder %v730, 0
        %vm741 = vcmp.ge.s32.totalorder %v731, 0
        %vm742 = vcmp.ge.s32.totalorder %v732, 0
        %vm743 = vcmp.ge.s32.totalorder %v733, 0
        %vm744 = vcmp.ge.s32.totalorder %v734, 0
        %vm745 = vcmp.lt.s32.totalorder %v725, 16
        %vm746 = vcmp.lt.s32.totalorder %v726, 16
        %vm747 = vcmp.lt.s32.totalorder %v727, 16
        %vm748 = vcmp.lt.s32.totalorder %v728, 16
        %vm749 = vcmp.lt.s32.totalorder %v729, 16
        %vm750 = vcmp.lt.s32.totalorder %v730, 16
        %vm751 = vcmp.lt.s32.totalorder %v731, 16
        %vm752 = vcmp.lt.s32.totalorder %v732, 16
        %vm753 = vcmp.lt.s32.totalorder %v733, 16
        %vm754 = vcmp.lt.s32.totalorder %v734, 16
        %vm755 = vmand %vm735, %vm745
        %vm756 = vmand %vm736, %vm746
        %vm757 = vmand %vm737, %vm747
        %vm758 = vmand %vm738, %vm748
        %vm759 = vmand %vm739, %vm749
        %vm760 = vmand %vm740, %vm750
        %vm761 = vmand %vm741, %vm751
        %vm762 = vmand %vm742, %vm752
        %vm763 = vmand %vm743, %vm753
        %vm764 = vmand %vm744, %vm754
        %v765 = vsel %vm755, 1, 0
        %v766 = vsel %vm756, 1, 0
        %v767 = vsel %vm757, 1, 0
        %v768 = vsel %vm758, 1, 0
        %v769 = vsel %vm759, 1, 0
        %v770 = vsel %vm760, 1, 0
        %v771 = vsel %vm761, 1, 0
        %v772 = vsel %vm762, 1, 0
        %v773 = vsel %vm763, 1, 0
        %v774 = vsel %vm764, 1, 0
        %v775 = vcvt.s32.f32 %v765
        %v776 = vcvt.s32.f32 %v766
        %v777 = vcvt.s32.f32 %v767
        %v778 = vcvt.s32.f32 %v768
        %v779 = vcvt.s32.f32 %v769
        %v780 = vcvt.s32.f32 %v770
        %v781 = vcvt.s32.f32 %v771
        %v782 = vcvt.s32.f32 %v772
        %v783 = vcvt.s32.f32 %v773
        %v784 = vcvt.s32.f32 %v774
        %v785 = vmul.f32 %v704, %v775
        %v786 = vmul.f32 %v705, %v775
        %v787 = vmul.f32 %v706, %v776
        %v788 = vmul.f32 %v707, %v776
        %v789 = vmul.f32 %v708, %v777
        %v790 = vmul.f32 %v709, %v777
        %v791 = vmul.f32 %v710, %v778
        %v792 = vmul.f32 %v711, %v778
        %v793 = vmul.f32 %v712, %v779
        %v794 = vmul.f32 %v713, %v779
        %v795 = vmul.f32 %v714, %v780
        %v796 = vmul.f32 %v715, %v780
        %v797 = vmul.f32 %v716, %v781
        %v798 = vmul.f32 %v717, %v781
        %v799 = vmul.f32 %v718, %v782
        %v800 = vmul.f32 %v719, %v782
        %v801 = vmul.f32 %v720, %v783
        %v802 = vmul.f32 %v721, %v783
        %v803 = vmul.f32 %v722, %v784
        %v804 = vmul.f32 %v723, %v784
        %v805 = vlaneseq
        %v806 = vshrl.u32 %v805, 7
        %v807 = vadd.s32 %v806, 8
        %vm808 = vcmp.ge.s32.totalorder %v806, 1
        %vm809 = vcmp.ge.s32.totalorder %v807, 1
        %vm810 = vcmp.lt.s32.totalorder %v806, 15
        %vm811 = vcmp.lt.s32.totalorder %v807, 15
        %v812 = vrot.slane %v785, 7
        %v813 = vrot.slane %v787, 7
        %v814 = vrot.slane %v789, 7
        %v815 = vrot.slane %v791, 7
        %v816 = vrot.slane %v793, 7
        %v817 = vrot.slane %v795, 7
        %v818 = vrot.slane %v797, 7
        %v819 = vrot.slane %v799, 7
        %v820 = vrot.slane %v786, 7
        %v821 = vrot.slane %v788, 7
        %v822 = vrot.slane %v790, 7
        %v823 = vrot.slane %v792, 7
        %v824 = vrot.slane %v794, 7
        %v825 = vrot.slane %v796, 7
        %v826 = vrot.slane %v798, 7
        %v827 = vrot.slane %v800, 7
        %vm828 = vcmp.lt.s32.totalorder %v806, 1
        %v829 = vsel %vm828, %v812, %v820
        %v830 = vsel %vm828, %v813, %v821
        %v831 = vsel %vm828, %v814, %v822
        %v832 = vsel %vm828, %v815, %v823
        %v833 = vsel %vm828, %v816, %v824
        %v834 = vsel %vm828, %v817, %v825
        %v835 = vsel %vm828, %v818, %v826
        %v836 = vsel %vm828, %v819, %v827
        %v837 = vsel %vm828, %v820, %v812
        %v838 = vsel %vm828, %v821, %v813
        %v839 = vsel %vm828, %v822, %v814
        %v840 = vsel %vm828, %v823, %v815
        %v841 = vsel %vm828, %v824, %v816
        %v842 = vsel %vm828, %v825, %v817
        %v843 = vsel %vm828, %v826, %v818
        %v844 = vsel %vm828, %v827, %v819
        %v845 = vsel %vm808, 1, 0
        %v846 = vsel %vm809, 1, 0
        %vm847 = vcmp.eq.s32.totalorder %v845, 1
        %vm848 = vcmp.eq.s32.totalorder %v846, 1
        %v849 = vsel %vm847, %v837, 0.0
        %v850 = vsel %vm848, %v829, 0.0
        %v851 = vsel %vm847, %v838, 0.0
        %v852 = vsel %vm848, %v830, 0.0
        %v853 = vsel %vm847, %v839, 0.0
        %v854 = vsel %vm848, %v831, 0.0
        %v855 = vsel %vm847, %v840, 0.0
        %v856 = vsel %vm848, %v832, 0.0
        %v857 = vsel %vm847, %v841, 0.0
        %v858 = vsel %vm848, %v833, 0.0
        %v859 = vsel %vm847, %v842, 0.0
        %v860 = vsel %vm848, %v834, 0.0
        %v861 = vsel %vm847, %v843, 0.0
        %v862 = vsel %vm848, %v835, 0.0
        %v863 = vsel %vm847, %v844, 0.0
        %v864 = vsel %vm848, %v836, 0.0
        %v865 = vpack.c.bf16 %v849, %v849
        %v866 = vpack.c.bf16 %v850, %v850
        %v867 = vpack.c.bf16 %v851, %v851
        %v868 = vpack.c.bf16 %v852, %v852
        %v869 = vpack.c.bf16 %v853, %v853
        %v870 = vpack.c.bf16 %v854, %v854
        %v871 = vpack.c.bf16 %v855, %v855
        %v872 = vpack.c.bf16 %v856, %v856
        %v873 = vpack.c.bf16 %v857, %v857
        %v874 = vpack.c.bf16 %v858, %v858
        %v875 = vpack.c.bf16 %v859, %v859
        %v876 = vpack.c.bf16 %v860, %v860
        %v877 = vpack.c.bf16 %v861, %v861
        %v878 = vpack.c.bf16 %v862, %v862
        %v879 = vpack.c.bf16 %v863, %v863
        %v880 = vpack.c.bf16 %v864, %v864
        %881 = vst [vmem:[#allocation2] sm:$0xf] %v865
        %882 = vst [vmem:[#allocation2 + $0x24] sm:$0xf] %v866
        %883 = vst [vmem:[#allocation2 + $0x48] sm:$0xf] %v867
        %884 = vst [vmem:[#allocation2 + $0x6c] sm:$0xf] %v868
        %885 = vst [vmem:[#allocation2 + $0x90] sm:$0xf] %v869
        %886 = vst [vmem:[#allocation2 + $0xb4] sm:$0xf] %v870
        %887 = vst [vmem:[#allocation2 + $0xd8] sm:$0xf] %v871
        %888 = vst [vmem:[#allocation2 + $0xfc] sm:$0xf] %v872
        %889 = vst [vmem:[#allocation2 + $0x120] sm:$0xf] %v873
        %890 = vst [vmem:[#allocation2 + $0x144] sm:$0xf] %v874
        %891 = vst [vmem:[#allocation2 + $0x168] sm:$0xf] %v875
        %892 = vst [vmem:[#allocation2 + $0x18c] sm:$0xf] %v876
        %893 = vst [vmem:[#allocation2 + $0x1b0] sm:$0xf] %v877
        %894 = vst [vmem:[#allocation2 + $0x1d4] sm:$0xf] %v878
        %895 = vst [vmem:[#allocation2 + $0x1f8] sm:$0xf] %v879
        %896 = vst [vmem:[#allocation2 + $0x21c] sm:$0xf] %v880
        %v897 = vpack.c.bf16 %v785, %v785
        %v898 = vpack.c.bf16 %v786, %v786
        %v899 = vpack.c.bf16 %v787, %v787
        %v900 = vpack.c.bf16 %v788, %v788
        %v901 = vpack.c.bf16 %v789, %v789
        %v902 = vpack.c.bf16 %v790, %v790
        %v903 = vpack.c.bf16 %v791, %v791
        %v904 = vpack.c.bf16 %v792, %v792
        %v905 = vpack.c.bf16 %v793, %v793
        %v906 = vpack.c.bf16 %v794, %v794
        %v907 = vpack.c.bf16 %v795, %v795
        %v908 = vpack.c.bf16 %v796, %v796
        %v909 = vpack.c.bf16 %v797, %v797
        %v910 = vpack.c.bf16 %v798, %v798
        %v911 = vpack.c.bf16 %v799, %v799
        %v912 = vpack.c.bf16 %v800, %v800
        %913 = vst [vmem:[#allocation2 + $0x4] sm:$0xf] %v897
        %914 = vst [vmem:[#allocation2 + $0x28] sm:$0xf] %v898
        %915 = vst [vmem:[#allocation2 + $0x4c] sm:$0xf] %v899
        %916 = vst [vmem:[#allocation2 + $0x70] sm:$0xf] %v900
        %917 = vst [vmem:[#allocation2 + $0x94] sm:$0xf] %v901
        %918 = vst [vmem:[#allocation2 + $0xb8] sm:$0xf] %v902
        %919 = vst [vmem:[#allocation2 + $0xdc] sm:$0xf] %v903
        %920 = vst [vmem:[#allocation2 + $0x100] sm:$0xf] %v904
        %921 = vst [vmem:[#allocation2 + $0x124] sm:$0xf] %v905
        %922 = vst [vmem:[#allocation2 + $0x148] sm:$0xf] %v906
        %923 = vst [vmem:[#allocation2 + $0x16c] sm:$0xf] %v907
        %924 = vst [vmem:[#allocation2 + $0x190] sm:$0xf] %v908
        %925 = vst [vmem:[#allocation2 + $0x1b4] sm:$0xf] %v909
        %926 = vst [vmem:[#allocation2 + $0x1d8] sm:$0xf] %v910
        %927 = vst [vmem:[#allocation2 + $0x1fc] sm:$0xf] %v911
        %928 = vst [vmem:[#allocation2 + $0x220] sm:$0xf] %v912
        %v929 = vrot.slane %v785, 1
        %v930 = vrot.slane %v787, 1
        %v931 = vrot.slane %v789, 1
        %v932 = vrot.slane %v791, 1
        %v933 = vrot.slane %v793, 1
        %v934 = vrot.slane %v795, 1
        %v935 = vrot.slane %v797, 1
        %v936 = vrot.slane %v799, 1
        %v937 = vrot.slane %v786, 1
        %v938 = vrot.slane %v788, 1
        %v939 = vrot.slane %v790, 1
        %v940 = vrot.slane %v792, 1
        %v941 = vrot.slane %v794, 1
        %v942 = vrot.slane %v796, 1
        %v943 = vrot.slane %v798, 1
        %v944 = vrot.slane %v800, 1
        %vm945 = vcmp.lt.s32.totalorder %v806, 7
        %v946 = vsel %vm945, %v929, %v937
        %v947 = vsel %vm945, %v930, %v938
        %v948 = vsel %vm945, %v931, %v939
        %v949 = vsel %vm945, %v932, %v940
        %v950 = vsel %vm945, %v933, %v941
        %v951 = vsel %vm945, %v934, %v942
        %v952 = vsel %vm945, %v935, %v943
        %v953 = vsel %vm945, %v936, %v944
        %v954 = vsel %vm945, %v937, %v929
        %v955 = vsel %vm945, %v938, %v930
        %v956 = vsel %vm945, %v939, %v931
        %v957 = vsel %vm945, %v940, %v932
        %v958 = vsel %vm945, %v941, %v933
        %v959 = vsel %vm945, %v942, %v934
        %v960 = vsel %vm945, %v943, %v935
        %v961 = vsel %vm945, %v944, %v936
        %v962 = vsel %vm810, 1, 0
        %v963 = vsel %vm811, 1, 0
        %vm964 = vcmp.eq.s32.totalorder %v962, 1
        %vm965 = vcmp.eq.s32.totalorder %v963, 1
        %v966 = vsel %vm964, %v946, 0.0
        %v967 = vsel %vm965, %v954, 0.0
        %v968 = vsel %vm964, %v947, 0.0
        %v969 = vsel %vm965, %v955, 0.0
        %v970 = vsel %vm964, %v948, 0.0
        %v971 = vsel %vm965, %v956, 0.0
        %v972 = vsel %vm964, %v949, 0.0
        %v973 = vsel %vm965, %v957, 0.0
        %v974 = vsel %vm964, %v950, 0.0
        %v975 = vsel %vm965, %v958, 0.0
        %v976 = vsel %vm964, %v951, 0.0
        %v977 = vsel %vm965, %v959, 0.0
        %v978 = vsel %vm964, %v952, 0.0
        %v979 = vsel %vm965, %v960, 0.0
        %v980 = vsel %vm964, %v953, 0.0
        %v981 = vsel %vm965, %v961, 0.0
        %v982 = vpack.c.bf16 %v966, %v966
        %v983 = vpack.c.bf16 %v967, %v967
        %v984 = vpack.c.bf16 %v968, %v968
        %v985 = vpack.c.bf16 %v969, %v969
        %v986 = vpack.c.bf16 %v970, %v970
        %v987 = vpack.c.bf16 %v971, %v971
        %v988 = vpack.c.bf16 %v972, %v972
        %v989 = vpack.c.bf16 %v973, %v973
        %v990 = vpack.c.bf16 %v974, %v974
        %v991 = vpack.c.bf16 %v975, %v975
        %v992 = vpack.c.bf16 %v976, %v976
        %v993 = vpack.c.bf16 %v977, %v977
        %v994 = vpack.c.bf16 %v978, %v978
        %v995 = vpack.c.bf16 %v979, %v979
        %v996 = vpack.c.bf16 %v980, %v980
        %v997 = vpack.c.bf16 %v981, %v981
        %998 = vst [vmem:[#allocation2 + $0x8] sm:$0xf] %v982
        %999 = vst [vmem:[#allocation2 + $0x2c] sm:$0xf] %v983
        %1000 = vst [vmem:[#allocation2 + $0x50] sm:$0xf] %v984
        %1001 = vst [vmem:[#allocation2 + $0x74] sm:$0xf] %v985
        %1002 = vst [vmem:[#allocation2 + $0x98] sm:$0xf] %v986
        %1003 = vst [vmem:[#allocation2 + $0xbc] sm:$0xf] %v987
        %1004 = vst [vmem:[#allocation2 + $0xe0] sm:$0xf] %v988
        %1005 = vst [vmem:[#allocation2 + $0x104] sm:$0xf] %v989
        %1006 = vst [vmem:[#allocation2 + $0x128] sm:$0xf] %v990
        %1007 = vst [vmem:[#allocation2 + $0x14c] sm:$0xf] %v991
        %1008 = vst [vmem:[#allocation2 + $0x170] sm:$0xf] %v992
        %1009 = vst [vmem:[#allocation2 + $0x194] sm:$0xf] %v993
        %1010 = vst [vmem:[#allocation2 + $0x1b8] sm:$0xf] %v994
        %1011 = vst [vmem:[#allocation2 + $0x1dc] sm:$0xf] %v995
        %1012 = vst [vmem:[#allocation2 + $0x200] sm:$0xf] %v996
        %1013 = vst [vmem:[#allocation2 + $0x224] sm:$0xf] %v997
        %v1014 = vrot.slane %v801, 7
        %v1015 = vrot.slane %v802, 7
        %v1016 = vsel %vm828, %v1014, %v1015
        %v1017 = vsel %vm828, %v1015, %v1014
        %v1018 = vsel %vm847, %v1017, 0.0
        %v1019 = vsel %vm848, %v1016, 0.0
        %v1020 = vpack.c.bf16 %v1018, %v1018
        %v1021 = vpack.c.bf16 %v1019, %v1019
        %1022 = vst [vmem:[#allocation2 + $0xc] sm:$0xf] %v867
        %1023 = vst [vmem:[#allocation2 + $0x30] sm:$0xf] %v868
        %1024 = vst [vmem:[#allocation2 + $0x54] sm:$0xf] %v869
        %1025 = vst [vmem:[#allocation2 + $0x78] sm:$0xf] %v870
        %1026 = vst [vmem:[#allocation2 + $0x9c] sm:$0xf] %v871
        %1027 = vst [vmem:[#allocation2 + $0xc0] sm:$0xf] %v872
        %1028 = vst [vmem:[#allocation2 + $0xe4] sm:$0xf] %v873
        %1029 = vst [vmem:[#allocation2 + $0x108] sm:$0xf] %v874
        %1030 = vst [vmem:[#allocation2 + $0x12c] sm:$0xf] %v875
        %1031 = vst [vmem:[#allocation2 + $0x150] sm:$0xf] %v876
        %1032 = vst [vmem:[#allocation2 + $0x174] sm:$0xf] %v877
        %1033 = vst [vmem:[#allocation2 + $0x198] sm:$0xf] %v878
        %1034 = vst [vmem:[#allocation2 + $0x1bc] sm:$0xf] %v879
        %1035 = vst [vmem:[#allocation2 + $0x1e0] sm:$0xf] %v880
        %1036 = vst [vmem:[#allocation2 + $0x204] sm:$0xf] %v1020
        %1037 = vst [vmem:[#allocation2 + $0x228] sm:$0xf] %v1021
        %v1038 = vpack.c.bf16 %v801, %v801
        %v1039 = vpack.c.bf16 %v802, %v802
        %1040 = vst [vmem:[#allocation2 + $0x10] sm:$0xf] %v899
        %1041 = vst [vmem:[#allocation2 + $0x34] sm:$0xf] %v900
        %1042 = vst [vmem:[#allocation2 + $0x58] sm:$0xf] %v901
        %1043 = vst [vmem:[#allocation2 + $0x7c] sm:$0xf] %v902
        %1044 = vst [vmem:[#allocation2 + $0xa0] sm:$0xf] %v903
        %1045 = vst [vmem:[#allocation2 + $0xc4] sm:$0xf] %v904
        %1046 = vst [vmem:[#allocation2 + $0xe8] sm:$0xf] %v905
        %1047 = vst [vmem:[#allocation2 + $0x10c] sm:$0xf] %v906
        %1048 = vst [vmem:[#allocation2 + $0x130] sm:$0xf] %v907
        %1049 = vst [vmem:[#allocation2 + $0x154] sm:$0xf] %v908
        %1050 = vst [vmem:[#allocation2 + $0x178] sm:$0xf] %v909
        %1051 = vst [vmem:[#allocation2 + $0x19c] sm:$0xf] %v910
        %1052 = vst [vmem:[#allocation2 + $0x1c0] sm:$0xf] %v911
        %1053 = vst [vmem:[#allocation2 + $0x1e4] sm:$0xf] %v912
        %1054 = vst [vmem:[#allocation2 + $0x208] sm:$0xf] %v1038
        %1055 = vst [vmem:[#allocation2 + $0x22c] sm:$0xf] %v1039
        %v1056 = vrot.slane %v801, 1
        %v1057 = vrot.slane %v802, 1
        %v1058 = vsel %vm945, %v1056, %v1057
        %v1059 = vsel %vm945, %v1057, %v1056
        %v1060 = vsel %vm964, %v1058, 0.0
        %v1061 = vsel %vm965, %v1059, 0.0
        %v1062 = vpack.c.bf16 %v1060, %v1060
        %v1063 = vpack.c.bf16 %v1061, %v1061
        %1064 = vst [vmem:[#allocation2 + $0x14] sm:$0xf] %v984
        %1065 = vst [vmem:[#allocation2 + $0x38] sm:$0xf] %v985
        %1066 = vst [vmem:[#allocation2 + $0x5c] sm:$0xf] %v986
        %1067 = vst [vmem:[#allocation2 + $0x80] sm:$0xf] %v987
        %1068 = vst [vmem:[#allocation2 + $0xa4] sm:$0xf] %v988
        %1069 = vst [vmem:[#allocation2 + $0xc8] sm:$0xf] %v989
        %1070 = vst [vmem:[#allocation2 + $0xec] sm:$0xf] %v990
        %1071 = vst [vmem:[#allocation2 + $0x110] sm:$0xf] %v991
        %1072 = vst [vmem:[#allocation2 + $0x134] sm:$0xf] %v992
        %1073 = vst [vmem:[#allocation2 + $0x158] sm:$0xf] %v993
        %1074 = vst [vmem:[#allocation2 + $0x17c] sm:$0xf] %v994
        %1075 = vst [vmem:[#allocation2 + $0x1a0] sm:$0xf] %v995
        %1076 = vst [vmem:[#allocation2 + $0x1c4] sm:$0xf] %v996
        %1077 = vst [vmem:[#allocation2 + $0x1e8] sm:$0xf] %v997
        %1078 = vst [vmem:[#allocation2 + $0x20c] sm:$0xf] %v1062
        %1079 = vst [vmem:[#allocation2 + $0x230] sm:$0xf] %v1063
        %v1080 = vrot.slane %v803, 7
        %v1081 = vrot.slane %v804, 7
        %v1082 = vsel %vm828, %v1080, %v1081
        %v1083 = vsel %vm828, %v1081, %v1080
        %v1084 = vsel %vm847, %v1083, 0.0
        %v1085 = vsel %vm848, %v1082, 0.0
        %v1086 = vpack.c.bf16 %v1084, %v1084
        %v1087 = vpack.c.bf16 %v1085, %v1085
        %1088 = vst [vmem:[#allocation2 + $0x18] sm:$0xf] %v869
        %1089 = vst [vmem:[#allocation2 + $0x3c] sm:$0xf] %v870
        %1090 = vst [vmem:[#allocation2 + $0x60] sm:$0xf] %v871
        %1091 = vst [vmem:[#allocation2 + $0x84] sm:$0xf] %v872
        %1092 = vst [vmem:[#allocation2 + $0xa8] sm:$0xf] %v873
        %1093 = vst [vmem:[#allocation2 + $0xcc] sm:$0xf] %v874
        %1094 = vst [vmem:[#allocation2 + $0xf0] sm:$0xf] %v875
        %1095 = vst [vmem:[#allocation2 + $0x114] sm:$0xf] %v876
        %1096 = vst [vmem:[#allocation2 + $0x138] sm:$0xf] %v877
        %1097 = vst [vmem:[#allocation2 + $0x15c] sm:$0xf] %v878
        %1098 = vst [vmem:[#allocation2 + $0x180] sm:$0xf] %v879
        %1099 = vst [vmem:[#allocation2 + $0x1a4] sm:$0xf] %v880
        %1100 = vst [vmem:[#allocation2 + $0x1c8] sm:$0xf] %v1020
        %1101 = vst [vmem:[#allocation2 + $0x1ec] sm:$0xf] %v1021
        %1102 = vst [vmem:[#allocation2 + $0x210] sm:$0xf] %v1086
        %1103 = vst [vmem:[#allocation2 + $0x234] sm:$0xf] %v1087
        %v1104 = vpack.c.bf16 %v803, %v803
        %v1105 = vpack.c.bf16 %v804, %v804
        %1106 = vst [vmem:[#allocation2 + $0x1c] sm:$0xf] %v901
        %1107 = vst [vmem:[#allocation2 + $0x40] sm:$0xf] %v902
        %1108 = vst [vmem:[#allocation2 + $0x64] sm:$0xf] %v903
        %1109 = vst [vmem:[#allocation2 + $0x88] sm:$0xf] %v904
        %1110 = vst [vmem:[#allocation2 + $0xac] sm:$0xf] %v905
        %1111 = vst [vmem:[#allocation2 + $0xd0] sm:$0xf] %v906
        %1112 = vst [vmem:[#allocation2 + $0xf4] sm:$0xf] %v907
        %1113 = vst [vmem:[#allocation2 + $0x118] sm:$0xf] %v908
        %1114 = vst [vmem:[#allocation2 + $0x13c] sm:$0xf] %v909
        %1115 = vst [vmem:[#allocation2 + $0x160] sm:$0xf] %v910
        %1116 = vst [vmem:[#allocation2 + $0x184] sm:$0xf] %v911
        %1117 = vst [vmem:[#allocation2 + $0x1a8] sm:$0xf] %v912
        %1118 = vst [vmem:[#allocation2 + $0x1cc] sm:$0xf] %v1038
        %1119 = vst [vmem:[#allocation2 + $0x1f0] sm:$0xf] %v1039
        %1120 = vst [vmem:[#allocation2 + $0x214] sm:$0xf] %v1104
        %1121 = vst [vmem:[#allocation2 + $0x238] sm:$0xf] %v1105
        %v1122 = vrot.slane %v803, 1
        %v1123 = vrot.slane %v804, 1
        %v1124 = vsel %vm945, %v1122, %v1123
        %v1125 = vsel %vm945, %v1123, %v1122
        %v1126 = vsel %vm964, %v1124, 0.0
        %v1127 = vsel %vm965, %v1125, 0.0
        %v1128 = vpack.c.bf16 %v1126, %v1126
        %v1129 = vpack.c.bf16 %v1127, %v1127
        %1130 = vst [vmem:[#allocation2 + $0x20] sm:$0xf] %v986
        %1131 = vst [vmem:[#allocation2 + $0x44] sm:$0xf] %v987
        %1132 = vst [vmem:[#allocation2 + $0x68] sm:$0xf] %v988
        %1133 = vst [vmem:[#allocation2 + $0x8c] sm:$0xf] %v989
        %1134 = vst [vmem:[#allocation2 + $0xb0] sm:$0xf] %v990
        %1135 = vst [vmem:[#allocation2 + $0xd4] sm:$0xf] %v991
        %1136 = vst [vmem:[#allocation2 + $0xf8] sm:$0xf] %v992
        %1137 = vst [vmem:[#allocation2 + $0x11c] sm:$0xf] %v993
        %1138 = vst [vmem:[#allocation2 + $0x140] sm:$0xf] %v994
        %1139 = vst [vmem:[#allocation2 + $0x164] sm:$0xf] %v995
        %1140 = vst [vmem:[#allocation2 + $0x188] sm:$0xf] %v996
        %1141 = vst [vmem:[#allocation2 + $0x1ac] sm:$0xf] %v997
        %1142 = vst [vmem:[#allocation2 + $0x1d0] sm:$0xf] %v1062
        %1143 = vst [vmem:[#allocation2 + $0x1f4] sm:$0xf] %v1063
        %1144 = vst [vmem:[#allocation2 + $0x218] sm:$0xf] %v1128
        %1145 = vst [vmem:[#allocation2 + $0x23c] sm:$0xf] %v1129
        %v1146 = vld [vmem:[#allocation2] sm:$0xff]
        %v1147 = vld [vmem:[#allocation2 + $0x8] sm:$0xff]
        %v1148 = vld [vmem:[#allocation2 + $0x10] sm:$0xff]
        %v1149 = vld [vmem:[#allocation2 + $0x18] sm:$0xff]
        %v1150 = vld [vmem:[#allocation2 + $0x20] sm:$0xf]
        %v1151 = vld [vmem:[#allocation2 + $0x24] sm:$0xff]
        %v1152 = vld [vmem:[#allocation2 + $0x2c] sm:$0xff]
        %v1153 = vld [vmem:[#allocation2 + $0x34] sm:$0xff]
        %v1154 = vld [vmem:[#allocation2 + $0x3c] sm:$0xff]
        %v1155 = vld [vmem:[#allocation2 + $0x44] sm:$0xf]
        %v1156 = vld [vmem:[#allocation2 + $0x48] sm:$0xff]
        %v1157 = vld [vmem:[#allocation2 + $0x50] sm:$0xff]
        %v1158 = vld [vmem:[#allocation2 + $0x58] sm:$0xff]
        %v1159 = vld [vmem:[#allocation2 + $0x60] sm:$0xff]
        %v1160 = vld [vmem:[#allocation2 + $0x68] sm:$0xf]
        %v1161 = vld [vmem:[#allocation2 + $0x6c] sm:$0xff]
        %v1162 = vld [vmem:[#allocation2 + $0x74] sm:$0xff]
        %v1163 = vld [vmem:[#allocation2 + $0x7c] sm:$0xff]
        %v1164 = vld [vmem:[#allocation2 + $0x84] sm:$0xff]
        %v1165 = vld [vmem:[#allocation2 + $0x8c] sm:$0xf]
        %v1166 = vld [vmem:[#allocation2 + $0x90] sm:$0xff]
        %v1167 = vld [vmem:[#allocation2 + $0x98] sm:$0xff]
        %v1168 = vld [vmem:[#allocation2 + $0xa0] sm:$0xff]
        %v1169 = vld [vmem:[#allocation2 + $0xa8] sm:$0xff]
        %v1170 = vld [vmem:[#allocation2 + $0xb0] sm:$0xf]
        %v1171 = vld [vmem:[#allocation2 + $0xb4] sm:$0xff]
        %v1172 = vld [vmem:[#allocation2 + $0xbc] sm:$0xff]
        %v1173 = vld [vmem:[#allocation2 + $0xc4] sm:$0xff]
        %v1174 = vld [vmem:[#allocation2 + $0xcc] sm:$0xff]
        %v1175 = vld [vmem:[#allocation2 + $0xd4] sm:$0xf]
        %v1176 = vld [vmem:[#allocation2 + $0xd8] sm:$0xff]
        %v1177 = vld [vmem:[#allocation2 + $0xe0] sm:$0xff]
        %v1178 = vld [vmem:[#allocation2 + $0xe8] sm:$0xff]
        %v1179 = vld [vmem:[#allocation2 + $0xf0] sm:$0xff]
        %v1180 = vld [vmem:[#allocation2 + $0xf8] sm:$0xf]
        %v1181 = vld [vmem:[#allocation2 + $0xfc] sm:$0xff]
        %v1182 = vld [vmem:[#allocation2 + $0x104] sm:$0xff]
        %v1183 = vld [vmem:[#allocation2 + $0x10c] sm:$0xff]
        %v1184 = vld [vmem:[#allocation2 + $0x114] sm:$0xff]
        %v1185 = vld [vmem:[#allocation2 + $0x11c] sm:$0xf]
        %v1186 = vld [vmem:[#allocation2 + $0x120] sm:$0xff]
        %v1187 = vld [vmem:[#allocation2 + $0x128] sm:$0xff]
        %v1188 = vld [vmem:[#allocation2 + $0x130] sm:$0xff]
        %v1189 = vld [vmem:[#allocation2 + $0x138] sm:$0xff]
        %v1190 = vld [vmem:[#allocation2 + $0x140] sm:$0xf]
        %v1191 = vld [vmem:[#allocation2 + $0x144] sm:$0xff]
        %v1192 = vld [vmem:[#allocation2 + $0x14c] sm:$0xff]
        %v1193 = vld [vmem:[#allocation2 + $0x154] sm:$0xff]
        %v1194 = vld [vmem:[#allocation2 + $0x15c] sm:$0xff]
        %v1195 = vld [vmem:[#allocation2 + $0x164] sm:$0xf]
        %v1196 = vld [vmem:[#allocation2 + $0x168] sm:$0xff]
        %v1197 = vld [vmem:[#allocation2 + $0x170] sm:$0xff]
        %v1198 = vld [vmem:[#allocation2 + $0x178] sm:$0xff]
        %v1199 = vld [vmem:[#allocation2 + $0x180] sm:$0xff]
        %v1200 = vld [vmem:[#allocation2 + $0x188] sm:$0xf]
        %v1201 = vld [vmem:[#allocation2 + $0x18c] sm:$0xff]
        %v1202 = vld [vmem:[#allocation2 + $0x194] sm:$0xff]
        %v1203 = vld [vmem:[#allocation2 + $0x19c] sm:$0xff]
        %v1204 = vld [vmem:[#allocation2 + $0x1a4] sm:$0xff]
        %v1205 = vld [vmem:[#allocation2 + $0x1ac] sm:$0xf]
        %v1206 = vld [vmem:[#allocation2 + $0x1b0] sm:$0xff]
        %v1207 = vld [vmem:[#allocation2 + $0x1b8] sm:$0xff]
        %v1208 = vld [vmem:[#allocation2 + $0x1c0] sm:$0xff]
        %v1209 = vld [vmem:[#allocation2 + $0x1c8] sm:$0xff]
        %v1210 = vld [vmem:[#allocation2 + $0x1d0] sm:$0xf]
        %v1211 = vld [vmem:[#allocation2 + $0x1d4] sm:$0xff]
        %v1212 = vld [vmem:[#allocation2 + $0x1dc] sm:$0xff]
        %v1213 = vld [vmem:[#allocation2 + $0x1e4] sm:$0xff]
        %v1214 = vld [vmem:[#allocation2 + $0x1ec] sm:$0xff]
        %v1215 = vld [vmem:[#allocation2 + $0x1f4] sm:$0xf]
        %v1216 = vld [vmem:[#allocation2 + $0x1f8] sm:$0xff]
        %v1217 = vld [vmem:[#allocation2 + $0x200] sm:$0xff]
        %v1218 = vld [vmem:[#allocation2 + $0x208] sm:$0xff]
        %v1219 = vld [vmem:[#allocation2 + $0x210] sm:$0xff]
        %v1220 = vld [vmem:[#allocation2 + $0x218] sm:$0xf]
        %v1221 = vld [vmem:[#allocation2 + $0x21c] sm:$0xff]
        %v1222 = vld [vmem:[#allocation2 + $0x224] sm:$0xff]
        %v1223 = vld [vmem:[#allocation2 + $0x22c] sm:$0xff]
        %v1224 = vld [vmem:[#allocation2 + $0x234] sm:$0xff]
        %v1225 = vld [vmem:[#allocation2 + $0x23c] sm:$0xf]
        %v1226 = vld [vmem:[#allocation8] sm:$0xf]
        %v1227 = vld [vmem:[#allocation8 + $0x4] sm:$0xf]
        %v1228 = vld [vmem:[#allocation8 + $0x8] sm:$0xf]
        %v1229 = vld [vmem:[#allocation8 + $0xc] sm:$0xf]
        %v1230 = vld [vmem:[#allocation8 + $0x10] sm:$0xf]
        %v1231 = vld [vmem:[#allocation8 + $0x14] sm:$0xf]
        %v1232 = vld [vmem:[#allocation8 + $0x18] sm:$0xf]
        %v1233 = vld [vmem:[#allocation8 + $0x1c] sm:$0xf]
        %v1234 = vld [vmem:[#allocation8 + $0x20] sm:$0xf]
        %v1235 = vld [vmem:[#allocation8 + $0x24] sm:$0xf]
        %v1236 = vld [vmem:[#allocation8 + $0x28] sm:$0xf]
        %v1237 = vld [vmem:[#allocation8 + $0x2c] sm:$0xf]
        %v1238 = vld [vmem:[#allocation8 + $0x30] sm:$0xf]
        %v1239 = vld [vmem:[#allocation8 + $0x34] sm:$0xf]
        %v1240 = vld [vmem:[#allocation8 + $0x38] sm:$0xf]
        %v1241 = vld [vmem:[#allocation8 + $0x3c] sm:$0xf]
        %v1242 = vld [vmem:[#allocation8 + $0x40] sm:$0xf]
        %v1243 = vld [vmem:[#allocation8 + $0x44] sm:$0xf]
        %v1244 = vld [vmem:[#allocation8 + $0x48] sm:$0xf]
        %v1245 = vld [vmem:[#allocation8 + $0x4c] sm:$0xf]
        %v1246 = vld [vmem:[#allocation8 + $0x50] sm:$0xf]
        %v1247 = vld [vmem:[#allocation8 + $0x54] sm:$0xf]
        %v1248 = vld [vmem:[#allocation8 + $0x58] sm:$0xf]
        %v1249 = vld [vmem:[#allocation8 + $0x5c] sm:$0xf]
        %v1250 = vld [vmem:[#allocation8 + $0x60] sm:$0xf]
        %v1251 = vld [vmem:[#allocation8 + $0x64] sm:$0xf]
        %v1252 = vld [vmem:[#allocation8 + $0x68] sm:$0xf]
        %v1253 = vld [vmem:[#allocation8 + $0x6c] sm:$0xf]
        %v1254 = vld [vmem:[#allocation8 + $0x70] sm:$0xf]
        %v1255 = vld [vmem:[#allocation8 + $0x74] sm:$0xf]
        %v1256 = vld [vmem:[#allocation8 + $0x78] sm:$0xf]
        %v1257 = vld [vmem:[#allocation8 + $0x7c] sm:$0xf]
        %v1258 = vld [vmem:[#allocation8 + $0x80] sm:$0xf]
        %v1259 = vld [vmem:[#allocation8 + $0x84] sm:$0xf]
        %v1260 = vld [vmem:[#allocation8 + $0x88] sm:$0xf]
        %v1261 = vld [vmem:[#allocation8 + $0x8c] sm:$0xf]
        %v1262 = vld [vmem:[#allocation8 + $0x90] sm:$0xf]
        %v1263 = vld [vmem:[#allocation8 + $0x94] sm:$0xf]
        %v1264 = vld [vmem:[#allocation8 + $0x98] sm:$0xf]
        %v1265 = vld [vmem:[#allocation8 + $0x9c] sm:$0xf]
        %v1266 = vld [vmem:[#allocation8 + $0xa0] sm:$0xf]
        %v1267 = vld [vmem:[#allocation8 + $0xa4] sm:$0xf]
        %v1268 = vld [vmem:[#allocation8 + $0xa8] sm:$0xf]
        %v1269 = vld [vmem:[#allocation8 + $0xac] sm:$0xf]
        %v1270 = vld [vmem:[#allocation8 + $0xb0] sm:$0xf]
        %v1271 = vld [vmem:[#allocation8 + $0xb4] sm:$0xf]
        %v1272 = vld [vmem:[#allocation8 + $0xb8] sm:$0xf]
        %v1273 = vld [vmem:[#allocation8 + $0xbc] sm:$0xf]
        %v1274 = vld [vmem:[#allocation8 + $0xc0] sm:$0xf]
        %v1275 = vld [vmem:[#allocation8 + $0xc4] sm:$0xf]
        %v1276 = vld [vmem:[#allocation8 + $0xc8] sm:$0xf]
        %v1277 = vld [vmem:[#allocation8 + $0xcc] sm:$0xf]
        %v1278 = vld [vmem:[#allocation8 + $0xd0] sm:$0xf]
        %v1279 = vld [vmem:[#allocation8 + $0xd4] sm:$0xf]
        %v1280 = vld [vmem:[#allocation8 + $0xd8] sm:$0xf]
        %v1281 = vld [vmem:[#allocation8 + $0xdc] sm:$0xf]
        %v1282 = vld [vmem:[#allocation8 + $0xe0] sm:$0xf]
        %v1283 = vld [vmem:[#allocation8 + $0xe4] sm:$0xf]
        %v1284 = vld [vmem:[#allocation8 + $0xe8] sm:$0xf]
        %v1285 = vld [vmem:[#allocation8 + $0xec] sm:$0xf]
        %v1286 = vld [vmem:[#allocation8 + $0xf0] sm:$0xf]
        %v1287 = vld [vmem:[#allocation8 + $0xf4] sm:$0xf]
        %v1288 = vld [vmem:[#allocation8 + $0xf8] sm:$0xf]
        %v1289 = vld [vmem:[#allocation8 + $0xfc] sm:$0xf]
        %v1290 = vld [vmem:[#allocation8 + $0x100] sm:$0xf]
        %v1291 = vld [vmem:[#allocation8 + $0x104] sm:$0xf]
        %v1292 = vld [vmem:[#allocation8 + $0x108] sm:$0xf]
        %v1293 = vld [vmem:[#allocation8 + $0x10c] sm:$0xf]
        %v1294 = vld [vmem:[#allocation8 + $0x110] sm:$0xf]
        %v1295 = vld [vmem:[#allocation8 + $0x114] sm:$0xf]
        %v1296 = vld [vmem:[#allocation8 + $0x118] sm:$0xf]
        %v1297 = vld [vmem:[#allocation8 + $0x11c] sm:$0xf]
        %v1298 = vld [vmem:[#allocation8 + $0x120] sm:$0xf]
        %v1299 = vld [vmem:[#allocation8 + $0x124] sm:$0xf]
        %v1300 = vld [vmem:[#allocation8 + $0x128] sm:$0xf]
        %v1301 = vld [vmem:[#allocation8 + $0x12c] sm:$0xf]
        %v1302 = vld [vmem:[#allocation8 + $0x130] sm:$0xf]
        %v1303 = vld [vmem:[#allocation8 + $0x134] sm:$0xf]
        %v1304 = vld [vmem:[#allocation8 + $0x138] sm:$0xf]
        %v1305 = vld [vmem:[#allocation8 + $0x13c] sm:$0xf]
        %v1306 = vld [vmem:[#allocation8 + $0x140] sm:$0xf]
        %v1307 = vld [vmem:[#allocation8 + $0x144] sm:$0xf]
        %v1308 = vld [vmem:[#allocation8 + $0x148] sm:$0xf]
        %v1309 = vld [vmem:[#allocation8 + $0x14c] sm:$0xf]
        %v1310 = vld [vmem:[#allocation8 + $0x150] sm:$0xf]
        %v1311 = vld [vmem:[#allocation8 + $0x154] sm:$0xf]
        %v1312 = vld [vmem:[#allocation8 + $0x158] sm:$0xf]
        %v1313 = vld [vmem:[#allocation8 + $0x15c] sm:$0xf]
        %v1314 = vld [vmem:[#allocation8 + $0x160] sm:$0xf]
        %v1315 = vld [vmem:[#allocation8 + $0x164] sm:$0xf]
        %v1316 = vld [vmem:[#allocation8 + $0x168] sm:$0xf]
        %v1317 = vld [vmem:[#allocation8 + $0x16c] sm:$0xf]
        %v1318 = vld [vmem:[#allocation8 + $0x170] sm:$0xf]
        %v1319 = vld [vmem:[#allocation8 + $0x174] sm:$0xf]
        %v1320 = vld [vmem:[#allocation8 + $0x178] sm:$0xf]
        %v1321 = vld [vmem:[#allocation8 + $0x17c] sm:$0xf]
        %v1322 = vld [vmem:[#allocation8 + $0x180] sm:$0xf]
        %v1323 = vld [vmem:[#allocation8 + $0x184] sm:$0xf]
        %v1324 = vld [vmem:[#allocation8 + $0x188] sm:$0xf]
        %v1325 = vld [vmem:[#allocation8 + $0x18c] sm:$0xf]
        %v1326 = vld [vmem:[#allocation8 + $0x190] sm:$0xf]
        %v1327 = vld [vmem:[#allocation8 + $0x194] sm:$0xf]
        %v1328 = vld [vmem:[#allocation8 + $0x198] sm:$0xf]
        %v1329 = vld [vmem:[#allocation8 + $0x19c] sm:$0xf]
        %v1330 = vld [vmem:[#allocation8 + $0x1a0] sm:$0xf]
        %v1331 = vld [vmem:[#allocation8 + $0x1a4] sm:$0xf]
        %v1332 = vld [vmem:[#allocation8 + $0x1a8] sm:$0xf]
        %v1333 = vld [vmem:[#allocation8 + $0x1ac] sm:$0xf]
        %v1334 = vld [vmem:[#allocation8 + $0x1b0] sm:$0xf]
        %v1335 = vld [vmem:[#allocation8 + $0x1b4] sm:$0xf]
        %v1336 = vld [vmem:[#allocation8 + $0x1b8] sm:$0xf]
        %v1337 = vld [vmem:[#allocation8 + $0x1bc] sm:$0xf]
        %v1338 = vld [vmem:[#allocation8 + $0x1c0] sm:$0xf]
        %v1339 = vld [vmem:[#allocation8 + $0x1c4] sm:$0xf]
        %v1340 = vld [vmem:[#allocation8 + $0x1c8] sm:$0xf]
        %v1341 = vld [vmem:[#allocation8 + $0x1cc] sm:$0xf]
        %v1342 = vld [vmem:[#allocation8 + $0x1d0] sm:$0xf]
        %v1343 = vld [vmem:[#allocation8 + $0x1d4] sm:$0xf]
        %v1344 = vld [vmem:[#allocation8 + $0x1d8] sm:$0xf]
        %v1345 = vld [vmem:[#allocation8 + $0x1dc] sm:$0xf]
        %v1346 = vld [vmem:[#allocation8 + $0x1e0] sm:$0xf]
        %v1347 = vld [vmem:[#allocation8 + $0x1e4] sm:$0xf]
        %v1348 = vld [vmem:[#allocation8 + $0x1e8] sm:$0xf]
        %v1349 = vld [vmem:[#allocation8 + $0x1ec] sm:$0xf]
        %v1350 = vld [vmem:[#allocation8 + $0x1f0] sm:$0xf]
        %v1351 = vld [vmem:[#allocation8 + $0x1f4] sm:$0xf]
        %v1352 = vld [vmem:[#allocation8 + $0x1f8] sm:$0xf]
        %v1353 = vld [vmem:[#allocation8 + $0x1fc] sm:$0xf]
        %v1354 = vld [vmem:[#allocation8 + $0x200] sm:$0xf]
        %v1355 = vld [vmem:[#allocation8 + $0x204] sm:$0xf]
        %v1356 = vld [vmem:[#allocation8 + $0x208] sm:$0xf]
        %v1357 = vld [vmem:[#allocation8 + $0x20c] sm:$0xf]
        %v1358 = vld [vmem:[#allocation8 + $0x210] sm:$0xf]
        %v1359 = vld [vmem:[#allocation8 + $0x214] sm:$0xf]
        %v1360 = vld [vmem:[#allocation8 + $0x218] sm:$0xf]
        %v1361 = vld [vmem:[#allocation8 + $0x21c] sm:$0xf]
        %v1362 = vld [vmem:[#allocation8 + $0x220] sm:$0xf]
        %v1363 = vld [vmem:[#allocation8 + $0x224] sm:$0xf]
        %v1364 = vld [vmem:[#allocation8 + $0x228] sm:$0xf]
        %v1365 = vld [vmem:[#allocation8 + $0x22c] sm:$0xf]
        %v1366 = vld [vmem:[#allocation8 + $0x230] sm:$0xf]
        %v1367 = vld [vmem:[#allocation8 + $0x234] sm:$0xf]
        %v1368 = vld [vmem:[#allocation8 + $0x238] sm:$0xf]
        %v1369 = vld [vmem:[#allocation8 + $0x23c] sm:$0xf]
        %v1450 = vunpack.c.l.b16 %v1146
        %v1451 = vunpack.c.h.b16 %v1146
        %v1452 = vunpack.c.l.b16 %v1147
        %v1453 = vunpack.c.h.b16 %v1147
        %v1454 = vunpack.c.l.b16 %v1148
        %v1455 = vunpack.c.h.b16 %v1148
        %v1456 = vunpack.c.l.b16 %v1149
        %v1457 = vunpack.c.h.b16 %v1149
        %v1458 = vunpack.c.l.b16 %v1150
        %v1459 = vunpack.c.l.b16 %v1151
        %v1460 = vunpack.c.h.b16 %v1151
        %v1461 = vunpack.c.l.b16 %v1152
        %v1462 = vunpack.c.h.b16 %v1152
        %v1463 = vunpack.c.l.b16 %v1153
        %v1464 = vunpack.c.h.b16 %v1153
        %v1465 = vunpack.c.l.b16 %v1154
        %v1466 = vunpack.c.h.b16 %v1154
        %v1467 = vunpack.c.l.b16 %v1155
        %v1468 = vunpack.c.l.b16 %v1156
        %v1469 = vunpack.c.h.b16 %v1156
        %v1470 = vunpack.c.l.b16 %v1157
        %v1471 = vunpack.c.h.b16 %v1157
        %v1472 = vunpack.c.l.b16 %v1158
        %v1473 = vunpack.c.h.b16 %v1158
        %v1474 = vunpack.c.l.b16 %v1159
        %v1475 = vunpack.c.h.b16 %v1159
        %v1476 = vunpack.c.l.b16 %v1160
        %v1477 = vunpack.c.l.b16 %v1161
        %v1478 = vunpack.c.h.b16 %v1161
        %v1479 = vunpack.c.l.b16 %v1162
        %v1480 = vunpack.c.h.b16 %v1162
        %v1481 = vunpack.c.l.b16 %v1163
        %v1482 = vunpack.c.h.b16 %v1163
        %v1483 = vunpack.c.l.b16 %v1164
        %v1484 = vunpack.c.h.b16 %v1164
        %v1485 = vunpack.c.l.b16 %v1165
        %v1486 = vunpack.c.l.b16 %v1166
        %v1487 = vunpack.c.h.b16 %v1166
        %v1488 = vunpack.c.l.b16 %v1167
        %v1489 = vunpack.c.h.b16 %v1167
        %v1490 = vunpack.c.l.b16 %v1168
        %v1491 = vunpack.c.h.b16 %v1168
        %v1492 = vunpack.c.l.b16 %v1169
        %v1493 = vunpack.c.h.b16 %v1169
        %v1494 = vunpack.c.l.b16 %v1170
        %v1495 = vunpack.c.l.b16 %v1171
        %v1496 = vunpack.c.h.b16 %v1171
        %v1497 = vunpack.c.l.b16 %v1172
        %v1498 = vunpack.c.h.b16 %v1172
        %v1499 = vunpack.c.l.b16 %v1173
        %v1500 = vunpack.c.h.b16 %v1173
        %v1501 = vunpack.c.l.b16 %v1174
        %v1502 = vunpack.c.h.b16 %v1174
        %v1503 = vunpack.c.l.b16 %v1175
        %v1504 = vunpack.c.l.b16 %v1176
        %v1505 = vunpack.c.h.b16 %v1176
        %v1506 = vunpack.c.l.b16 %v1177
        %v1507 = vunpack.c.h.b16 %v1177
        %v1508 = vunpack.c.l.b16 %v1178
        %v1509 = vunpack.c.h.b16 %v1178
        %v1510 = vunpack.c.l.b16 %v1179
        %v1511 = vunpack.c.h.b16 %v1179
        %v1512 = vunpack.c.l.b16 %v1180
        %v1513 = vunpack.c.l.b16 %v1181
        %v1514 = vunpack.c.h.b16 %v1181
        %v1515 = vunpack.c.l.b16 %v1182
        %v1516 = vunpack.c.h.b16 %v1182
        %v1517 = vunpack.c.l.b16 %v1183
        %v1518 = vunpack.c.h.b16 %v1183
        %v1519 = vunpack.c.l.b16 %v1184
        %v1520 = vunpack.c.h.b16 %v1184
        %v1521 = vunpack.c.l.b16 %v1185
        %v1522 = vunpack.c.l.b16 %v1186
        %v1523 = vunpack.c.h.b16 %v1186
        %v1524 = vunpack.c.l.b16 %v1187
        %v1525 = vunpack.c.h.b16 %v1187
        %v1526 = vunpack.c.l.b16 %v1188
        %v1527 = vunpack.c.h.b16 %v1188
        %v1528 = vunpack.c.l.b16 %v1189
        %v1529 = vunpack.c.h.b16 %v1189
        %v1530 = vunpack.c.l.b16 %v1190
        %v1531 = vunpack.c.l.b16 %v1191
        %v1532 = vunpack.c.h.b16 %v1191
        %v1533 = vunpack.c.l.b16 %v1192
        %v1534 = vunpack.c.h.b16 %v1192
        %v1535 = vunpack.c.l.b16 %v1193
        %v1536 = vunpack.c.h.b16 %v1193
        %v1537 = vunpack.c.l.b16 %v1194
        %v1538 = vunpack.c.h.b16 %v1194
        %v1539 = vunpack.c.l.b16 %v1195
        %v1540 = vunpack.c.l.b16 %v1196
        %v1541 = vunpack.c.h.b16 %v1196
        %v1542 = vunpack.c.l.b16 %v1197
        %v1543 = vunpack.c.h.b16 %v1197
        %v1544 = vunpack.c.l.b16 %v1198
        %v1545 = vunpack.c.h.b16 %v1198
        %v1546 = vunpack.c.l.b16 %v1199
        %v1547 = vunpack.c.h.b16 %v1199
        %v1548 = vunpack.c.l.b16 %v1200
        %v1549 = vunpack.c.l.b16 %v1201
        %v1550 = vunpack.c.h.b16 %v1201
        %v1551 = vunpack.c.l.b16 %v1202
        %v1552 = vunpack.c.h.b16 %v1202
        %v1553 = vunpack.c.l.b16 %v1203
        %v1554 = vunpack.c.h.b16 %v1203
        %v1555 = vunpack.c.l.b16 %v1204
        %v1556 = vunpack.c.h.b16 %v1204
        %v1557 = vunpack.c.l.b16 %v1205
        %v1558 = vunpack.c.l.b16 %v1206
        %v1559 = vunpack.c.h.b16 %v1206
        %v1560 = vunpack.c.l.b16 %v1207
        %v1561 = vunpack.c.h.b16 %v1207
        %v1562 = vunpack.c.l.b16 %v1208
        %v1563 = vunpack.c.h.b16 %v1208
        %v1564 = vunpack.c.l.b16 %v1209
        %v1565 = vunpack.c.h.b16 %v1209
        %v1566 = vunpack.c.l.b16 %v1210
        %v1567 = vunpack.c.l.b16 %v1211
        %v1568 = vunpack.c.h.b16 %v1211
        %v1569 = vunpack.c.l.b16 %v1212
        %v1570 = vunpack.c.h.b16 %v1212
        %v1571 = vunpack.c.l.b16 %v1213
        %v1572 = vunpack.c.h.b16 %v1213
        %v1573 = vunpack.c.l.b16 %v1214
        %v1574 = vunpack.c.h.b16 %v1214
        %v1575 = vunpack.c.l.b16 %v1215
        %v1576 = vunpack.c.l.b16 %v1216
        %v1577 = vunpack.c.h.b16 %v1216
        %v1578 = vunpack.c.l.b16 %v1217
        %v1579 = vunpack.c.h.b16 %v1217
        %v1580 = vunpack.c.l.b16 %v1218
        %v1581 = vunpack.c.h.b16 %v1218
        %v1582 = vunpack.c.l.b16 %v1219
        %v1583 = vunpack.c.h.b16 %v1219
        %v1584 = vunpack.c.l.b16 %v1220
        %v1585 = vunpack.c.l.b16 %v1221
        %v1586 = vunpack.c.h.b16 %v1221
        %v1587 = vunpack.c.l.b16 %v1222
        %v1588 = vunpack.c.h.b16 %v1222
        %v1589 = vunpack.c.l.b16 %v1223
        %v1590 = vunpack.c.h.b16 %v1223
        %v1591 = vunpack.c.l.b16 %v1224
        %v1592 = vunpack.c.h.b16 %v1224
        %v1593 = vunpack.c.l.b16 %v1225
        %v1594 = vpack.c.b16 %v1459, %v1450
        %v1595 = vpack.c.b16 %v1460, %v1451
        %v1596 = vpack.c.b16 %v1461, %v1452
        %v1597 = vpack.c.b16 %v1462, %v1453
        %v1598 = vpack.c.b16 %v1463, %v1454
        %v1599 = vpack.c.b16 %v1464, %v1455
        %v1600 = vpack.c.b16 %v1465, %v1456
        %v1601 = vpack.c.b16 %v1466, %v1457
        %v1602 = vpack.c.b16 %v1467, %v1458
        %v1603 = vpack.c.b16 %v1477, %v1468
        %v1604 = vpack.c.b16 %v1478, %v1469
        %v1605 = vpack.c.b16 %v1479, %v1470
        %v1606 = vpack.c.b16 %v1480, %v1471
        %v1607 = vpack.c.b16 %v1481, %v1472
        %v1608 = vpack.c.b16 %v1482, %v1473
        %v1609 = vpack.c.b16 %v1483, %v1474
        %v1610 = vpack.c.b16 %v1484, %v1475
        %v1611 = vpack.c.b16 %v1485, %v1476
        %v1612 = vpack.c.b16 %v1495, %v1486
        %v1613 = vpack.c.b16 %v1496, %v1487
        %v1614 = vpack.c.b16 %v1497, %v1488
        %v1615 = vpack.c.b16 %v1498, %v1489
        %v1616 = vpack.c.b16 %v1499, %v1490
        %v1617 = vpack.c.b16 %v1500, %v1491
        %v1618 = vpack.c.b16 %v1501, %v1492
        %v1619 = vpack.c.b16 %v1502, %v1493
        %v1620 = vpack.c.b16 %v1503, %v1494
        %v1621 = vpack.c.b16 %v1513, %v1504
        %v1622 = vpack.c.b16 %v1514, %v1505
        %v1623 = vpack.c.b16 %v1515, %v1506
        %v1624 = vpack.c.b16 %v1516, %v1507
        %v1625 = vpack.c.b16 %v1517, %v1508
        %v1626 = vpack.c.b16 %v1518, %v1509
        %v1627 = vpack.c.b16 %v1519, %v1510
        %v1628 = vpack.c.b16 %v1520, %v1511
        %v1629 = vpack.c.b16 %v1521, %v1512
        %v1630 = vpack.c.b16 %v1531, %v1522
        %v1631 = vpack.c.b16 %v1532, %v1523
        %v1632 = vpack.c.b16 %v1533, %v1524
        %v1633 = vpack.c.b16 %v1534, %v1525
        %v1634 = vpack.c.b16 %v1535, %v1526
        %v1635 = vpack.c.b16 %v1536, %v1527
        %v1636 = vpack.c.b16 %v1537, %v1528
        %v1637 = vpack.c.b16 %v1538, %v1529
        %v1638 = vpack.c.b16 %v1539, %v1530
        %v1639 = vpack.c.b16 %v1549, %v1540
        %v1640 = vpack.c.b16 %v1550, %v1541
        %v1641 = vpack.c.b16 %v1551, %v1542
        %v1642 = vpack.c.b16 %v1552, %v1543
        %v1643 = vpack.c.b16 %v1553, %v1544
        %v1644 = vpack.c.b16 %v1554, %v1545
        %v1645 = vpack.c.b16 %v1555, %v1546
        %v1646 = vpack.c.b16 %v1556, %v1547
        %v1647 = vpack.c.b16 %v1557, %v1548
        %v1648 = vpack.c.b16 %v1567, %v1558
        %v1649 = vpack.c.b16 %v1568, %v1559
        %v1650 = vpack.c.b16 %v1569, %v1560
        %v1651 = vpack.c.b16 %v1570, %v1561
        %v1652 = vpack.c.b16 %v1571, %v1562
        %v1653 = vpack.c.b16 %v1572, %v1563
        %v1654 = vpack.c.b16 %v1573, %v1564
        %v1655 = vpack.c.b16 %v1574, %v1565
        %v1656 = vpack.c.b16 %v1575, %v1566
        %v1657 = vpack.c.b16 %v1585, %v1576
        %v1658 = vpack.c.b16 %v1586, %v1577
        %v1659 = vpack.c.b16 %v1587, %v1578
        %v1660 = vpack.c.b16 %v1588, %v1579
        %v1661 = vpack.c.b16 %v1589, %v1580
        %v1662 = vpack.c.b16 %v1590, %v1581
        %v1663 = vpack.c.b16 %v1591, %v1582
        %v1664 = vpack.c.b16 %v1592, %v1583
        %v1665 = vpack.c.b16 %v1593, %v1584
        %v1882 = vunpack.c.l.b16 %v1226
        %v1883 = vunpack.c.l.b16 %v1227
        %v1884 = vunpack.c.l.b16 %v1228
        %v1885 = vunpack.c.l.b16 %v1229
        %v1886 = vunpack.c.l.b16 %v1230
        %v1887 = vunpack.c.l.b16 %v1231
        %v1888 = vunpack.c.l.b16 %v1232
        %v1889 = vunpack.c.l.b16 %v1233
        %v1890 = vunpack.c.l.b16 %v1234
        %v1891 = vunpack.c.l.b16 %v1235
        %v1892 = vunpack.c.l.b16 %v1236
        %v1893 = vunpack.c.l.b16 %v1237
        %v1894 = vunpack.c.l.b16 %v1238
        %v1895 = vunpack.c.l.b16 %v1239
        %v1896 = vunpack.c.l.b16 %v1240
        %v1897 = vunpack.c.l.b16 %v1241
        %v1898 = vunpack.c.l.b16 %v1242
        %v1899 = vunpack.c.l.b16 %v1243
        %v1900 = vunpack.c.l.b16 %v1244
        %v1901 = vunpack.c.l.b16 %v1245
        %v1902 = vunpack.c.l.b16 %v1246
        %v1903 = vunpack.c.l.b16 %v1247
        %v1904 = vunpack.c.l.b16 %v1248
        %v1905 = vunpack.c.l.b16 %v1249
        %v1906 = vunpack.c.l.b16 %v1250
        %v1907 = vunpack.c.l.b16 %v1251
        %v1908 = vunpack.c.l.b16 %v1252
        %v1909 = vunpack.c.l.b16 %v1253
        %v1910 = vunpack.c.l.b16 %v1254
        %v1911 = vunpack.c.l.b16 %v1255
        %v1912 = vunpack.c.l.b16 %v1256
        %v1913 = vunpack.c.l.b16 %v1257
        %v1914 = vunpack.c.l.b16 %v1258
        %v1915 = vunpack.c.l.b16 %v1259
        %v1916 = vunpack.c.l.b16 %v1260
        %v1917 = vunpack.c.l.b16 %v1261
        %v1918 = vunpack.c.l.b16 %v1262
        %v1919 = vunpack.c.l.b16 %v1263
        %v1920 = vunpack.c.l.b16 %v1264
        %v1921 = vunpack.c.l.b16 %v1265
        %v1922 = vunpack.c.l.b16 %v1266
        %v1923 = vunpack.c.l.b16 %v1267
        %v1924 = vunpack.c.l.b16 %v1268
        %v1925 = vunpack.c.l.b16 %v1269
        %v1926 = vunpack.c.l.b16 %v1270
        %v1927 = vunpack.c.l.b16 %v1271
        %v1928 = vunpack.c.l.b16 %v1272
        %v1929 = vunpack.c.l.b16 %v1273
        %v1930 = vunpack.c.l.b16 %v1274
        %v1931 = vunpack.c.l.b16 %v1275
        %v1932 = vunpack.c.l.b16 %v1276
        %v1933 = vunpack.c.l.b16 %v1277
        %v1934 = vunpack.c.l.b16 %v1278
        %v1935 = vunpack.c.l.b16 %v1279
        %v1936 = vunpack.c.l.b16 %v1280
        %v1937 = vunpack.c.l.b16 %v1281
        %v1938 = vunpack.c.l.b16 %v1282
        %v1939 = vunpack.c.l.b16 %v1283
        %v1940 = vunpack.c.l.b16 %v1284
        %v1941 = vunpack.c.l.b16 %v1285
        %v1942 = vunpack.c.l.b16 %v1286
        %v1943 = vunpack.c.l.b16 %v1287
        %v1944 = vunpack.c.l.b16 %v1288
        %v1945 = vunpack.c.l.b16 %v1289
        %v1946 = vunpack.c.l.b16 %v1290
        %v1947 = vunpack.c.l.b16 %v1291
        %v1948 = vunpack.c.l.b16 %v1292
        %v1949 = vunpack.c.l.b16 %v1293
        %v1950 = vunpack.c.l.b16 %v1294
        %v1951 = vunpack.c.l.b16 %v1295
        %v1952 = vunpack.c.l.b16 %v1296
        %v1953 = vunpack.c.l.b16 %v1297
        %v1954 = vunpack.c.l.b16 %v1298
        %v1955 = vunpack.c.l.b16 %v1299
        %v1956 = vunpack.c.l.b16 %v1300
        %v1957 = vunpack.c.l.b16 %v1301
        %v1958 = vunpack.c.l.b16 %v1302
        %v1959 = vunpack.c.l.b16 %v1303
        %v1960 = vunpack.c.l.b16 %v1304
        %v1961 = vunpack.c.l.b16 %v1305
        %v1962 = vunpack.c.l.b16 %v1306
        %v1963 = vunpack.c.l.b16 %v1307
        %v1964 = vunpack.c.l.b16 %v1308
        %v1965 = vunpack.c.l.b16 %v1309
        %v1966 = vunpack.c.l.b16 %v1310
        %v1967 = vunpack.c.l.b16 %v1311
        %v1968 = vunpack.c.l.b16 %v1312
        %v1969 = vunpack.c.l.b16 %v1313
        %v1970 = vunpack.c.l.b16 %v1314
        %v1971 = vunpack.c.l.b16 %v1315
        %v1972 = vunpack.c.l.b16 %v1316
        %v1973 = vunpack.c.l.b16 %v1317
        %v1974 = vunpack.c.l.b16 %v1318
        %v1975 = vunpack.c.l.b16 %v1319
        %v1976 = vunpack.c.l.b16 %v1320
        %v1977 = vunpack.c.l.b16 %v1321
        %v1978 = vunpack.c.l.b16 %v1322
        %v1979 = vunpack.c.l.b16 %v1323
        %v1980 = vunpack.c.l.b16 %v1324
        %v1981 = vunpack.c.l.b16 %v1325
        %v1982 = vunpack.c.l.b16 %v1326
        %v1983 = vunpack.c.l.b16 %v1327
        %v1984 = vunpack.c.l.b16 %v1328
        %v1985 = vunpack.c.l.b16 %v1329
        %v1986 = vunpack.c.l.b16 %v1330
        %v1987 = vunpack.c.l.b16 %v1331
        %v1988 = vunpack.c.l.b16 %v1332
        %v1989 = vunpack.c.l.b16 %v1333
        %v1990 = vunpack.c.l.b16 %v1334
        %v1991 = vunpack.c.l.b16 %v1335
        %v1992 = vunpack.c.l.b16 %v1336
        %v1993 = vunpack.c.l.b16 %v1337
        %v1994 = vunpack.c.l.b16 %v1338
        %v1995 = vunpack.c.l.b16 %v1339
        %v1996 = vunpack.c.l.b16 %v1340
        %v1997 = vunpack.c.l.b16 %v1341
        %v1998 = vunpack.c.l.b16 %v1342
        %v1999 = vunpack.c.l.b16 %v1343
        %v2000 = vunpack.c.l.b16 %v1344
        %v2001 = vunpack.c.l.b16 %v1345
        %v2002 = vunpack.c.l.b16 %v1346
        %v2003 = vunpack.c.l.b16 %v1347
        %v2004 = vunpack.c.l.b16 %v1348
        %v2005 = vunpack.c.l.b16 %v1349
        %v2006 = vunpack.c.l.b16 %v1350
        %v2007 = vunpack.c.l.b16 %v1351
        %v2008 = vunpack.c.l.b16 %v1352
        %v2009 = vunpack.c.l.b16 %v1353
        %v2010 = vunpack.c.l.b16 %v1354
        %v2011 = vunpack.c.l.b16 %v1355
        %v2012 = vunpack.c.l.b16 %v1356
        %v2013 = vunpack.c.l.b16 %v1357
        %v2014 = vunpack.c.l.b16 %v1358
        %v2015 = vunpack.c.l.b16 %v1359
        %v2016 = vunpack.c.l.b16 %v1360
        %v2017 = vunpack.c.l.b16 %v1361
        %v2018 = vunpack.c.l.b16 %v1362
        %v2019 = vunpack.c.l.b16 %v1363
        %v2020 = vunpack.c.l.b16 %v1364
        %v2021 = vunpack.c.l.b16 %v1365
        %v2022 = vunpack.c.l.b16 %v1366
        %v2023 = vunpack.c.l.b16 %v1367
        %v2024 = vunpack.c.l.b16 %v1368
        %v2025 = vunpack.c.l.b16 %v1369
        %v2026 = vpack.c.b16 %v1883, %v1882
        %v2027 = vpack.c.b16 %v1885, %v1884
        %v2028 = vpack.c.b16 %v1887, %v1886
        %v2029 = vpack.c.b16 %v1889, %v1888
        %v2030 = vpack.c.b16 %v1891, %v1890
        %v2031 = vpack.c.b16 %v1893, %v1892
        %v2032 = vpack.c.b16 %v1895, %v1894
        %v2033 = vpack.c.b16 %v1897, %v1896
        %v2034 = vpack.c.b16 %v1899, %v1898
        %v2035 = vpack.c.b16 %v1901, %v1900
        %v2036 = vpack.c.b16 %v1903, %v1902
        %v2037 = vpack.c.b16 %v1905, %v1904
        %v2038 = vpack.c.b16 %v1907, %v1906
        %v2039 = vpack.c.b16 %v1909, %v1908
        %v2040 = vpack.c.b16 %v1911, %v1910
        %v2041 = vpack.c.b16 %v1913, %v1912
        %v2042 = vpack.c.b16 %v1915, %v1914
        %v2043 = vpack.c.b16 %v1917, %v1916
        %v2044 = vpack.c.b16 %v1919, %v1918
        %v2045 = vpack.c.b16 %v1921, %v1920
        %v2046 = vpack.c.b16 %v1923, %v1922
        %v2047 = vpack.c.b16 %v1925, %v1924
        %v2048 = vpack.c.b16 %v1927, %v1926
        %v2049 = vpack.c.b16 %v1929, %v1928
        %v2050 = vpack.c.b16 %v1931, %v1930
        %v2051 = vpack.c.b16 %v1933, %v1932
        %v2052 = vpack.c.b16 %v1935, %v1934
        %v2053 = vpack.c.b16 %v1937, %v1936
        %v2054 = vpack.c.b16 %v1939, %v1938
        %v2055 = vpack.c.b16 %v1941, %v1940
        %v2056 = vpack.c.b16 %v1943, %v1942
        %v2057 = vpack.c.b16 %v1945, %v1944
        %v2058 = vpack.c.b16 %v1947, %v1946
        %v2059 = vpack.c.b16 %v1949, %v1948
        %v2060 = vpack.c.b16 %v1951, %v1950
        %v2061 = vpack.c.b16 %v1953, %v1952
        %v2062 = vpack.c.b16 %v1955, %v1954
        %v2063 = vpack.c.b16 %v1957, %v1956
        %v2064 = vpack.c.b16 %v1959, %v1958
        %v2065 = vpack.c.b16 %v1961, %v1960
        %v2066 = vpack.c.b16 %v1963, %v1962
        %v2067 = vpack.c.b16 %v1965, %v1964
        %v2068 = vpack.c.b16 %v1967, %v1966
        %v2069 = vpack.c.b16 %v1969, %v1968
        %v2070 = vpack.c.b16 %v1971, %v1970
        %v2071 = vpack.c.b16 %v1973, %v1972
        %v2072 = vpack.c.b16 %v1975, %v1974
        %v2073 = vpack.c.b16 %v1977, %v1976
        %v2074 = vpack.c.b16 %v1979, %v1978
        %v2075 = vpack.c.b16 %v1981, %v1980
        %v2076 = vpack.c.b16 %v1983, %v1982
        %v2077 = vpack.c.b16 %v1985, %v1984
        %v2078 = vpack.c.b16 %v1987, %v1986
        %v2079 = vpack.c.b16 %v1989, %v1988
        %v2080 = vpack.c.b16 %v1991, %v1990
        %v2081 = vpack.c.b16 %v1993, %v1992
        %v2082 = vpack.c.b16 %v1995, %v1994
        %v2083 = vpack.c.b16 %v1997, %v1996
        %v2084 = vpack.c.b16 %v1999, %v1998
        %v2085 = vpack.c.b16 %v2001, %v2000
        %v2086 = vpack.c.b16 %v2003, %v2002
        %v2087 = vpack.c.b16 %v2005, %v2004
        %v2088 = vpack.c.b16 %v2007, %v2006
        %v2089 = vpack.c.b16 %v2009, %v2008
        %v2090 = vpack.c.b16 %v2011, %v2010
        %v2091 = vpack.c.b16 %v2013, %v2012
        %v2092 = vpack.c.b16 %v2015, %v2014
        %v2093 = vpack.c.b16 %v2017, %v2016
        %v2094 = vpack.c.b16 %v2019, %v2018
        %v2095 = vpack.c.b16 %v2021, %v2020
        %v2096 = vpack.c.b16 %v2023, %v2022
        %v2097 = vpack.c.b16 %v2025, %v2024
        %2170 = vmatpush.bf16.msra.mxu0 %v2033
        %2171 = vmatpush.bf16.msra.mxu0 %v2032
        %2172 = vmatpush.bf16.msra.mxu0 %v2031
        %2173 = vmatpush.bf16.msra.mxu0 %v2030
        %2174 = vmatpush.bf16.msra.mxu0 %v2029
        %2175 = vmatpush.bf16.msra.mxu0 %v2028
        %2176 = vmatpush.bf16.msra.mxu0 %v2027
        %2177 = vmatpush.bf16.msra.mxu0 %v2026
        %2178 = vmatmul.bf16.gmra.mxu0 %v1594
        %v2179 = vpop.f32.mrf.mxu0
        %v2180 = vadd.f32 0.0, %v2179
        %v2181 = vpop.f32.mrf.mxu0
        %v2182 = vadd.f32 0.0, %v2181
        %2183 = vmatmul.bf16.gmra.mxu0 %v1603
        %v2184 = vpop.f32.mrf.mxu0
        %v2185 = vadd.f32 0.0, %v2184
        %v2186 = vpop.f32.mrf.mxu0
        %v2187 = vadd.f32 0.0, %v2186
        %2188 = vmatmul.bf16.gmra.mxu0 %v1612
        %v2189 = vpop.f32.mrf.mxu0
        %v2190 = vadd.f32 0.0, %v2189
        %v2191 = vpop.f32.mrf.mxu0
        %v2192 = vadd.f32 0.0, %v2191
        %2193 = vmatmul.bf16.gmra.mxu0 %v1621
        %v2194 = vpop.f32.mrf.mxu0
        %v2195 = vadd.f32 0.0, %v2194
        %v2196 = vpop.f32.mrf.mxu0
        %v2197 = vadd.f32 0.0, %v2196
        %2198 = vmatmul.bf16.gmra.mxu0 %v1630
        %v2199 = vpop.f32.mrf.mxu0
        %v2200 = vadd.f32 0.0, %v2199
        %v2201 = vpop.f32.mrf.mxu0
        %v2202 = vadd.f32 0.0, %v2201
        %2203 = vmatmul.bf16.gmra.mxu0 %v1639
        %v2204 = vpop.f32.mrf.mxu0
        %v2205 = vadd.f32 0.0, %v2204
        %v2206 = vpop.f32.mrf.mxu0
        %v2207 = vadd.f32 0.0, %v2206
        %2208 = vmatmul.bf16.gmra.mxu0 %v1648
        %v2209 = vpop.f32.mrf.mxu0
        %v2210 = vadd.f32 0.0, %v2209
        %v2211 = vpop.f32.mrf.mxu0
        %v2212 = vadd.f32 0.0, %v2211
        %2213 = vmatmul.bf16.gmra.mxu0 %v1657
        %v2214 = vpop.f32.mrf.mxu0
        %v2215 = vadd.f32 0.0, %v2214
        %v2216 = vpop.f32.mrf.mxu0
        %v2217 = vadd.f32 0.0, %v2216
        %2218 = vdwg.mxu0
        %2219 = vmatpush.bf16.msra.mxu0 %v2041
        %2220 = vmatpush.bf16.msra.mxu0 %v2040
        %2221 = vmatpush.bf16.msra.mxu0 %v2039
        %2222 = vmatpush.bf16.msra.mxu0 %v2038
        %2223 = vmatpush.bf16.msra.mxu0 %v2037
        %2224 = vmatpush.bf16.msra.mxu0 %v2036
        %2225 = vmatpush.bf16.msra.mxu0 %v2035
        %2226 = vmatpush.bf16.msra.mxu0 %v2034
        %2227 = vmatmul.bf16.gmra.mxu0 %v1595
        %v2228 = vpop.f32.mrf.mxu0
        %v2229 = vadd.f32 %v2180, %v2228
        %v2230 = vpop.f32.mrf.mxu0
        %v2231 = vadd.f32 %v2182, %v2230
        %2232 = vmatmul.bf16.gmra.mxu0 %v1604
        %v2233 = vpop.f32.mrf.mxu0
        %v2234 = vadd.f32 %v2185, %v2233
        %v2235 = vpop.f32.mrf.mxu0
        %v2236 = vadd.f32 %v2187, %v2235
        %2237 = vmatmul.bf16.gmra.mxu0 %v1613
        %v2238 = vpop.f32.mrf.mxu0
        %v2239 = vadd.f32 %v2190, %v2238
        %v2240 = vpop.f32.mrf.mxu0
        %v2241 = vadd.f32 %v2192, %v2240
        %2242 = vmatmul.bf16.gmra.mxu0 %v1622
        %v2243 = vpop.f32.mrf.mxu0
        %v2244 = vadd.f32 %v2195, %v2243
        %v2245 = vpop.f32.mrf.mxu0
        %v2246 = vadd.f32 %v2197, %v2245
        %2247 = vmatmul.bf16.gmra.mxu0 %v1631
        %v2248 = vpop.f32.mrf.mxu0
        %v2249 = vadd.f32 %v2200, %v2248
        %v2250 = vpop.f32.mrf.mxu0
        %v2251 = vadd.f32 %v2202, %v2250
        %2252 = vmatmul.bf16.gmra.mxu0 %v1640
        %v2253 = vpop.f32.mrf.mxu0
        %v2254 = vadd.f32 %v2205, %v2253
        %v2255 = vpop.f32.mrf.mxu0
        %v2256 = vadd.f32 %v2207, %v2255
        %2257 = vmatmul.bf16.gmra.mxu0 %v1649
        %v2258 = vpop.f32.mrf.mxu0
        %v2259 = vadd.f32 %v2210, %v2258
        %v2260 = vpop.f32.mrf.mxu0
        %v2261 = vadd.f32 %v2212, %v2260
        %2262 = vmatmul.bf16.gmra.mxu0 %v1658
        %v2263 = vpop.f32.mrf.mxu0
        %v2264 = vadd.f32 %v2215, %v2263
        %v2265 = vpop.f32.mrf.mxu0
        %v2266 = vadd.f32 %v2217, %v2265
        %2267 = vdwg.mxu0
        %2268 = vmatpush.bf16.msra.mxu0 %v2049
        %2269 = vmatpush.bf16.msra.mxu0 %v2048
        %2270 = vmatpush.bf16.msra.mxu0 %v2047
        %2271 = vmatpush.bf16.msra.mxu0 %v2046
        %2272 = vmatpush.bf16.msra.mxu0 %v2045
        %2273 = vmatpush.bf16.msra.mxu0 %v2044
        %2274 = vmatpush.bf16.msra.mxu0 %v2043
        %2275 = vmatpush.bf16.msra.mxu0 %v2042
        %2276 = vmatmul.bf16.gmra.mxu0 %v1596
        %v2277 = vpop.f32.mrf.mxu0
        %v2278 = vadd.f32 %v2229, %v2277
        %v2279 = vpop.f32.mrf.mxu0
        %v2280 = vadd.f32 %v2231, %v2279
        %2281 = vmatmul.bf16.gmra.mxu0 %v1605
        %v2282 = vpop.f32.mrf.mxu0
        %v2283 = vadd.f32 %v2234, %v2282
        %v2284 = vpop.f32.mrf.mxu0
        %v2285 = vadd.f32 %v2236, %v2284
        %2286 = vmatmul.bf16.gmra.mxu0 %v1614
        %v2287 = vpop.f32.mrf.mxu0
        %v2288 = vadd.f32 %v2239, %v2287
        %v2289 = vpop.f32.mrf.mxu0
        %v2290 = vadd.f32 %v2241, %v2289
        %2291 = vmatmul.bf16.gmra.mxu0 %v1623
        %v2292 = vpop.f32.mrf.mxu0
        %v2293 = vadd.f32 %v2244, %v2292
        %v2294 = vpop.f32.mrf.mxu0
        %v2295 = vadd.f32 %v2246, %v2294
        %2296 = vmatmul.bf16.gmra.mxu0 %v1632
        %v2297 = vpop.f32.mrf.mxu0
        %v2298 = vadd.f32 %v2249, %v2297
        %v2299 = vpop.f32.mrf.mxu0
        %v2300 = vadd.f32 %v2251, %v2299
        %2301 = vmatmul.bf16.gmra.mxu0 %v1641
        %v2302 = vpop.f32.mrf.mxu0
        %v2303 = vadd.f32 %v2254, %v2302
        %v2304 = vpop.f32.mrf.mxu0
        %v2305 = vadd.f32 %v2256, %v2304
        %2306 = vmatmul.bf16.gmra.mxu0 %v1650
        %v2307 = vpop.f32.mrf.mxu0
        %v2308 = vadd.f32 %v2259, %v2307
        %v2309 = vpop.f32.mrf.mxu0
        %v2310 = vadd.f32 %v2261, %v2309
        %2311 = vmatmul.bf16.gmra.mxu0 %v1659
        %v2312 = vpop.f32.mrf.mxu0
        %v2313 = vadd.f32 %v2264, %v2312
        %v2314 = vpop.f32.mrf.mxu0
        %v2315 = vadd.f32 %v2266, %v2314
        %2316 = vdwg.mxu0
        %2317 = vmatpush.bf16.msra.mxu0 %v2057
        %2318 = vmatpush.bf16.msra.mxu0 %v2056
        %2319 = vmatpush.bf16.msra.mxu0 %v2055
        %2320 = vmatpush.bf16.msra.mxu0 %v2054
        %2321 = vmatpush.bf16.msra.mxu0 %v2053
        %2322 = vmatpush.bf16.msra.mxu0 %v2052
        %2323 = vmatpush.bf16.msra.mxu0 %v2051
        %2324 = vmatpush.bf16.msra.mxu0 %v2050
        %2325 = vmatmul.bf16.gmra.mxu0 %v1597
        %v2326 = vpop.f32.mrf.mxu0
        %v2327 = vadd.f32 %v2278, %v2326
        %v2328 = vpop.f32.mrf.mxu0
        %v2329 = vadd.f32 %v2280, %v2328
        %2330 = vmatmul.bf16.gmra.mxu0 %v1606
        %v2331 = vpop.f32.mrf.mxu0
        %v2332 = vadd.f32 %v2283, %v2331
        %v2333 = vpop.f32.mrf.mxu0
        %v2334 = vadd.f32 %v2285, %v2333
        %2335 = vmatmul.bf16.gmra.mxu0 %v1615
        %v2336 = vpop.f32.mrf.mxu0
        %v2337 = vadd.f32 %v2288, %v2336
        %v2338 = vpop.f32.mrf.mxu0
        %v2339 = vadd.f32 %v2290, %v2338
        %2340 = vmatmul.bf16.gmra.mxu0 %v1624
        %v2341 = vpop.f32.mrf.mxu0
        %v2342 = vadd.f32 %v2293, %v2341
        %v2343 = vpop.f32.mrf.mxu0
        %v2344 = vadd.f32 %v2295, %v2343
        %2345 = vmatmul.bf16.gmra.mxu0 %v1633
        %v2346 = vpop.f32.mrf.mxu0
        %v2347 = vadd.f32 %v2298, %v2346
        %v2348 = vpop.f32.mrf.mxu0
        %v2349 = vadd.f32 %v2300, %v2348
        %2350 = vmatmul.bf16.gmra.mxu0 %v1642
        %v2351 = vpop.f32.mrf.mxu0
        %v2352 = vadd.f32 %v2303, %v2351
        %v2353 = vpop.f32.mrf.mxu0
        %v2354 = vadd.f32 %v2305, %v2353
        %2355 = vmatmul.bf16.gmra.mxu0 %v1651
        %v2356 = vpop.f32.mrf.mxu0
        %v2357 = vadd.f32 %v2308, %v2356
        %v2358 = vpop.f32.mrf.mxu0
        %v2359 = vadd.f32 %v2310, %v2358
        %2360 = vmatmul.bf16.gmra.mxu0 %v1660
        %v2361 = vpop.f32.mrf.mxu0
        %v2362 = vadd.f32 %v2313, %v2361
        %v2363 = vpop.f32.mrf.mxu0
        %v2364 = vadd.f32 %v2315, %v2363
        %2365 = vdwg.mxu0
        %2366 = vmatpush.bf16.msra.mxu0 %v2065
        %2367 = vmatpush.bf16.msra.mxu0 %v2064
        %2368 = vmatpush.bf16.msra.mxu0 %v2063
        %2369 = vmatpush.bf16.msra.mxu0 %v2062
        %2370 = vmatpush.bf16.msra.mxu0 %v2061
        %2371 = vmatpush.bf16.msra.mxu0 %v2060
        %2372 = vmatpush.bf16.msra.mxu0 %v2059
        %2373 = vmatpush.bf16.msra.mxu0 %v2058
        %2374 = vmatmul.bf16.gmra.mxu0 %v1598
        %v2375 = vpop.f32.mrf.mxu0
        %v2376 = vadd.f32 %v2327, %v2375
        %v2377 = vpop.f32.mrf.mxu0
        %v2378 = vadd.f32 %v2329, %v2377
        %2379 = vmatmul.bf16.gmra.mxu0 %v1607
        %v2380 = vpop.f32.mrf.mxu0
        %v2381 = vadd.f32 %v2332, %v2380
        %v2382 = vpop.f32.mrf.mxu0
        %v2383 = vadd.f32 %v2334, %v2382
        %2384 = vmatmul.bf16.gmra.mxu0 %v1616
        %v2385 = vpop.f32.mrf.mxu0
        %v2386 = vadd.f32 %v2337, %v2385
        %v2387 = vpop.f32.mrf.mxu0
        %v2388 = vadd.f32 %v2339, %v2387
        %2389 = vmatmul.bf16.gmra.mxu0 %v1625
        %v2390 = vpop.f32.mrf.mxu0
        %v2391 = vadd.f32 %v2342, %v2390
        %v2392 = vpop.f32.mrf.mxu0
        %v2393 = vadd.f32 %v2344, %v2392
        %2394 = vmatmul.bf16.gmra.mxu0 %v1634
        %v2395 = vpop.f32.mrf.mxu0
        %v2396 = vadd.f32 %v2347, %v2395
        %v2397 = vpop.f32.mrf.mxu0
        %v2398 = vadd.f32 %v2349, %v2397
        %2399 = vmatmul.bf16.gmra.mxu0 %v1643
        %v2400 = vpop.f32.mrf.mxu0
        %v2401 = vadd.f32 %v2352, %v2400
        %v2402 = vpop.f32.mrf.mxu0
        %v2403 = vadd.f32 %v2354, %v2402
        %2404 = vmatmul.bf16.gmra.mxu0 %v1652
        %v2405 = vpop.f32.mrf.mxu0
        %v2406 = vadd.f32 %v2357, %v2405
        %v2407 = vpop.f32.mrf.mxu0
        %v2408 = vadd.f32 %v2359, %v2407
        %2409 = vmatmul.bf16.gmra.mxu0 %v1661
        %v2410 = vpop.f32.mrf.mxu0
        %v2411 = vadd.f32 %v2362, %v2410
        %v2412 = vpop.f32.mrf.mxu0
        %v2413 = vadd.f32 %v2364, %v2412
        %2414 = vdwg.mxu0
        %2415 = vmatpush.bf16.msra.mxu0 %v2073
        %2416 = vmatpush.bf16.msra.mxu0 %v2072
        %2417 = vmatpush.bf16.msra.mxu0 %v2071
        %2418 = vmatpush.bf16.msra.mxu0 %v2070
        %2419 = vmatpush.bf16.msra.mxu0 %v2069
        %2420 = vmatpush.bf16.msra.mxu0 %v2068
        %2421 = vmatpush.bf16.msra.mxu0 %v2067
        %2422 = vmatpush.bf16.msra.mxu0 %v2066
        %2423 = vmatmul.bf16.gmra.mxu0 %v1599
        %v2424 = vpop.f32.mrf.mxu0
        %v2425 = vadd.f32 %v2376, %v2424
        %v2426 = vpop.f32.mrf.mxu0
        %v2427 = vadd.f32 %v2378, %v2426
        %2428 = vmatmul.bf16.gmra.mxu0 %v1608
        %v2429 = vpop.f32.mrf.mxu0
        %v2430 = vadd.f32 %v2381, %v2429
        %v2431 = vpop.f32.mrf.mxu0
        %v2432 = vadd.f32 %v2383, %v2431
        %2433 = vmatmul.bf16.gmra.mxu0 %v1617
        %v2434 = vpop.f32.mrf.mxu0
        %v2435 = vadd.f32 %v2386, %v2434
        %v2436 = vpop.f32.mrf.mxu0
        %v2437 = vadd.f32 %v2388, %v2436
        %2438 = vmatmul.bf16.gmra.mxu0 %v1626
        %v2439 = vpop.f32.mrf.mxu0
        %v2440 = vadd.f32 %v2391, %v2439
        %v2441 = vpop.f32.mrf.mxu0
        %v2442 = vadd.f32 %v2393, %v2441
        %2443 = vmatmul.bf16.gmra.mxu0 %v1635
        %v2444 = vpop.f32.mrf.mxu0
        %v2445 = vadd.f32 %v2396, %v2444
        %v2446 = vpop.f32.mrf.mxu0
        %v2447 = vadd.f32 %v2398, %v2446
        %2448 = vmatmul.bf16.gmra.mxu0 %v1644
        %v2449 = vpop.f32.mrf.mxu0
        %v2450 = vadd.f32 %v2401, %v2449
        %v2451 = vpop.f32.mrf.mxu0
        %v2452 = vadd.f32 %v2403, %v2451
        %2453 = vmatmul.bf16.gmra.mxu0 %v1653
        %v2454 = vpop.f32.mrf.mxu0
        %v2455 = vadd.f32 %v2406, %v2454
        %v2456 = vpop.f32.mrf.mxu0
        %v2457 = vadd.f32 %v2408, %v2456
        %2458 = vmatmul.bf16.gmra.mxu0 %v1662
        %v2459 = vpop.f32.mrf.mxu0
        %v2460 = vadd.f32 %v2411, %v2459
        %v2461 = vpop.f32.mrf.mxu0
        %v2462 = vadd.f32 %v2413, %v2461
        %2463 = vdwg.mxu0
        %2464 = vmatpush.bf16.msra.mxu0 %v2081
        %2465 = vmatpush.bf16.msra.mxu0 %v2080
        %2466 = vmatpush.bf16.msra.mxu0 %v2079
        %2467 = vmatpush.bf16.msra.mxu0 %v2078
        %2468 = vmatpush.bf16.msra.mxu0 %v2077
        %2469 = vmatpush.bf16.msra.mxu0 %v2076
        %2470 = vmatpush.bf16.msra.mxu0 %v2075
        %2471 = vmatpush.bf16.msra.mxu0 %v2074
        %2472 = vmatmul.bf16.gmra.mxu0 %v1600
        %v2473 = vpop.f32.mrf.mxu0
        %v2474 = vadd.f32 %v2425, %v2473
        %v2475 = vpop.f32.mrf.mxu0
        %v2476 = vadd.f32 %v2427, %v2475
        %2477 = vmatmul.bf16.gmra.mxu0 %v1609
        %v2478 = vpop.f32.mrf.mxu0
        %v2479 = vadd.f32 %v2430, %v2478
        %v2480 = vpop.f32.mrf.mxu0
        %v2481 = vadd.f32 %v2432, %v2480
        %2482 = vmatmul.bf16.gmra.mxu0 %v1618
        %v2483 = vpop.f32.mrf.mxu0
        %v2484 = vadd.f32 %v2435, %v2483
        %v2485 = vpop.f32.mrf.mxu0
        %v2486 = vadd.f32 %v2437, %v2485
        %2487 = vmatmul.bf16.gmra.mxu0 %v1627
        %v2488 = vpop.f32.mrf.mxu0
        %v2489 = vadd.f32 %v2440, %v2488
        %v2490 = vpop.f32.mrf.mxu0
        %v2491 = vadd.f32 %v2442, %v2490
        %2492 = vmatmul.bf16.gmra.mxu0 %v1636
        %v2493 = vpop.f32.mrf.mxu0
        %v2494 = vadd.f32 %v2445, %v2493
        %v2495 = vpop.f32.mrf.mxu0
        %v2496 = vadd.f32 %v2447, %v2495
        %2497 = vmatmul.bf16.gmra.mxu0 %v1645
        %v2498 = vpop.f32.mrf.mxu0
        %v2499 = vadd.f32 %v2450, %v2498
        %v2500 = vpop.f32.mrf.mxu0
        %v2501 = vadd.f32 %v2452, %v2500
        %2502 = vmatmul.bf16.gmra.mxu0 %v1654
        %v2503 = vpop.f32.mrf.mxu0
        %v2504 = vadd.f32 %v2455, %v2503
        %v2505 = vpop.f32.mrf.mxu0
        %v2506 = vadd.f32 %v2457, %v2505
        %2507 = vmatmul.bf16.gmra.mxu0 %v1663
        %v2508 = vpop.f32.mrf.mxu0
        %v2509 = vadd.f32 %v2460, %v2508
        %v2510 = vpop.f32.mrf.mxu0
        %v2511 = vadd.f32 %v2462, %v2510
        %2512 = vdwg.mxu0
        %2513 = vmatpush.bf16.msra.mxu0 %v2089
        %2514 = vmatpush.bf16.msra.mxu0 %v2088
        %2515 = vmatpush.bf16.msra.mxu0 %v2087
        %2516 = vmatpush.bf16.msra.mxu0 %v2086
        %2517 = vmatpush.bf16.msra.mxu0 %v2085
        %2518 = vmatpush.bf16.msra.mxu0 %v2084
        %2519 = vmatpush.bf16.msra.mxu0 %v2083
        %2520 = vmatpush.bf16.msra.mxu0 %v2082
        %2521 = vmatmul.bf16.gmra.mxu0 %v1601
        %v2522 = vpop.f32.mrf.mxu0
        %v2523 = vadd.f32 %v2474, %v2522
        %v2524 = vpop.f32.mrf.mxu0
        %v2525 = vadd.f32 %v2476, %v2524
        %2526 = vmatmul.bf16.gmra.mxu0 %v1610
        %v2527 = vpop.f32.mrf.mxu0
        %v2528 = vadd.f32 %v2479, %v2527
        %v2529 = vpop.f32.mrf.mxu0
        %v2530 = vadd.f32 %v2481, %v2529
        %2531 = vmatmul.bf16.gmra.mxu0 %v1619
        %v2532 = vpop.f32.mrf.mxu0
        %v2533 = vadd.f32 %v2484, %v2532
        %v2534 = vpop.f32.mrf.mxu0
        %v2535 = vadd.f32 %v2486, %v2534
        %2536 = vmatmul.bf16.gmra.mxu0 %v1628
        %v2537 = vpop.f32.mrf.mxu0
        %v2538 = vadd.f32 %v2489, %v2537
        %v2539 = vpop.f32.mrf.mxu0
        %v2540 = vadd.f32 %v2491, %v2539
        %2541 = vmatmul.bf16.gmra.mxu0 %v1637
        %v2542 = vpop.f32.mrf.mxu0
        %v2543 = vadd.f32 %v2494, %v2542
        %v2544 = vpop.f32.mrf.mxu0
        %v2545 = vadd.f32 %v2496, %v2544
        %2546 = vmatmul.bf16.gmra.mxu0 %v1646
        %v2547 = vpop.f32.mrf.mxu0
        %v2548 = vadd.f32 %v2499, %v2547
        %v2549 = vpop.f32.mrf.mxu0
        %v2550 = vadd.f32 %v2501, %v2549
        %2551 = vmatmul.bf16.gmra.mxu0 %v1655
        %v2552 = vpop.f32.mrf.mxu0
        %v2553 = vadd.f32 %v2504, %v2552
        %v2554 = vpop.f32.mrf.mxu0
        %v2555 = vadd.f32 %v2506, %v2554
        %2556 = vmatmul.bf16.gmra.mxu0 %v1664
        %v2557 = vpop.f32.mrf.mxu0
        %v2558 = vadd.f32 %v2509, %v2557
        %v2559 = vpop.f32.mrf.mxu0
        %v2560 = vadd.f32 %v2511, %v2559
        %2561 = vdwg.mxu0
        %2562 = vmatpush.bf16.msra.mxu0 %v2097
        %2563 = vmatpush.bf16.msra.mxu0 %v2096
        %2564 = vmatpush.bf16.msra.mxu0 %v2095
        %2565 = vmatpush.bf16.msra.mxu0 %v2094
        %2566 = vmatpush.bf16.msra.mxu0 %v2093
        %2567 = vmatpush.bf16.msra.mxu0 %v2092
        %2568 = vmatpush.bf16.msra.mxu0 %v2091
        %2569 = vmatpush.bf16.msra.mxu0 %v2090
        %2570 = vmatmul.bf16.gmra.mxu0 %v1602
        %v2571 = vpop.f32.mrf.mxu0
        %v2572 = vadd.f32 %v2523, %v2571
        %v2573 = vpop.f32.mrf.mxu0
        %v2574 = vadd.f32 %v2525, %v2573
        %2575 = vmatmul.bf16.gmra.mxu0 %v1611
        %v2576 = vpop.f32.mrf.mxu0
        %v2577 = vadd.f32 %v2528, %v2576
        %v2578 = vpop.f32.mrf.mxu0
        %v2579 = vadd.f32 %v2530, %v2578
        %2580 = vmatmul.bf16.gmra.mxu0 %v1620
        %v2581 = vpop.f32.mrf.mxu0
        %v2582 = vadd.f32 %v2533, %v2581
        %v2583 = vpop.f32.mrf.mxu0
        %v2584 = vadd.f32 %v2535, %v2583
        %2585 = vmatmul.bf16.gmra.mxu0 %v1629
        %v2586 = vpop.f32.mrf.mxu0
        %v2587 = vadd.f32 %v2538, %v2586
        %v2588 = vpop.f32.mrf.mxu0
        %v2589 = vadd.f32 %v2540, %v2588
        %2590 = vmatmul.bf16.gmra.mxu0 %v1638
        %v2591 = vpop.f32.mrf.mxu0
        %v2592 = vadd.f32 %v2543, %v2591
        %v2593 = vpop.f32.mrf.mxu0
        %v2594 = vadd.f32 %v2545, %v2593
        %2595 = vmatmul.bf16.gmra.mxu0 %v1647
        %v2596 = vpop.f32.mrf.mxu0
        %v2597 = vadd.f32 %v2548, %v2596
        %v2598 = vpop.f32.mrf.mxu0
        %v2599 = vadd.f32 %v2550, %v2598
        %2600 = vmatmul.bf16.gmra.mxu0 %v1656
        %v2601 = vpop.f32.mrf.mxu0
        %v2602 = vadd.f32 %v2553, %v2601
        %v2603 = vpop.f32.mrf.mxu0
        %v2604 = vadd.f32 %v2555, %v2603
        %2605 = vmatmul.bf16.gmra.mxu0 %v1665
        %v2606 = vpop.f32.mrf.mxu0
        %v2607 = vadd.f32 %v2558, %v2606
        %v2608 = vpop.f32.mrf.mxu0
        %v2609 = vadd.f32 %v2560, %v2608
        %2610 = vdwg.mxu0
        %v2612 = vperm.slane %v448, 0
        %v2614 = vmul.f32 %v2572, %v2612
        %v2615 = vmul.f32 %v2574, %v2612
        %v2616 = vmul.f32 %v2577, %v2612
        %v2617 = vmul.f32 %v2579, %v2612
        %v2618 = vmul.f32 %v2582, %v2612
        %v2619 = vmul.f32 %v2584, %v2612
        %v2620 = vmul.f32 %v2587, %v2612
        %v2621 = vmul.f32 %v2589, %v2612
        %v2622 = vmul.f32 %v2592, %v2612
        %v2623 = vmul.f32 %v2594, %v2612
        %v2624 = vmul.f32 %v2597, %v2612
        %v2625 = vmul.f32 %v2599, %v2612
        %v2626 = vmul.f32 %v2602, %v2612
        %v2627 = vmul.f32 %v2604, %v2612
        %v2628 = vmul.f32 %v2607, %v2612
        %v2629 = vmul.f32 %v2609, %v2612
        %v2631 = vperm.slane %v449, 0
        %v2633 = vadd.f32 %v2614, %v2631
        %v2634 = vadd.f32 %v2615, %v2631
        %v2635 = vadd.f32 %v2616, %v2631
        %v2636 = vadd.f32 %v2617, %v2631
        %v2637 = vadd.f32 %v2618, %v2631
        %v2638 = vadd.f32 %v2619, %v2631
        %v2639 = vadd.f32 %v2620, %v2631
        %v2640 = vadd.f32 %v2621, %v2631
        %v2641 = vadd.f32 %v2622, %v2631
        %v2642 = vadd.f32 %v2623, %v2631
        %v2643 = vadd.f32 %v2624, %v2631
        %v2644 = vadd.f32 %v2625, %v2631
        %v2645 = vadd.f32 %v2626, %v2631
        %v2646 = vadd.f32 %v2627, %v2631
        %v2647 = vadd.f32 %v2628, %v2631
        %v2648 = vadd.f32 %v2629, %v2631
        %v2649 = vmax.f32 %v2633, 0.0
        %v2650 = vmax.f32 %v2634, 0.0
        %v2651 = vmax.f32 %v2635, 0.0
        %v2652 = vmax.f32 %v2636, 0.0
        %v2653 = vmax.f32 %v2637, 0.0
        %v2654 = vmax.f32 %v2638, 0.0
        %v2655 = vmax.f32 %v2639, 0.0
        %v2656 = vmax.f32 %v2640, 0.0
        %v2657 = vmax.f32 %v2641, 0.0
        %v2658 = vmax.f32 %v2642, 0.0
        %v2659 = vmax.f32 %v2643, 0.0
        %v2660 = vmax.f32 %v2644, 0.0
        %v2661 = vmax.f32 %v2645, 0.0
        %v2662 = vmax.f32 %v2646, 0.0
        %v2663 = vmax.f32 %v2647, 0.0
        %v2664 = vmax.f32 %v2648, 0.0
        %v2665 = vpack.c.bf16 %v2650, %v2649
        %v2666 = vpack.c.bf16 %v2652, %v2651
        %v2667 = vpack.c.bf16 %v2654, %v2653
        %v2668 = vpack.c.bf16 %v2656, %v2655
        %v2669 = vpack.c.bf16 %v2658, %v2657
        %v2670 = vpack.c.bf16 %v2660, %v2659
        %v2671 = vpack.c.bf16 %v2662, %v2661
        %v2672 = vpack.c.bf16 %v2664, %v2663
        %v2673 = vld [vmem:[#allocation9] sm:$0xf]
        %v2674 = vld [vmem:[#allocation9 + $0x4] sm:$0xf]
        %v2675 = vld [vmem:[#allocation9 + $0x8] sm:$0xf]
        %v2676 = vld [vmem:[#allocation9 + $0xc] sm:$0xf]
        %v2677 = vld [vmem:[#allocation9 + $0x10] sm:$0xf]
        %v2678 = vld [vmem:[#allocation9 + $0x14] sm:$0xf]
        %v2679 = vld [vmem:[#allocation9 + $0x18] sm:$0xf]
        %v2680 = vld [vmem:[#allocation9 + $0x1c] sm:$0xf]
        %v2681 = vld [vmem:[#allocation9 + $0x20] sm:$0xf]
        %v2682 = vld [vmem:[#allocation9 + $0x24] sm:$0xf]
        %v2683 = vld [vmem:[#allocation9 + $0x28] sm:$0xf]
        %v2684 = vld [vmem:[#allocation9 + $0x2c] sm:$0xf]
        %v2685 = vld [vmem:[#allocation9 + $0x30] sm:$0xf]
        %v2686 = vld [vmem:[#allocation9 + $0x34] sm:$0xf]
        %v2687 = vld [vmem:[#allocation9 + $0x38] sm:$0xf]
        %v2688 = vld [vmem:[#allocation9 + $0x3c] sm:$0xf]
        %v2705 = vunpack.c.l.b16 %v2673
        %v2706 = vunpack.c.l.b16 %v2674
        %v2707 = vunpack.c.l.b16 %v2675
        %v2708 = vunpack.c.l.b16 %v2676
        %v2709 = vunpack.c.l.b16 %v2677
        %v2710 = vunpack.c.l.b16 %v2678
        %v2711 = vunpack.c.l.b16 %v2679
        %v2712 = vunpack.c.l.b16 %v2680
        %v2713 = vunpack.c.l.b16 %v2681
        %v2714 = vunpack.c.l.b16 %v2682
        %v2715 = vunpack.c.l.b16 %v2683
        %v2716 = vunpack.c.l.b16 %v2684
        %v2717 = vunpack.c.l.b16 %v2685
        %v2718 = vunpack.c.l.b16 %v2686
        %v2719 = vunpack.c.l.b16 %v2687
        %v2720 = vunpack.c.l.b16 %v2688
        %v2721 = vpack.c.b16 %v2706, %v2705
        %v2722 = vpack.c.b16 %v2708, %v2707
        %v2723 = vpack.c.b16 %v2710, %v2709
        %v2724 = vpack.c.b16 %v2712, %v2711
        %v2725 = vpack.c.b16 %v2714, %v2713
        %v2726 = vpack.c.b16 %v2716, %v2715
        %v2727 = vpack.c.b16 %v2718, %v2717
        %v2728 = vpack.c.b16 %v2720, %v2719
        %2737 = vmatpush.bf16.msra.mxu0 %v2728
        %2738 = vmatpush.bf16.msra.mxu0 %v2727
        %2739 = vmatpush.bf16.msra.mxu0 %v2726
        %2740 = vmatpush.bf16.msra.mxu0 %v2725
        %2741 = vmatpush.bf16.msra.mxu0 %v2724
        %2742 = vmatpush.bf16.msra.mxu0 %v2723
        %2743 = vmatpush.bf16.msra.mxu0 %v2722
        %2744 = vmatpush.bf16.msra.mxu0 %v2721
        %2745 = vmatmul.bf16.gmra.mxu0 %v2665
        %v2746 = vpop.f32.mrf.mxu0
        %v2747 = vadd.f32 0.0, %v2746
        %v2748 = vpop.f32.mrf.mxu0
        %v2749 = vadd.f32 0.0, %v2748
        %2750 = vmatmul.bf16.gmra.mxu0 %v2666
        %v2751 = vpop.f32.mrf.mxu0
        %v2752 = vadd.f32 0.0, %v2751
        %v2753 = vpop.f32.mrf.mxu0
        %v2754 = vadd.f32 0.0, %v2753
        %2755 = vmatmul.bf16.gmra.mxu0 %v2667
        %v2756 = vpop.f32.mrf.mxu0
        %v2757 = vadd.f32 0.0, %v2756
        %v2758 = vpop.f32.mrf.mxu0
        %v2759 = vadd.f32 0.0, %v2758
        %2760 = vmatmul.bf16.gmra.mxu0 %v2668
        %v2761 = vpop.f32.mrf.mxu0
        %v2762 = vadd.f32 0.0, %v2761
        %v2763 = vpop.f32.mrf.mxu0
        %v2764 = vadd.f32 0.0, %v2763
        %2765 = vmatmul.bf16.gmra.mxu0 %v2669
        %v2766 = vpop.f32.mrf.mxu0
        %v2767 = vadd.f32 0.0, %v2766
        %v2768 = vpop.f32.mrf.mxu0
        %v2769 = vadd.f32 0.0, %v2768
        %2770 = vmatmul.bf16.gmra.mxu0 %v2670
        %v2771 = vpop.f32.mrf.mxu0
        %v2772 = vadd.f32 0.0, %v2771
        %v2773 = vpop.f32.mrf.mxu0
        %v2774 = vadd.f32 0.0, %v2773
        %2775 = vmatmul.bf16.gmra.mxu0 %v2671
        %v2776 = vpop.f32.mrf.mxu0
        %v2777 = vadd.f32 0.0, %v2776
        %v2778 = vpop.f32.mrf.mxu0
        %v2779 = vadd.f32 0.0, %v2778
        %2780 = vmatmul.bf16.gmra.mxu0 %v2672
        %v2781 = vpop.f32.mrf.mxu0
        %v2782 = vadd.f32 0.0, %v2781
        %v2783 = vpop.f32.mrf.mxu0
        %v2784 = vadd.f32 0.0, %v2783
        %2785 = vdwg.mxu0
        %v2787 = vperm.slane %v450, 0
        %v2789 = vmul.f32 %v2747, %v2787
        %v2790 = vmul.f32 %v2749, %v2787
        %v2791 = vmul.f32 %v2752, %v2787
        %v2792 = vmul.f32 %v2754, %v2787
        %v2793 = vmul.f32 %v2757, %v2787
        %v2794 = vmul.f32 %v2759, %v2787
        %v2795 = vmul.f32 %v2762, %v2787
        %v2796 = vmul.f32 %v2764, %v2787
        %v2797 = vmul.f32 %v2767, %v2787
        %v2798 = vmul.f32 %v2769, %v2787
        %v2799 = vmul.f32 %v2772, %v2787
        %v2800 = vmul.f32 %v2774, %v2787
        %v2801 = vmul.f32 %v2777, %v2787
        %v2802 = vmul.f32 %v2779, %v2787
        %v2803 = vmul.f32 %v2782, %v2787
        %v2804 = vmul.f32 %v2784, %v2787
        %v2806 = vperm.slane %v451, 0
        %v2808 = vadd.f32 %v2789, %v2806
        %v2809 = vadd.f32 %v2790, %v2806
        %v2810 = vadd.f32 %v2791, %v2806
        %v2811 = vadd.f32 %v2792, %v2806
        %v2812 = vadd.f32 %v2793, %v2806
        %v2813 = vadd.f32 %v2794, %v2806
        %v2814 = vadd.f32 %v2795, %v2806
        %v2815 = vadd.f32 %v2796, %v2806
        %v2816 = vadd.f32 %v2797, %v2806
        %v2817 = vadd.f32 %v2798, %v2806
        %v2818 = vadd.f32 %v2799, %v2806
        %v2819 = vadd.f32 %v2800, %v2806
        %v2820 = vadd.f32 %v2801, %v2806
        %v2821 = vadd.f32 %v2802, %v2806
        %v2822 = vadd.f32 %v2803, %v2806
        %v2823 = vadd.f32 %v2804, %v2806
        %s2824 = sadd.s32 %s445, 1
        %s2825 = smul.u32 %s2824, 2
        %s2826 = smul.addr %s2825, 4
        %s2827 = scalar_lea.vmem %s391, %s2826 [#allocation3]
        %v2828 = vld [vmem:[%s2827] sm:$0xf]
        %v2829 = vld [vmem:[%s2827 + $0x4] sm:$0xf]
        %v2830 = vld [vmem:[%s2827 + $0x8] sm:$0xf]
        %v2831 = vld [vmem:[%s2827 + $0xc] sm:$0xf]
        %v2832 = vld [vmem:[%s2827 + $0x10] sm:$0xf]
        %v2833 = vld [vmem:[%s2827 + $0x14] sm:$0xf]
        %v2834 = vld [vmem:[%s2827 + $0x18] sm:$0xf]
        %v2835 = vld [vmem:[%s2827 + $0x1c] sm:$0xf]
        %v2836 = vld [vmem:[%s2827 + $0x20] sm:$0xf]
        %v2837 = vld [vmem:[%s2827 + $0x24] sm:$0xf]
        %v2838 = vld [vmem:[%s2827 + $0x28] sm:$0xf]
        %v2839 = vld [vmem:[%s2827 + $0x2c] sm:$0xf]
        %v2840 = vld [vmem:[%s2827 + $0x30] sm:$0xf]
        %v2841 = vld [vmem:[%s2827 + $0x34] sm:$0xf]
        %v2842 = vld [vmem:[%s2827 + $0x38] sm:$0xf]
        %v2843 = vld [vmem:[%s2827 + $0x3c] sm:$0xf]
        %v2844 = vunpack.c.l.bf16 %v2828
        %v2845 = vunpack.c.l.bf16 %v2829
        %v2846 = vunpack.c.l.bf16 %v2830
        %v2847 = vunpack.c.l.bf16 %v2831
        %v2848 = vunpack.c.l.bf16 %v2832
        %v2849 = vunpack.c.l.bf16 %v2833
        %v2850 = vunpack.c.l.bf16 %v2834
        %v2851 = vunpack.c.l.bf16 %v2835
        %v2852 = vunpack.c.l.bf16 %v2836
        %v2853 = vunpack.c.l.bf16 %v2837
        %v2854 = vunpack.c.l.bf16 %v2838
        %v2855 = vunpack.c.l.bf16 %v2839
        %v2856 = vunpack.c.l.bf16 %v2840
        %v2857 = vunpack.c.l.bf16 %v2841
        %v2858 = vunpack.c.l.bf16 %v2842
        %v2859 = vunpack.c.l.bf16 %v2843
        %v2860 = vadd.f32 %v2808, %v2844
        %v2861 = vadd.f32 %v2809, %v2845
        %v2862 = vadd.f32 %v2810, %v2846
        %v2863 = vadd.f32 %v2811, %v2847
        %v2864 = vadd.f32 %v2812, %v2848
        %v2865 = vadd.f32 %v2813, %v2849
        %v2866 = vadd.f32 %v2814, %v2850
        %v2867 = vadd.f32 %v2815, %v2851
        %v2868 = vadd.f32 %v2816, %v2852
        %v2869 = vadd.f32 %v2817, %v2853
        %v2870 = vadd.f32 %v2818, %v2854
        %v2871 = vadd.f32 %v2819, %v2855
        %v2872 = vadd.f32 %v2820, %v2856
        %v2873 = vadd.f32 %v2821, %v2857
        %v2874 = vadd.f32 %v2822, %v2858
        %v2875 = vadd.f32 %v2823, %v2859
        %v2876 = vmax.f32 %v2860, 0.0
        %v2877 = vmax.f32 %v2861, 0.0
        %v2878 = vmax.f32 %v2862, 0.0
        %v2879 = vmax.f32 %v2863, 0.0
        %v2880 = vmax.f32 %v2864, 0.0
        %v2881 = vmax.f32 %v2865, 0.0
        %v2882 = vmax.f32 %v2866, 0.0
        %v2883 = vmax.f32 %v2867, 0.0
        %v2884 = vmax.f32 %v2868, 0.0
        %v2885 = vmax.f32 %v2869, 0.0
        %v2886 = vmax.f32 %v2870, 0.0
        %v2887 = vmax.f32 %v2871, 0.0
        %v2888 = vmax.f32 %v2872, 0.0
        %v2889 = vmax.f32 %v2873, 0.0
        %v2890 = vmax.f32 %v2874, 0.0
        %v2891 = vmax.f32 %v2875, 0.0
        %v2892 = vpack.c.bf16 %v2876, %v2876
        %v2893 = vpack.c.bf16 %v2877, %v2877
        %v2894 = vpack.c.bf16 %v2878, %v2878
        %v2895 = vpack.c.bf16 %v2879, %v2879
        %v2896 = vpack.c.bf16 %v2880, %v2880
        %v2897 = vpack.c.bf16 %v2881, %v2881
        %v2898 = vpack.c.bf16 %v2882, %v2882
        %v2899 = vpack.c.bf16 %v2883, %v2883
        %v2900 = vpack.c.bf16 %v2884, %v2884
        %v2901 = vpack.c.bf16 %v2885, %v2885
        %v2902 = vpack.c.bf16 %v2886, %v2886
        %v2903 = vpack.c.bf16 %v2887, %v2887
        %v2904 = vpack.c.bf16 %v2888, %v2888
        %v2905 = vpack.c.bf16 %v2889, %v2889
        %v2906 = vpack.c.bf16 %v2890, %v2890
        %v2907 = vpack.c.bf16 %v2891, %v2891
        %2908 = vst [vmem:[%s443] sm:$0xf] %v2892
        %2909 = vst [vmem:[%s443 + $0x4] sm:$0xf] %v2893
        %2910 = vst [vmem:[%s443 + $0x8] sm:$0xf] %v2894
        %2911 = vst [vmem:[%s443 + $0xc] sm:$0xf] %v2895
        %2912 = vst [vmem:[%s443 + $0x10] sm:$0xf] %v2896
        %2913 = vst [vmem:[%s443 + $0x14] sm:$0xf] %v2897
        %2914 = vst [vmem:[%s443 + $0x18] sm:$0xf] %v2898
        %2915 = vst [vmem:[%s443 + $0x1c] sm:$0xf] %v2899
        %2916 = vst [vmem:[%s443 + $0x20] sm:$0xf] %v2900
        %2917 = vst [vmem:[%s443 + $0x24] sm:$0xf] %v2901
        %2918 = vst [vmem:[%s443 + $0x28] sm:$0xf] %v2902
        %2919 = vst [vmem:[%s443 + $0x2c] sm:$0xf] %v2903
        %2920 = vst [vmem:[%s443 + $0x30] sm:$0xf] %v2904
        %2921 = vst [vmem:[%s443 + $0x34] sm:$0xf] %v2905
        %2922 = vst [vmem:[%s443 + $0x38] sm:$0xf] %v2906
        %2923 = vst [vmem:[%s443 + $0x3c] sm:$0xf] %v2907
        %s2924 = sand.u32 %s266, 1
        %s2925 = scalar_lea.sflag [#allocation5], %s2924
        %s2926 = sand.u32 %s266, 1
        %s2927 = smul.addr %s2926, 64
        %s2928 = scalar_lea.vmem [#allocation11], %s2927
        // Predicated region
        $region77: #{tpu_custom_call.1} parent=59 // pred_check
          %p2929 = pneg %p276
        $region78: #{tpu_custom_call.1} parent=59 // pred_check_branch
          %2931 = sbr.rel (%p2929) target = $region80
        $region79: #{tpu_custom_call.1} parent=59 // pred_region
          %s2932 = smul.u32 8, %s34
          %2934 = vsyncadd %s2925, 0
          %s2935 = smul.addr %s2932, 2
          %s2936 = smul.addr %s33, 32
          %s2937 = sadd.s32 %s2935, %s2936
          %s2938 = smul.addr %s2937, 4
          %s2939 = scalar_lea.hbm %s10, %s2938
          %s2940 = sshll.u32 %s2928, 4
          %s2941 = int_to_ptr.vmem [resolvable:$true] %s2940
          %s2942 = sshll.u32 %s2939, 4
          %s2943 = int_to_ptr.hbm [resolvable:$true] %s2942
          %2948 = dma.vmem_to_hbm [thread:$0]  %s2941, 1024, %s2943, %s2925, 64, 64, 4
        $region80: #{tpu_custom_call.1} parent=59 // pred_fallthru
          _
      $region60: #{tpu_custom_call.1} parent=5 // pred_fallthru
        _
      %p2949 = scmp.le.s32.totalorder 2, %s24
      // Predicated region
      $region81: #{tpu_custom_call.1} parent=5 // pred_check
        %p2950 = pneg %p2949
      $region82: #{tpu_custom_call.1} parent=5 // pred_check_branch
        %2952 = sbr.rel (%p2950) target = $region84
      $region83: #{tpu_custom_call.1} parent=5 // pred_region
        %s2953 = ssub.s32 %s24, 2
        // Predicated region
        $region85: #{tpu_custom_call.1} parent=83 // pred_check
          %p2954 = pneg %p282
        $region86: #{tpu_custom_call.1} parent=83 // pred_check_branch
          %2956 = sbr.rel (%p2954) target = $region88
        $region87: #{tpu_custom_call.1} parent=83 // pred_region
          %s2957 = sand.u32 %s267, 1
          %s2958 = scalar_lea.sflag [#allocation5], %s2957
          %s2959 = sand.u32 %s267, 1
          %s2960 = smul.addr %s2959, 64
          %s2961 = scalar_lea.vmem [#allocation11], %s2960
          %2963 = dma.done %s2958, 1024
        $region88: #{tpu_custom_call.1} parent=83 // pred_fallthru
          _
      $region84: #{tpu_custom_call.1} parent=5 // pred_fallthru
        _
    $region6: #{tpu_custom_call.1} parent=1 // loop_footer
      %s28 = sadd.s32 1, %s24
    $region7: #{tpu_custom_call.1} parent=1 // loop_footer_branch
      %23 = sbr.rel target = $region3
    $region8: #{tpu_custom_call.1} parent=1 // loop_exit
      _
    %2964 = vsyncpa [#allocation4], 1
    %s2965 = scalar_lea.sflag [#allocation4], 1
    %2966 = vsyncpa %s2965, 1
    %2967 = vsyncpa [#allocation7], 1
    %2968 = vsyncpa [#allocation10], 1
    %2969 = vsyncpa [#allocation5], 1
    %s2970 = scalar_lea.sflag [#allocation5], 1
    %2971 = vsyncpa %s2970, 1

</llo_original>
